<compile_context>
chip_gen: v7x
topology: tpu7x:2x2x1
jax: 0.10.0
libtpu: 0.0.40
codegen_flags: <defaults>
</compile_context>

<pallas_src>
import jax
import jax.numpy as jnp
import numpy as np
from jax.experimental import pallas as pl
from jax.experimental.pallas import tpu as pltpu

jax.config.update("jax_default_matmul_precision", "highest")

# ---- small, module-consistent configuration ----
EMBED = 32          # embedding_size
VOCAB = 100         # vocab_size
REPRE_OUT = 8       # repre_out_chans
REPRE_K = 3         # repre_conv_kernel
CTX_OUT = 8         # context_out_chans (== RelationLayer feature_dim)
CTX_K = 5           # widest ContextLayer kernel (taps aligned to a common pad=2)
TARGET = 9          # target_size
B = 2               # batch
N = 8               # max_seq (word-level and char-level lengths coincide)
KD = EMBED + REPRE_OUT   # ContextLayer kernel_dim = embedding_size + repre_out_chans


# ---------------------------------------------------------------------------
# Fused kernel: everything after the embedding gathers.
#   char_ref/word_ref : (B, N, E)   float32 embeddings
#   mcol_ref/mrow_ref : (B, N, 1) / (B, 1, N) float mask
#   rw_ref  : (3*E, R)    stacked repre-conv weight, rb_ref: (1, R)
#   cw_ref  : (5*KD, 3*C) fused context-conv weight,  cb_ref: (1, 3*C)
#   gw_ref  : (C, 2*C)    fused forget-gate weights,  gb_ref: (1, 2*C)
#   clw_ref : (C, T)      classifier weight,          clb_ref: (1, T)
#   o_ref   : (B, N, T)
#   xpad_ref: VMEM (B, N+2, E) scratch   zpad_ref: VMEM (B, N+4, KD) scratch
# ---------------------------------------------------------------------------
def grn_kernel(char_ref, word_ref, mcol_ref, mrow_ref,
               rw_ref, rb_ref, cw_ref, cb_ref,
               gw_ref, gb_ref, clw_ref, clb_ref,
               o_ref, xpad_ref, zpad_ref):
    f32 = jnp.float32

    # ---- 1. repre_conv (k=3 over seq, full embed width) + max-pool over seq ----
    xpad_ref[...] = jnp.zeros_like(xpad_ref)
    xpad_ref[:, 1:1 + N, :] = char_ref[...]

    win_rows = []
    for b in range(B):                                     # B is tiny & static
        xp_b = xpad_ref[b]                                 # (N+2, E)
        win_rows.append(jnp.concatenate(
            [xp_b[t:t + N, :] for t in range(REPRE_K)], axis=-1))   # (N, 3*E)
    win_char = jnp.concatenate(win_rows, axis=0)           # (B*N, 3*E)
    conv = jnp.dot(win_char, rw_ref[...],
                   preferred_element_type=f32) + rb_ref[...]        # (B*N, R)
    c_pool = [jnp.max(conv[b * N:(b + 1) * N, :], axis=0, keepdims=True)
              for b in range(B)]                                    # B x (1, R)

    # ---- 2. Torch zero-scatter quirk + concat with word emb -> padded z -------
    # Pooled char vectors land in rows 0..B-1 of the flattened (B*N, R) buffer,
    # i.e. rows 0..B-1 of batch 0; everything else is zero.
    row_ids = jax.lax.broadcasted_iota(jnp.int32, (N, 1), 0)
    repre_b0 = jnp.zeros((N, REPRE_OUT), f32)
    for i in range(B):
        repre_b0 = repre_b0 + (row_ids == i).astype(f32) * c_pool[i]

    zpad_ref[...] = jnp.zeros_like(zpad_ref)
    for b in range(B):
        repre_b = repre_b0 if b == 0 else jnp.zeros((N, REPRE_OUT), f32)
        z_b = jnp.concatenate([repre_b, word_ref[b]], axis=-1)       # (N, KD)
        zpad_ref[b:b + 1, 2:2 + N, :] = z_b[None]

    # ---- 3. ContextLayer: three tanh(conv) branches as ONE stacked matmul -----
    win_ctx = []
    for b in range(B):
        zp_b = zpad_ref[b]                                           # (N+4, KD)
        win_ctx.append(jnp.concatenate(
            [zp_b[t:t + N, :] for t in range(CTX_K)], axis=-1))      # (N, 5*KD)
    win = jnp.concatenate(win_ctx, axis=0)                           # (B*N, 5*KD)
    ctx = jnp.tanh(jnp.dot(win, cw_ref[...],
                           preferred_element_type=f32) + cb_ref[...])  # (B*N, 3*C)
    x_all = jnp.maximum(ctx[:, :CTX_OUT],
                        jnp.maximum(ctx[:, CTX_OUT:2 * CTX_OUT],
                                    ctx[:, 2 * CTX_OUT:3 * CTX_OUT]))  # (B*N, C)

    # ---- 4. RelationLayer (fused forget-gate linear) + classifier -------------
    fgate = jnp.dot(x_all, gw_ref[...],
                    preferred_element_type=f32) + gb_ref[...]        # (B*N, 2*C)

    r_rows = []
    for b in range(B):
        x_b = x_all[b * N:(b + 1) * N, :]                            # (N, C)
        f0 = fgate[b * N:(b + 1) * N, :CTX_OUT]
        f1 = fgate[b * N:(b + 1) * N, CTX_OUT:]
        gate = jax.nn.sigmoid(f0[:, None, :] + f1[None, :, :])       # (N, N, C)
        mc = mcol_ref[b]                                             # (N, 1)
        mr = mrow_ref[b]                                             # (1, N)
        sel = mc * mr                                                # (N, N) VPU broadcast
        fr = x_b[None, :, :] * gate * sel[:, :, None]                # (N, N, C)
        ctxv = jnp.sum(fr, axis=1)                                   # (N, C)
        inv_len = 1.0 / jnp.sum(mr)                                  # scalar reciprocal
        r_rows.append(jnp.tanh(ctxv * inv_len))
    r_all = jnp.concatenate(r_rows, axis=0)                          # (B*N, C)

    logits = jnp.dot(r_all, clw_ref[...],
                     preferred_element_type=f32) + clb_ref[...]      # (B*N, T)
    for b in range(B):
        o_ref[b:b + 1, :, :] = logits[b * N:(b + 1) * N, :][None]


# ---------------------------------------------------------------------------
# One-time parameter layout prep (outside jit / outside the hot path).
# ---------------------------------------------------------------------------
def prepare_params(params):
    # repre conv: (R, K, E) -> stacked (K*E, R)
    rw = jnp.transpose(params["repre_w"], (1, 2, 0)).reshape(REPRE_K * EMBED, REPRE_OUT)
    rb = params["repre_b"].reshape(1, REPRE_OUT)

    # context convs fused: (5, KD, 3*C) with tap t = dk + 2 - pad, then flatten.
    cw = jnp.zeros((CTX_K, KD, 3 * CTX_OUT), jnp.float32)
    cw = cw.at[2:3, :, 0:CTX_OUT].set(jnp.transpose(params["ctx_w1"], (1, 2, 0)))
    cw = cw.at[1:4, :, CTX_OUT:2 * CTX_OUT].set(jnp.transpose(params["ctx_w3"], (1, 2, 0)))
    cw = cw.at[0:5, :, 2 * CTX_OUT:3 * CTX_OUT].set(jnp.transpose(params["ctx_w5"], (1, 2, 0)))
    cw = cw.reshape(CTX_K * KD, 3 * CTX_OUT)
    cb = jnp.concatenate([params["ctx_b1"], params["ctx_b3"],
                          params["ctx_b5"]]).reshape(1, 3 * CTX_OUT)

    # relation forget-gate linears fused: (C, 2*C)
    gw = jnp.concatenate([params["rel_w0"].T, params["rel_w1"].T], axis=1)
    gb = jnp.concatenate([params["rel_b0"], params["rel_b1"]]).reshape(1, 2 * CTX_OUT)

    clw = params["cls_w"].T                                  # (C, T)
    clb = params["cls_b"].reshape(1, TARGET)

    return {"emb": params["emb"], "repre_w": rw, "repre_b": rb,
            "ctx_w": cw, "ctx_b": cb, "rel_w": gw, "rel_b": gb,
            "cls_w": clw, "cls_b": clb}


# ---------------------------------------------------------------------------
# Forward: embedding gathers + mask layout in plain JAX, everything else fused.
# ---------------------------------------------------------------------------
def grn_forward(prepped, input_ids, char_input_ids, attention_mask):
    emb = prepped["emb"]
    char_emb = emb[char_input_ids].astype(jnp.float32)               # (B, N, E)
    word_emb = emb[input_ids].astype(jnp.float32)                    # (B, N, E)
    mask = attention_mask.astype(jnp.float32)
    m_col = mask.reshape(B, N, 1)
    m_row = mask.reshape(B, 1, N)

    return pl.pallas_call(
        grn_kernel,
        out_shape=jax.ShapeDtypeStruct((B, N, TARGET), jnp.float32),
        scratch_shapes=[
            pltpu.VMEM((B, N + 2, EMBED), jnp.float32),   # zero-padded char emb
            pltpu.VMEM((B, N + 4, KD), jnp.float32),      # zero-padded z
        ],
    )(char_emb, word_emb, m_col, m_row,
      prepped["repre_w"], prepped["repre_b"],
      prepped["ctx_w"], prepped["ctx_b"],
      prepped["rel_w"], prepped["rel_b"],
      prepped["cls_w"], prepped["cls_b"])


# ---------------------------------------------------------------------------
# Pure-JAX reference (mirrors the PyTorch math) for a correctness check.
# ---------------------------------------------------------------------------
def grn_reference(params, input_ids, char_input_ids, attention_mask):
    emb = params["emb"]
    char_emb = emb[char_input_ids]
    xp = jnp.pad(char_emb, ((0, 0), (1, 1), (0, 0)))
    win = jnp.stack([xp[:, k:k + N, :] for k in range(REPRE_K)], axis=2)     # (B,N,3,E)
    conv = jnp.einsum("bnke,oke->bno", win, params["repre_w"]) + params["repre_b"]
    c_char = jnp.max(conv, axis=1)                                           # (B, R)
    temp = jnp.zeros((B * N, REPRE_OUT), jnp.float32).at[:B].set(c_char)
    c_char = temp.reshape(B, N, REPRE_OUT)
    word_emb = emb[input_ids]
    z = jnp.concatenate([c_char, word_emb], axis=-1)

    def conv_branch(w, b, k, pad):
        zp = jnp.pad(z, ((0, 0), (pad, pad), (0, 0)))
        wwin = jnp.stack([zp[:, i:i + N, :] for i in range(k)], axis=2)
        return jnp.tanh(jnp.einsum("bnkd,okd->bno", wwin, w) + b)

    a1 = conv_branch(params["ctx_w1"], params["ctx_b1"], 1, 0)
    a3 = conv_branch(params["ctx_w3"], params["ctx_b3"], 3, 1)
    a5 = conv_branch(params["ctx_w5"], params["ctx_b5"], 5, 2)
    x = jnp.maximum(a1, jnp.maximum(a3, a5))

    mask = attention_mask.astype(jnp.float32)
    f0 = x @ params["rel_w0"].T + params["rel_b0"]
    f1 = x @ params["rel_w1"].T + params["rel_b1"]
    gate = jax.nn.sigmoid(f0[:, :, None, :] + f1[:, None, :, :])
    sel = (mask[:, :, None] * mask[:, None, :])[..., None]
    fr = x[:, None, :, :] * gate * sel
    ctx = jnp.sum(fr, axis=2)
    slen = jnp.sum(mask, axis=1)
    r = jnp.tanh(ctx / slen[:, None, None])
    return r @ params["cls_w"].T + params["cls_b"]


if __name__ == "__main__":
    key = jax.random.PRNGKey(0)
    ks = jax.random.split(key, 20)

    def nrm(k, shape):
        return 0.1 * jax.random.normal(k, shape, jnp.float32)

    params = {
        "emb": nrm(ks[0], (VOCAB, EMBED)),
        # Conv2d(1, REPRE_OUT, (3, EMBED)) weight with the in_channels dim squeezed
        "repre_w": nrm(ks[1], (REPRE_OUT, REPRE_K, EMBED)),
        "repre_b": nrm(ks[2], (REPRE_OUT,)),
        # ContextLayer convs (kernel widths 1, 3, 5 over seq; full KD feature width)
        "ctx_w1": nrm(ks[3], (CTX_OUT, 1, KD)),
        "ctx_b1": nrm(ks[4], (CTX_OUT,)),
        "ctx_w3": nrm(ks[5], (CTX_OUT, 3, KD)),
        "ctx_b3": nrm(ks[6], (CTX_OUT,)),
        "ctx_w5": nrm(ks[7], (CTX_OUT, 5, KD)),
        "ctx_b5": nrm(ks[8], (CTX_OUT,)),
        # RelationLayer linears (torch Linear convention: (out, in))
        "rel_w0": nrm(ks[9], (CTX_OUT, CTX_OUT)),
        "rel_b0": nrm(ks[10], (CTX_OUT,)),
        "rel_w1": nrm(ks[11], (CTX_OUT, CTX_OUT)),
        "rel_b1": nrm(ks[12], (CTX_OUT,)),
        # classifier
        "cls_w": nrm(ks[13], (TARGET, CTX_OUT)),
        "cls_b": nrm(ks[16], (TARGET,)),
    }

    input_ids = jax.random.randint(ks[14], (B, N), 0, VOCAB, dtype=jnp.int32)
    char_input_ids = jax.random.randint(ks[15], (B, N), 0, VOCAB, dtype=jnp.int32)
    lengths = jnp.array([N, 5], jnp.int32)
    attention_mask = (jnp.arange(N)[None, :] < lengths[:, None]).astype(jnp.int32)

    prepped = prepare_params(params)            # one-time layout work (outside jit)
    fwd = jax.jit(grn_forward)
    preds = fwd(prepped, input_ids, char_input_ids, attention_mask)
    preds = jax.block_until_ready(preds)

    ref = grn_reference(params, input_ids, char_input_ids, attention_mask)
    np.testing.assert_allclose(np.asarray(preds), np.asarray(ref), rtol=1e-4, atol=1e-4)

    print("KERNEL_OK")
</pallas_src>

<mosaic_0001>
module attributes {stable_mosaic.version = 11 : i64} {
  func.func @grn_kernel(%arg0: memref<2x8x32xf32, #tpu.memory_space<vmem>>, %arg1: memref<2x8x32xf32, #tpu.memory_space<vmem>>, %arg2: memref<2x8x1xf32, #tpu.memory_space<vmem>>, %arg3: memref<2x1x8xf32, #tpu.memory_space<vmem>>, %arg4: memref<96x8xf32, #tpu.memory_space<vmem>>, %arg5: memref<1x8xf32, #tpu.memory_space<vmem>>, %arg6: memref<200x24xf32, #tpu.memory_space<vmem>>, %arg7: memref<1x24xf32, #tpu.memory_space<vmem>>, %arg8: memref<8x16xf32, #tpu.memory_space<vmem>>, %arg9: memref<1x16xf32, #tpu.memory_space<vmem>>, %arg10: memref<8x9xf32, #tpu.memory_space<vmem>>, %arg11: memref<1x9xf32, #tpu.memory_space<vmem>>, %arg12: memref<2x8x9xf32, #tpu.memory_space<vmem>>, %arg13: memref<2x10x32xf32, #tpu.memory_space<vmem>>, %arg14: memref<2x12x40xf32, #tpu.memory_space<vmem>>) attributes {dimension_semantics = [], scalar_prefetch = 0 : i64, scratch_operands = 2 : i64, tpu.core_type = #tpu.core_type<tc>} {
    %cst = arith.constant 0.000000e+00 : f32
    %0 = vector.broadcast %cst : f32 to vector<2x10x32xf32>
    %c0 = arith.constant 0 : index
    %c0_0 = arith.constant 0 : index
    %c0_1 = arith.constant 0 : index
    %1 = vector.load %arg13[%c0, %c0_0, %c0_1] : memref<2x10x32xf32, #tpu.memory_space<vmem>>, vector<2x10x32xf32>
    tpu.vector_store %arg13[%c0, %c0_0, %c0_1], %0 {strides = array<i32>} : memref<2x10x32xf32, #tpu.memory_space<vmem>>, vector<2x10x32xf32>,
    %c0_2 = arith.constant 0 : index
    %c0_3 = arith.constant 0 : index
    %c0_4 = arith.constant 0 : index
    %2 = vector.load %arg0[%c0_2, %c0_3, %c0_4] : memref<2x8x32xf32, #tpu.memory_space<vmem>>, vector<2x8x32xf32>
    %c0_5 = arith.constant 0 : index
    %c1 = arith.constant 1 : index
    %c0_6 = arith.constant 0 : index
    %3 = vector.load %arg13[%c0_5, %c1, %c0_6] : memref<2x10x32xf32, #tpu.memory_space<vmem>>, vector<2x8x32xf32>
    tpu.vector_store %arg13[%c0_5, %c1, %c0_6], %2 {strides = array<i32>} : memref<2x10x32xf32, #tpu.memory_space<vmem>>, vector<2x8x32xf32>,
    %c0_7 = arith.constant 0 : index
    %c0_8 = arith.constant 0 : index
    %c0_9 = arith.constant 0 : index
    %4 = vector.load %arg13[%c0_7, %c0_8, %c0_9] : memref<2x10x32xf32, #tpu.memory_space<vmem>>, vector<1x10x32xf32>
    %5 = vector.shape_cast %4 : vector<1x10x32xf32> to vector<10x32xf32>
    %6 = vector.extract_strided_slice %5 {offsets = [0, 0], sizes = [8, 32], strides = [1, 1]} : vector<10x32xf32> to vector<8x32xf32>
    %7 = vector.extract_strided_slice %5 {offsets = [1, 0], sizes = [8, 32], strides = [1, 1]} : vector<10x32xf32> to vector<8x32xf32>
    %8 = vector.extract_strided_slice %5 {offsets = [2, 0], sizes = [8, 32], strides = [1, 1]} : vector<10x32xf32> to vector<8x32xf32>
    %9 = tpu.concatenate %6, %7, %8 in 1 : vector<8x32xf32>, vector<8x32xf32>, vector<8x32xf32> -> vector<8x96xf32>
    %c1_10 = arith.constant 1 : index
    %c0_11 = arith.constant 0 : index
    %c0_12 = arith.constant 0 : index
    %10 = vector.load %arg13[%c1_10, %c0_11, %c0_12] : memref<2x10x32xf32, #tpu.memory_space<vmem>>, vector<1x10x32xf32>
    %11 = vector.shape_cast %10 : vector<1x10x32xf32> to vector<10x32xf32>
    %12 = vector.extract_strided_slice %11 {offsets = [0, 0], sizes = [8, 32], strides = [1, 1]} : vector<10x32xf32> to vector<8x32xf32>
    %13 = vector.extract_strided_slice %11 {offsets = [1, 0], sizes = [8, 32], strides = [1, 1]} : vector<10x32xf32> to vector<8x32xf32>
    %14 = vector.extract_strided_slice %11 {offsets = [2, 0], sizes = [8, 32], strides = [1, 1]} : vector<10x32xf32> to vector<8x32xf32>
    %15 = tpu.concatenate %12, %13, %14 in 1 : vector<8x32xf32>, vector<8x32xf32>, vector<8x32xf32> -> vector<8x96xf32>
    %16 = tpu.concatenate %9, %15 in 0 : vector<8x96xf32>, vector<8x96xf32> -> vector<16x96xf32>
    %c0_13 = arith.constant 0 : index
    %c0_14 = arith.constant 0 : index
    %17 = vector.load %arg4[%c0_13, %c0_14] : memref<96x8xf32, #tpu.memory_space<vmem>>, vector<96x8xf32>
    %cst_15 = arith.constant dense<0.000000e+00> : vector<16x8xf32>
    %18 = tpu.matmul %16, %17, %cst_15 {dimension_numbers = #tpu.dot_dimension_numbers<[1], [0], [0], [1], [0, 0, 1, 1], [], []>, precision = #tpu.contract_precision<fp32>} : vector<16x96xf32>, vector<96x8xf32>, vector<16x8xf32> -> vector<16x8xf32>
    %c0_16 = arith.constant 0 : index
    %c0_17 = arith.constant 0 : index
    %19 = vector.load %arg5[%c0_16, %c0_17] : memref<1x8xf32, #tpu.memory_space<vmem>>, vector<1x8xf32>
    %20 = vector.broadcast %19 : vector<1x8xf32> to vector<16x8xf32>
    %21 = arith.addf %18, %20 : vector<16x8xf32>
    %22 = vector.extract_strided_slice %21 {offsets = [0, 0], sizes = [8, 8], strides = [1, 1]} : vector<16x8xf32> to vector<8x8xf32>
    %cst_18 = arith.constant dense<0xFF800000> : vector<8xf32>
    %23 = vector.multi_reduction <maximumf>, %22, %cst_18 [0] : vector<8x8xf32> to vector<8xf32>
    %24 = vector.shape_cast %23 : vector<8xf32> to vector<1x8xf32>
    %25 = vector.extract_strided_slice %21 {offsets = [8, 0], sizes = [8, 8], strides = [1, 1]} : vector<16x8xf32> to vector<8x8xf32>
    %cst_19 = arith.constant dense<0xFF800000> : vector<8xf32>
    %26 = vector.multi_reduction <maximumf>, %25, %cst_19 [0] : vector<8x8xf32> to vector<8xf32>
    %27 = vector.shape_cast %26 : vector<8xf32> to vector<1x8xf32>
    %28 = tpu.iota {dimensions = array<i32: 0>} : vector<8x1xi32>
    %cst_20 = arith.constant 0.000000e+00 : f32
    %29 = vector.broadcast %cst_20 : f32 to vector<8x8xf32>
    %c0_i32 = arith.constant 0 : i32
    %30 = vector.broadcast %c0_i32 : i32 to vector<8x1xi32>
    %31 = arith.cmpi eq, %28, %30 : vector<8x1xi32>
    %32 = arith.extui %31 : vector<8x1xi1> to vector<8x1xi32>
    %33 = arith.sitofp %32 : vector<8x1xi32> to vector<8x1xf32>
    %34 = vector.broadcast %33 : vector<8x1xf32> to vector<8x8xf32>
    %35 = vector.broadcast %24 : vector<1x8xf32> to vector<8x8xf32>
    %36 = arith.mulf %34, %35 : vector<8x8xf32>
    %37 = arith.addf %29, %36 : vector<8x8xf32>
    %c1_i32 = arith.constant 1 : i32
    %38 = vector.broadcast %c1_i32 : i32 to vector<8x1xi32>
    %39 = arith.cmpi eq, %28, %38 : vector<8x1xi32>
    %40 = arith.extui %39 : vector<8x1xi1> to vector<8x1xi32>
    %41 = arith.sitofp %40 : vector<8x1xi32> to vector<8x1xf32>
    %42 = vector.broadcast %41 : vector<8x1xf32> to vector<8x8xf32>
    %43 = vector.broadcast %27 : vector<1x8xf32> to vector<8x8xf32>
    %44 = arith.mulf %42, %43 : vector<8x8xf32>
    %45 = arith.addf %37, %44 : vector<8x8xf32>
    %cst_21 = arith.constant 0.000000e+00 : f32
    %46 = vector.broadcast %cst_21 : f32 to vector<2x12x40xf32>
    %c0_22 = arith.constant 0 : index
    %c0_23 = arith.constant 0 : index
    %c0_24 = arith.constant 0 : index
    %47 = vector.load %arg14[%c0_22, %c0_23, %c0_24] : memref<2x12x40xf32, #tpu.memory_space<vmem>>, vector<2x12x40xf32>
    tpu.vector_store %arg14[%c0_22, %c0_23, %c0_24], %46 {strides = array<i32>} : memref<2x12x40xf32, #tpu.memory_space<vmem>>, vector<2x12x40xf32>,
    %c0_25 = arith.constant 0 : index
    %c0_26 = arith.constant 0 : index
    %c0_27 = arith.constant 0 : index
    %48 = vector.load %arg1[%c0_25, %c0_26, %c0_27] : memref<2x8x32xf32, #tpu.memory_space<vmem>>, vector<1x8x32xf32>
    %49 = vector.shape_cast %48 : vector<1x8x32xf32> to vector<8x32xf32>
    %50 = tpu.concatenate %45, %49 in 1 : vector<8x8xf32>, vector<8x32xf32> -> vector<8x40xf32>
    %51 = vector.shape_cast %50 : vector<8x40xf32> to vector<1x8x40xf32>
    %c0_28 = arith.constant 0 : index
    %c2 = arith.constant 2 : index
    %c0_29 = arith.constant 0 : index
    %52 = vector.load %arg14[%c0_28, %c2, %c0_29] : memref<2x12x40xf32, #tpu.memory_space<vmem>>, vector<1x8x40xf32>
    tpu.vector_store %arg14[%c0_28, %c2, %c0_29], %51 {strides = array<i32>} : memref<2x12x40xf32, #tpu.memory_space<vmem>>, vector<1x8x40xf32>,
    %cst_30 = arith.constant 0.000000e+00 : f32
    %53 = vector.broadcast %cst_30 : f32 to vector<8x8xf32>
    %c1_31 = arith.constant 1 : index
    %c0_32 = arith.constant 0 : index
    %c0_33 = arith.constant 0 : index
    %54 = vector.load %arg1[%c1_31, %c0_32, %c0_33] : memref<2x8x32xf32, #tpu.memory_space<vmem>>, vector<1x8x32xf32>
    %55 = vector.shape_cast %54 : vector<1x8x32xf32> to vector<8x32xf32>
    %56 = tpu.concatenate %53, %55 in 1 : vector<8x8xf32>, vector<8x32xf32> -> vector<8x40xf32>
    %57 = vector.shape_cast %56 : vector<8x40xf32> to vector<1x8x40xf32>
    %c1_34 = arith.constant 1 : index
    %c2_35 = arith.constant 2 : index
    %c0_36 = arith.constant 0 : index
    %58 = vector.load %arg14[%c1_34, %c2_35, %c0_36] : memref<2x12x40xf32, #tpu.memory_space<vmem>>, vector<1x8x40xf32>
    tpu.vector_store %arg14[%c1_34, %c2_35, %c0_36], %57 {strides = array<i32>} : memref<2x12x40xf32, #tpu.memory_space<vmem>>, vector<1x8x40xf32>,
    %c0_37 = arith.constant 0 : index
    %c0_38 = arith.constant 0 : index
    %c0_39 = arith.constant 0 : index
    %59 = vector.load %arg14[%c0_37, %c0_38, %c0_39] : memref<2x12x40xf32, #tpu.memory_space<vmem>>, vector<1x12x40xf32>
    %60 = vector.shape_cast %59 : vector<1x12x40xf32> to vector<12x40xf32>
    %61 = vector.extract_strided_slice %60 {offsets = [0, 0], sizes = [8, 40], strides = [1, 1]} : vector<12x40xf32> to vector<8x40xf32>
    %62 = vector.extract_strided_slice %60 {offsets = [1, 0], sizes = [8, 40], strides = [1, 1]} : vector<12x40xf32> to vector<8x40xf32>
    %63 = vector.extract_strided_slice %60 {offsets = [2, 0], sizes = [8, 40], strides = [1, 1]} : vector<12x40xf32> to vector<8x40xf32>
    %64 = vector.extract_strided_slice %60 {offsets = [3, 0], sizes = [8, 40], strides = [1, 1]} : vector<12x40xf32> to vector<8x40xf32>
    %65 = vector.extract_strided_slice %60 {offsets = [4, 0], sizes = [8, 40], strides = [1, 1]} : vector<12x40xf32> to vector<8x40xf32>
    %66 = tpu.concatenate %61, %62, %63, %64, %65 in 1 : vector<8x40xf32>, vector<8x40xf32>, vector<8x40xf32>, vector<8x40xf32>, vector<8x40xf32> -> vector<8x200xf32>
    %c1_40 = arith.constant 1 : index
    %c0_41 = arith.constant 0 : index
    %c0_42 = arith.constant 0 : index
    %67 = vector.load %arg14[%c1_40, %c0_41, %c0_42] : memref<2x12x40xf32, #tpu.memory_space<vmem>>, vector<1x12x40xf32>
    %68 = vector.shape_cast %67 : vector<1x12x40xf32> to vector<12x40xf32>
    %69 = vector.extract_strided_slice %68 {offsets = [0, 0], sizes = [8, 40], strides = [1, 1]} : vector<12x40xf32> to vector<8x40xf32>
    %70 = vector.extract_strided_slice %68 {offsets = [1, 0], sizes = [8, 40], strides = [1, 1]} : vector<12x40xf32> to vector<8x40xf32>
    %71 = vector.extract_strided_slice %68 {offsets = [2, 0], sizes = [8, 40], strides = [1, 1]} : vector<12x40xf32> to vector<8x40xf32>
    %72 = vector.extract_strided_slice %68 {offsets = [3, 0], sizes = [8, 40], strides = [1, 1]} : vector<12x40xf32> to vector<8x40xf32>
    %73 = vector.extract_strided_slice %68 {offsets = [4, 0], sizes = [8, 40], strides = [1, 1]} : vector<12x40xf32> to vector<8x40xf32>
    %74 = tpu.concatenate %69, %70, %71, %72, %73 in 1 : vector<8x40xf32>, vector<8x40xf32>, vector<8x40xf32>, vector<8x40xf32>, vector<8x40xf32> -> vector<8x200xf32>
    %75 = tpu.concatenate %66, %74 in 0 : vector<8x200xf32>, vector<8x200xf32> -> vector<16x200xf32>
    %c0_43 = arith.constant 0 : index
    %c0_44 = arith.constant 0 : index
    %76 = vector.load %arg6[%c0_43, %c0_44] : memref<200x24xf32, #tpu.memory_space<vmem>>, vector<200x24xf32>
    %cst_45 = arith.constant dense<0.000000e+00> : vector<16x24xf32>
    %77 = tpu.matmul %75, %76, %cst_45 {dimension_numbers = #tpu.dot_dimension_numbers<[1], [0], [0], [1], [0, 0, 1, 1], [], []>, precision = #tpu.contract_precision<fp32>} : vector<16x200xf32>, vector<200x24xf32>, vector<16x24xf32> -> vector<16x24xf32>
    %c0_46 = arith.constant 0 : index
    %c0_47 = arith.constant 0 : index
    %78 = vector.load %arg7[%c0_46, %c0_47] : memref<1x24xf32, #tpu.memory_space<vmem>>, vector<1x24xf32>
    %79 = vector.broadcast %78 : vector<1x24xf32> to vector<16x24xf32>
    %80 = arith.addf %77, %79 : vector<16x24xf32>
    %81 = math.tanh %80 : vector<16x24xf32>
    %82 = vector.extract_strided_slice %81 {offsets = [0, 0], sizes = [16, 8], strides = [1, 1]} : vector<16x24xf32> to vector<16x8xf32>
    %83 = vector.extract_strided_slice %81 {offsets = [0, 8], sizes = [16, 8], strides = [1, 1]} : vector<16x24xf32> to vector<16x8xf32>
    %84 = vector.extract_strided_slice %81 {offsets = [0, 16], sizes = [16, 8], strides = [1, 1]} : vector<16x24xf32> to vector<16x8xf32>
    %85 = arith.maximumf %83, %84 : vector<16x8xf32>
    %86 = arith.maximumf %82, %85 : vector<16x8xf32>
    %c0_48 = arith.constant 0 : index
    %c0_49 = arith.constant 0 : index
    %87 = vector.load %arg8[%c0_48, %c0_49] : memref<8x16xf32, #tpu.memory_space<vmem>>, vector<8x16xf32>
    %cst_50 = arith.constant dense<0.000000e+00> : vector<16x16xf32>
    %88 = tpu.matmul %86, %87, %cst_50 {dimension_numbers = #tpu.dot_dimension_numbers<[1], [0], [0], [1], [0, 0, 1, 1], [], []>, precision = #tpu.contract_precision<fp32>} : vector<16x8xf32>, vector<8x16xf32>, vector<16x16xf32> -> vector<16x16xf32>
    %c0_51 = arith.constant 0 : index
    %c0_52 = arith.constant 0 : index
    %89 = vector.load %arg9[%c0_51, %c0_52] : memref<1x16xf32, #tpu.memory_space<vmem>>, vector<1x16xf32>
    %90 = vector.broadcast %89 : vector<1x16xf32> to vector<16x16xf32>
    %91 = arith.addf %88, %90 : vector<16x16xf32>
    %92 = vector.extract_strided_slice %86 {offsets = [0, 0], sizes = [8, 8], strides = [1, 1]} : vector<16x8xf32> to vector<8x8xf32>
    %93 = vector.extract_strided_slice %91 {offsets = [0, 0], sizes = [8, 8], strides = [1, 1]} : vector<16x16xf32> to vector<8x8xf32>
    %94 = vector.extract_strided_slice %91 {offsets = [0, 8], sizes = [8, 8], strides = [1, 1]} : vector<16x16xf32> to vector<8x8xf32>
    %95 = vector.shape_cast %93 : vector<8x8xf32> to vector<8x1x8xf32>
    %96 = vector.shape_cast %94 : vector<8x8xf32> to vector<1x8x8xf32>
    %97 = vector.broadcast %95 : vector<8x1x8xf32> to vector<8x8x8xf32>
    %98 = vector.broadcast %96 : vector<1x8x8xf32> to vector<8x8x8xf32>
    %99 = arith.addf %97, %98 : vector<8x8x8xf32>
    %100 = arith.negf %99 : vector<8x8x8xf32>
    %101 = math.exp %100 : vector<8x8x8xf32>
    %cst_53 = arith.constant 1.000000e+00 : f32
    %102 = vector.broadcast %cst_53 : f32 to vector<8x8x8xf32>
    %103 = arith.addf %102, %101 : vector<8x8x8xf32>
    %104 = arith.divf %102, %103 : vector<8x8x8xf32>
    %c0_54 = arith.constant 0 : index
    %c0_55 = arith.constant 0 : index
    %c0_56 = arith.constant 0 : index
    %105 = vector.load %arg2[%c0_54, %c0_55, %c0_56] : memref<2x8x1xf32, #tpu.memory_space<vmem>>, vector<1x8x1xf32>
    %106 = vector.shape_cast %105 : vector<1x8x1xf32> to vector<8x1xf32>
    %c0_57 = arith.constant 0 : index
    %c0_58 = arith.constant 0 : index
    %c0_59 = arith.constant 0 : index
    %107 = vector.load %arg3[%c0_57, %c0_58, %c0_59] : memref<2x1x8xf32, #tpu.memory_space<vmem>>, vector<1x1x8xf32>
    %108 = vector.shape_cast %107 : vector<1x1x8xf32> to vector<1x8xf32>
    %109 = vector.broadcast %106 : vector<8x1xf32> to vector<8x8xf32>
    %110 = vector.broadcast %108 : vector<1x8xf32> to vector<8x8xf32>
    %111 = arith.mulf %109, %110 : vector<8x8xf32>
    %112 = vector.shape_cast %92 : vector<8x8xf32> to vector<1x8x8xf32>
    %113 = vector.broadcast %112 : vector<1x8x8xf32> to vector<8x8x8xf32>
    %114 = arith.mulf %113, %104 : vector<8x8x8xf32>
    %115 = vector.shape_cast %111 : vector<8x8xf32> to vector<8x8x1xf32>
    %116 = vector.broadcast %115 : vector<8x8x1xf32> to vector<8x8x8xf32>
    %117 = arith.mulf %114, %116 : vector<8x8x8xf32>
    %cst_60 = arith.constant dense<0.000000e+00> : vector<8x8xf32>
    %118 = vector.multi_reduction <add>, %117, %cst_60 [1] : vector<8x8x8xf32> to vector<8x8xf32>
    %119 = vector.shape_cast %108 : vector<1x8xf32> to vector<1x1x8xf32>
    %cst_61 = arith.constant dense<0.000000e+00> : vector<1xf32>
    %120 = vector.multi_reduction <add>, %119, %cst_61 [1, 2] : vector<1x1x8xf32> to vector<1xf32>
    %121 = vector.shape_cast %120 : vector<1xf32> to vector<1x1x1xf32>
    %122 = vector.extract %121[0, 0, 0] : f32 from vector<1x1x1xf32>
    %cst_62 = arith.constant 1.000000e+00 : f32
    %123 = arith.divf %cst_62, %122 : f32
    %124 = vector.broadcast %123 : f32 to vector<8x8xf32>
    %125 = arith.mulf %118, %124 : vector<8x8xf32>
    %126 = math.tanh %125 : vector<8x8xf32>
    %127 = vector.extract_strided_slice %86 {offsets = [8, 0], sizes = [8, 8], strides = [1, 1]} : vector<16x8xf32> to vector<8x8xf32>
    %128 = vector.extract_strided_slice %91 {offsets = [8, 0], sizes = [8, 8], strides = [1, 1]} : vector<16x16xf32> to vector<8x8xf32>
    %129 = vector.extract_strided_slice %91 {offsets = [8, 8], sizes = [8, 8], strides = [1, 1]} : vector<16x16xf32> to vector<8x8xf32>
    %130 = vector.shape_cast %128 : vector<8x8xf32> to vector<8x1x8xf32>
    %131 = vector.shape_cast %129 : vector<8x8xf32> to vector<1x8x8xf32>
    %132 = vector.broadcast %130 : vector<8x1x8xf32> to vector<8x8x8xf32>
    %133 = vector.broadcast %131 : vector<1x8x8xf32> to vector<8x8x8xf32>
    %134 = arith.addf %132, %133 : vector<8x8x8xf32>
    %135 = arith.negf %134 : vector<8x8x8xf32>
    %136 = math.exp %135 : vector<8x8x8xf32>
    %cst_63 = arith.constant 1.000000e+00 : f32
    %137 = vector.broadcast %cst_63 : f32 to vector<8x8x8xf32>
    %138 = arith.addf %137, %136 : vector<8x8x8xf32>
    %139 = arith.divf %137, %138 : vector<8x8x8xf32>
    %c1_64 = arith.constant 1 : index
    %c0_65 = arith.constant 0 : index
    %c0_66 = arith.constant 0 : index
    %140 = vector.load %arg2[%c1_64, %c0_65, %c0_66] : memref<2x8x1xf32, #tpu.memory_space<vmem>>, vector<1x8x1xf32>
    %141 = vector.shape_cast %140 : vector<1x8x1xf32> to vector<8x1xf32>
    %c1_67 = arith.constant 1 : index
    %c0_68 = arith.constant 0 : index
    %c0_69 = arith.constant 0 : index
    %142 = vector.load %arg3[%c1_67, %c0_68, %c0_69] : memref<2x1x8xf32, #tpu.memory_space<vmem>>, vector<1x1x8xf32>
    %143 = vector.shape_cast %142 : vector<1x1x8xf32> to vector<1x8xf32>
    %144 = vector.broadcast %141 : vector<8x1xf32> to vector<8x8xf32>
    %145 = vector.broadcast %143 : vector<1x8xf32> to vector<8x8xf32>
    %146 = arith.mulf %144, %145 : vector<8x8xf32>
    %147 = vector.shape_cast %127 : vector<8x8xf32> to vector<1x8x8xf32>
    %148 = vector.broadcast %147 : vector<1x8x8xf32> to vector<8x8x8xf32>
    %149 = arith.mulf %148, %139 : vector<8x8x8xf32>
    %150 = vector.shape_cast %146 : vector<8x8xf32> to vector<8x8x1xf32>
    %151 = vector.broadcast %150 : vector<8x8x1xf32> to vector<8x8x8xf32>
    %152 = arith.mulf %149, %151 : vector<8x8x8xf32>
    %cst_70 = arith.constant dense<0.000000e+00> : vector<8x8xf32>
    %153 = vector.multi_reduction <add>, %152, %cst_70 [1] : vector<8x8x8xf32> to vector<8x8xf32>
    %154 = vector.shape_cast %143 : vector<1x8xf32> to vector<1x1x8xf32>
    %cst_71 = arith.constant dense<0.000000e+00> : vector<1xf32>
    %155 = vector.multi_reduction <add>, %154, %cst_71 [1, 2] : vector<1x1x8xf32> to vector<1xf32>
    %156 = vector.shape_cast %155 : vector<1xf32> to vector<1x1x1xf32>
    %157 = vector.extract %156[0, 0, 0] : f32 from vector<1x1x1xf32>
    %cst_72 = arith.constant 1.000000e+00 : f32
    %158 = arith.divf %cst_72, %157 : f32
    %159 = vector.broadcast %158 : f32 to vector<8x8xf32>
    %160 = arith.mulf %153, %159 : vector<8x8xf32>
    %161 = math.tanh %160 : vector<8x8xf32>
    %162 = tpu.concatenate %126, %161 in 0 : vector<8x8xf32>, vector<8x8xf32> -> vector<16x8xf32>
    %c0_73 = arith.constant 0 : index
    %c0_74 = arith.constant 0 : index
    %163 = vector.load %arg10[%c0_73, %c0_74] : memref<8x9xf32, #tpu.memory_space<vmem>>, vector<8x9xf32>
    %cst_75 = arith.constant dense<0.000000e+00> : vector<16x9xf32>
    %164 = tpu.matmul %162, %163, %cst_75 {dimension_numbers = #tpu.dot_dimension_numbers<[1], [0], [0], [1], [0, 0, 1, 1], [], []>, precision = #tpu.contract_precision<fp32>} : vector<16x8xf32>, vector<8x9xf32>, vector<16x9xf32> -> vector<16x9xf32>
    %c0_76 = arith.constant 0 : index
    %c0_77 = arith.constant 0 : index
    %165 = vector.load %arg11[%c0_76, %c0_77] : memref<1x9xf32, #tpu.memory_space<vmem>>, vector<1x9xf32>
    %166 = vector.broadcast %165 : vector<1x9xf32> to vector<16x9xf32>
    %167 = arith.addf %164, %166 : vector<16x9xf32>
    %168 = vector.extract_strided_slice %167 {offsets = [0, 0], sizes = [8, 9], strides = [1, 1]} : vector<16x9xf32> to vector<8x9xf32>
    %169 = vector.shape_cast %168 : vector<8x9xf32> to vector<1x8x9xf32>
    %c0_78 = arith.constant 0 : index
    %c0_79 = arith.constant 0 : index
    %c0_80 = arith.constant 0 : index
    %170 = vector.load %arg12[%c0_78, %c0_79, %c0_80] : memref<2x8x9xf32, #tpu.memory_space<vmem>>, vector<1x8x9xf32>
    tpu.vector_store %arg12[%c0_78, %c0_79, %c0_80], %169 {strides = array<i32>} : memref<2x8x9xf32, #tpu.memory_space<vmem>>, vector<1x8x9xf32>,
    %171 = vector.extract_strided_slice %167 {offsets = [8, 0], sizes = [8, 9], strides = [1, 1]} : vector<16x9xf32> to vector<8x9xf32>
    %172 = vector.shape_cast %171 : vector<8x9xf32> to vector<1x8x9xf32>
    %c1_81 = arith.constant 1 : index
    %c0_82 = arith.constant 0 : index
    %c0_83 = arith.constant 0 : index
    %173 = vector.load %arg12[%c1_81, %c0_82, %c0_83] : memref<2x8x9xf32, #tpu.memory_space<vmem>>, vector<1x8x9xf32>
    tpu.vector_store %arg12[%c1_81, %c0_82, %c0_83], %172 {strides = array<i32>} : memref<2x8x9xf32, #tpu.memory_space<vmem>>, vector<1x8x9xf32>,
    return
  }
}

</mosaic_0001>

<llo_original>
// kernel: grn_forward.1
$region0: #{grn_forward.1}
  #allocation0 [shape = 'u32[]', space=smem, size = 0x4, offset = 0x4, fixed_abs, tag = 'smem constant byte address 0x4 - core index']
  #allocation1 [shape = 'u32[144,128]{1,0:T(1,128)}', space=vmem, size = 0x12000, scoped, tag = 'internal scratch']
  #allocation2 [shape = 'f32[2,10,32]{2,1,0:T(8,128)}', space=vmem, size = 0x4000, scoped, tag = 'scratch operand']
  #allocation3 [shape = 'f32[2,12,40]{2,1,0:T(8,128)}', space=vmem, size = 0x4000, scoped, tag = 'scratch operand']
  %s0 = inlined_call_operand.vmem [shape: f32[2,8,32], index: 0, kind: input, shape index: {}]
  %s1 = inlined_call_operand.vmem [shape: f32[2,8,32], index: 1, kind: input, shape index: {}]
  %s2 = inlined_call_operand.vmem [shape: f32[2,8,1], index: 2, kind: input, shape index: {}]
  %s3 = inlined_call_operand.vmem [shape: f32[2,1,8], index: 3, kind: input, shape index: {}]
  %s4 = inlined_call_operand.vmem [shape: f32[96,8], index: 4, kind: input, shape index: {}]
  %s5 = inlined_call_operand.vmem [shape: f32[1,8], index: 5, kind: input, shape index: {}]
  %s6 = inlined_call_operand.vmem [shape: f32[200,24], index: 6, kind: input, shape index: {}]
  %s7 = inlined_call_operand.vmem [shape: f32[1,24], index: 7, kind: input, shape index: {}]
  %s8 = inlined_call_operand.vmem [shape: f32[8,16], index: 8, kind: input, shape index: {}]
  %s9 = inlined_call_operand.vmem [shape: f32[1,16], index: 9, kind: input, shape index: {}]
  %s10 = inlined_call_operand.vmem [shape: f32[8,9], index: 10, kind: input, shape index: {}]
  %s11 = inlined_call_operand.vmem [shape: f32[1,9], index: 11, kind: input, shape index: {}]
  %s12 = inlined_call_operand.hbm [shape: f32[2,8,9], index: 12, kind: output, shape index: {}]
  %s13 = sld [smem:[#allocation0]]
  $region58: #{grn_forward.1} parent=0
    _
  %s15 = ssub.s32 1, %s13
  %s16 = scalar_select 0, %s15, %s13
  $region1: #{grn_forward.1} parent=0
    #allocation4 [shape = 'u8[8192]{0}', space=vmem, size = 0x2000, scoped, tag = 'output window, operand 0, single buffered']
    #allocation5 [shape = 's32[1]{0}', space=sflag, size = 0x4, scoped, tag = 'scoped memory for grn_forward.1']
    %17 = vsyncpa [#allocation5], 0
    // Predicated region
    $region2: #{grn_forward.1} parent=1 // pred_check
      _
    $region3: #{grn_forward.1} parent=1 // pred_check_branch
      %19 = sbr.rel (0) target = $region5
    $region4: #{grn_forward.1} parent=1 // pred_region
      _
    $region5: #{grn_forward.1} parent=1 // pred_fallthru
      _
    // Predicated region
    $region6: #{grn_forward.1} parent=1 // pred_check
      _
    $region7: #{grn_forward.1} parent=1 // pred_check_branch
      %21 = sbr.rel (0) target = $region9
    $region8: #{grn_forward.1} parent=1 // pred_region
      _
    $region9: #{grn_forward.1} parent=1 // pred_fallthru
      _
    // Predicated region
    $region10: #{grn_forward.1} parent=1 // pred_check
      _
    $region11: #{grn_forward.1} parent=1 // pred_check_branch
      %23 = sbr.rel (0) target = $region13
    $region12: #{grn_forward.1} parent=1 // pred_region
      _
    $region13: #{grn_forward.1} parent=1 // pred_fallthru
      _
    // Predicated region
    $region14: #{grn_forward.1} parent=1 // pred_check
      _
    $region15: #{grn_forward.1} parent=1 // pred_check_branch
      %25 = sbr.rel (0) target = $region17
    $region16: #{grn_forward.1} parent=1 // pred_region
      _
    $region17: #{grn_forward.1} parent=1 // pred_fallthru
      _
    // Predicated region
    $region18: #{grn_forward.1} parent=1 // pred_check
      _
    $region19: #{grn_forward.1} parent=1 // pred_check_branch
      %27 = sbr.rel (0) target = $region21
    $region20: #{grn_forward.1} parent=1 // pred_region
      _
    $region21: #{grn_forward.1} parent=1 // pred_fallthru
      _
    // Predicated region
    $region22: #{grn_forward.1} parent=1 // pred_check
      _
    $region23: #{grn_forward.1} parent=1 // pred_check_branch
      %29 = sbr.rel (0) target = $region25
    $region24: #{grn_forward.1} parent=1 // pred_region
      _
    $region25: #{grn_forward.1} parent=1 // pred_fallthru
      _
    // Predicated region
    $region26: #{grn_forward.1} parent=1 // pred_check
      _
    $region27: #{grn_forward.1} parent=1 // pred_check_branch
      %31 = sbr.rel (0) target = $region29
    $region28: #{grn_forward.1} parent=1 // pred_region
      _
    $region29: #{grn_forward.1} parent=1 // pred_fallthru
      _
    // Predicated region
    $region30: #{grn_forward.1} parent=1 // pred_check
      _
    $region31: #{grn_forward.1} parent=1 // pred_check_branch
      %33 = sbr.rel (0) target = $region33
    $region32: #{grn_forward.1} parent=1 // pred_region
      _
    $region33: #{grn_forward.1} parent=1 // pred_fallthru
      _
    // Predicated region
    $region34: #{grn_forward.1} parent=1 // pred_check
      _
    $region35: #{grn_forward.1} parent=1 // pred_check_branch
      %35 = sbr.rel (0) target = $region37
    $region36: #{grn_forward.1} parent=1 // pred_region
      _
    $region37: #{grn_forward.1} parent=1 // pred_fallthru
      _
    // Predicated region
    $region38: #{grn_forward.1} parent=1 // pred_check
      _
    $region39: #{grn_forward.1} parent=1 // pred_check_branch
      %37 = sbr.rel (0) target = $region41
    $region40: #{grn_forward.1} parent=1 // pred_region
      _
    $region41: #{grn_forward.1} parent=1 // pred_fallthru
      _
    // Predicated region
    $region42: #{grn_forward.1} parent=1 // pred_check
      _
    $region43: #{grn_forward.1} parent=1 // pred_check_branch
      %39 = sbr.rel (0) target = $region45
    $region44: #{grn_forward.1} parent=1 // pred_region
      _
    $region45: #{grn_forward.1} parent=1 // pred_fallthru
      _
    // Predicated region
    $region46: #{grn_forward.1} parent=1 // pred_check
      _
    $region47: #{grn_forward.1} parent=1 // pred_check_branch
      %41 = sbr.rel (0) target = $region49
    $region48: #{grn_forward.1} parent=1 // pred_region
      _
    $region49: #{grn_forward.1} parent=1 // pred_fallthru
      _
    %vm42 = vcmask 261120
    %43 = vst.msk [vmem:[#allocation2] sm:$0xff] %vm42, 0.0
    %vm44 = vcmask 254976
    %45 = vst.msk [vmem:[#allocation2 + $0x8] sm:$0x3] %vm44, 0.0
    %46 = vst.msk [vmem:[#allocation2 + $0x10] sm:$0xff] %vm42, 0.0
    %47 = vst.msk [vmem:[#allocation2 + $0x18] sm:$0x3] %vm44, 0.0
    %v48 = vld [vmem:[%s0] sm:$0xff]
    %v49 = vld [vmem:[%s0 + $0x8] sm:$0xff]
    %50 = vst.msk [vmem:[#allocation2 + $0x1] sm:$0xff] %vm42, %v48
    %51 = vst.msk [vmem:[#allocation2 + $0x11] sm:$0xff] %vm42, %v49
    %v52 = vld [vmem:[#allocation2] sm:$0xff]
    %v53 = vld [vmem:[#allocation2 + $0x8] sm:$0x3]
    %vm56 = vcmask 1046528
    %v57 = vrot.slane %v52, 1
    %v58 = vrot.slane %v53, 1
    %v59 = vsel %vm56, %v57, %v58
    %60 = vrot.lane.b32.xlu0 %v59, 32
    %v61 = vpop.permute.xlu0 %60
    %vm63 = vcmask 1045504
    %v64 = vrot.slane %v52, 2
    %v65 = vrot.slane %v53, 2
    %v66 = vsel %vm63, %v64, %v65
    %67 = vrot.lane.b32.xlu0 %v66, 64
    %v68 = vpop.permute.xlu0 %67
    %v70 = vsel %vm42, %v52, %v61
    %vm71 = vcmask 523264
    %v72 = vsel %vm71, %v70, %v68
    %s73 = scalar_lea.vmem [#allocation2], 16
    %v74 = vld [vmem:[%s73] sm:$0xff]
    %v75 = vld [vmem:[%s73 + $0x8] sm:$0x3]
    %v78 = vrot.slane %v74, 1
    %v79 = vrot.slane %v75, 1
    %v80 = vsel %vm56, %v78, %v79
    %81 = vrot.lane.b32.xlu0 %v80, 32
    %v82 = vpop.permute.xlu0 %81
    %v84 = vrot.slane %v74, 2
    %v85 = vrot.slane %v75, 2
    %v86 = vsel %vm63, %v84, %v85
    %87 = vrot.lane.b32.xlu0 %v86, 64
    %v88 = vpop.permute.xlu0 %87
    %v90 = vsel %vm42, %v74, %v82
    %v91 = vsel %vm71, %v90, %v88
    %v92 = vld [vmem:[%s4] sm:$0xff]
    %v93 = vld [vmem:[%s4 + $0x8] sm:$0xff]
    %v94 = vld [vmem:[%s4 + $0x10] sm:$0xff]
    %v95 = vld [vmem:[%s4 + $0x18] sm:$0xff]
    %v96 = vld [vmem:[%s4 + $0x20] sm:$0xff]
    %v97 = vld [vmem:[%s4 + $0x28] sm:$0xff]
    %v98 = vld [vmem:[%s4 + $0x30] sm:$0xff]
    %v99 = vld [vmem:[%s4 + $0x38] sm:$0xff]
    %v100 = vld [vmem:[%s4 + $0x40] sm:$0xff]
    %v101 = vld [vmem:[%s4 + $0x48] sm:$0xff]
    %v102 = vld [vmem:[%s4 + $0x50] sm:$0xff]
    %v103 = vld [vmem:[%s4 + $0x58] sm:$0xff]
    %v104 = vld [vmem:[%s5] sm:$0x1]
    %v106 = vlaneseq
    %v107 = vshrl.u32 %v106, 7
    %v108 = vsub.s32 0, %v107
    %v109 = vrot.slane %v104, %v108
    %vm111 = vcmask 785408
    %v113 = vsel %vm111, %v72, 0
    %v116 = vsel %vm111, %v91, 0
    %118 = vmatprep.subr.mxu0 0.0
    %v119 = vand.u32 %v92, 4294901760
    %120 = vmatpush1.msra.mxu0 %v119
    %121 = vmatprep.subr.mxu0 0.0
    %v122 = vand.u32 %v93, 4294901760
    %123 = vmatpush1.msra.mxu0 %v122
    %124 = vmatprep.subr.mxu0 0.0
    %v125 = vand.u32 %v94, 4294901760
    %126 = vmatpush1.msra.mxu0 %v125
    %127 = vmatprep.subr.mxu0 0.0
    %v128 = vand.u32 %v95, 4294901760
    %129 = vmatpush1.msra.mxu0 %v128
    %130 = vmatprep.subr.mxu0 0.0
    %v131 = vand.u32 %v96, 4294901760
    %132 = vmatpush1.msra.mxu0 %v131
    %133 = vmatprep.subr.mxu0 0.0
    %v134 = vand.u32 %v97, 4294901760
    %135 = vmatpush1.msra.mxu0 %v134
    %136 = vmatprep.subr.mxu0 0.0
    %v137 = vand.u32 %v98, 4294901760
    %138 = vmatpush1.msra.mxu0 %v137
    %139 = vmatprep.subr.mxu0 0.0
    %v140 = vand.u32 %v99, 4294901760
    %141 = vmatpush1.msra.mxu0 %v140
    %142 = vmatprep.subr.mxu0 0.0
    %v143 = vand.u32 %v100, 4294901760
    %144 = vmatpush1.msra.mxu0 %v143
    %145 = vmatprep.subr.mxu0 0.0
    %v146 = vand.u32 %v101, 4294901760
    %147 = vmatpush1.msra.mxu0 %v146
    %148 = vmatprep.subr.mxu0 0.0
    %v149 = vand.u32 %v102, 4294901760
    %150 = vmatpush1.msra.mxu0 %v149
    %151 = vmatprep.subr.mxu0 0.0
    %v152 = vand.u32 %v103, 4294901760
    %153 = vmatpush1.msra.mxu0 %v152
    %154 = vmatprep.subr.mxu0 0.0
    %155 = vmatpush1.msra.mxu0 0.0
    %156 = vmatprep.subr.mxu0 0.0
    %157 = vmatpush1.msra.mxu0 0.0
    %158 = vmatprep.subr.mxu0 0.0
    %159 = vmatpush1.msra.mxu0 0.0
    %160 = vmatprep.subr.mxu0 0.0
    %161 = vmatpush1.msra.mxu0 0.0
    %162 = vmatprep.subr.mxu0 0.0
    %163 = vmatpush1.msra.mxu0 0.0
    %164 = vmatprep.subr.mxu0 0.0
    %165 = vmatpush1.msra.mxu0 0.0
    %166 = vmatprep.subr.mxu0 0.0
    %167 = vmatpush1.msra.mxu0 0.0
    %168 = vmatprep.subr.mxu0 0.0
    %169 = vmatpush1.msra.mxu0 0.0
    %170 = vmatprep.subr.mxu0 0.0
    %171 = vmatpush1.msra.mxu0 0.0
    %172 = vmatprep.subr.mxu0 0.0
    %173 = vmatpush1.msra.mxu0 0.0
    %174 = vmatprep.subr.mxu0 0.0
    %175 = vmatpush1.msra.mxu0 0.0
    %176 = vmatprep.subr.mxu0 0.0
    %177 = vmatpush1.msra.mxu0 0.0
    %178 = vmatprep.subr.mxu0 0.0
    %179 = vmatpush1.msra.mxu0 0.0
    %180 = vmatprep.subr.mxu0 0.0
    %181 = vmatpush1.msra.mxu0 0.0
    %182 = vmatprep.subr.mxu0 0.0
    %183 = vmatpush1.msra.mxu0 0.0
    %184 = vmatprep.subr.mxu0 0.0
    %185 = vmatpush1.msra.mxu0 0.0
    %186 = vmatprep.subr.mxu0 0.0
    %187 = vmatpush1.msra.mxu0 0.0
    %188 = vmatprep.subr.mxu0 0.0
    %189 = vmatpush1.msra.mxu0 0.0
    %190 = vmatprep.subr.mxu0 0.0
    %191 = vmatpush1.msra.mxu0 0.0
    %192 = vmatprep.subr.mxu0 0.0
    %193 = vmatpush1.msra.mxu0 0.0
    %194 = vmatprep.mubr.f32.mxu0 0.0
    %v195 = vand.u32 %v113, 4294901760
    %v196 = vsub.f32 %v113, %v195
    %v197 = vand.u32 %v196, 4294901760
    %v198 = vsub.f32 %v196, %v197
    %v199 = vand.u32 %v198, 4294901760
    %200 = vmatmul.mubr.f32.gmra.mrb[0].mxu0 %v199
    %v201 = vpop.f32.mrb[0].mxu0
    %v202 = vadd.f32 %v109, %v201
    %v203 = vpop.f32.mrb[0].mxu0
    %204 = vmatprep.mubr.f32.mxu0 0.0
    %v205 = vand.u32 %v116, 4294901760
    %v206 = vsub.f32 %v116, %v205
    %v207 = vand.u32 %v206, 4294901760
    %v208 = vsub.f32 %v206, %v207
    %v209 = vand.u32 %v208, 4294901760
    %210 = vmatmul.mubr.f32.gmra.mrb[0].mxu0 %v209
    %v211 = vpop.f32.mrb[0].mxu0
    %v212 = vadd.f32 %v109, %v211
    %v213 = vpop.f32.mrb[0].mxu0
    %214 = vdwg.mxu0
    %215 = vmatprep.subr.mxu0 0.0
    %v216 = vand.u32 %v92, 4294901760
    %v217 = vsub.f32 %v92, %v216
    %v218 = vand.u32 %v217, 4294901760
    %v219 = vsub.f32 %v217, %v218
    %v220 = vand.u32 %v219, 4294901760
    %221 = vmatpush1.msra.mxu0 %v220
    %222 = vmatprep.subr.mxu0 0.0
    %v223 = vand.u32 %v93, 4294901760
    %v224 = vsub.f32 %v93, %v223
    %v225 = vand.u32 %v224, 4294901760
    %v226 = vsub.f32 %v224, %v225
    %v227 = vand.u32 %v226, 4294901760
    %228 = vmatpush1.msra.mxu0 %v227
    %229 = vmatprep.subr.mxu0 0.0
    %v230 = vand.u32 %v94, 4294901760
    %v231 = vsub.f32 %v94, %v230
    %v232 = vand.u32 %v231, 4294901760
    %v233 = vsub.f32 %v231, %v232
    %v234 = vand.u32 %v233, 4294901760
    %235 = vmatpush1.msra.mxu0 %v234
    %236 = vmatprep.subr.mxu0 0.0
    %v237 = vand.u32 %v95, 4294901760
    %v238 = vsub.f32 %v95, %v237
    %v239 = vand.u32 %v238, 4294901760
    %v240 = vsub.f32 %v238, %v239
    %v241 = vand.u32 %v240, 4294901760
    %242 = vmatpush1.msra.mxu0 %v241
    %243 = vmatprep.subr.mxu0 0.0
    %v244 = vand.u32 %v96, 4294901760
    %v245 = vsub.f32 %v96, %v244
    %v246 = vand.u32 %v245, 4294901760
    %v247 = vsub.f32 %v245, %v246
    %v248 = vand.u32 %v247, 4294901760
    %249 = vmatpush1.msra.mxu0 %v248
    %250 = vmatprep.subr.mxu0 0.0
    %v251 = vand.u32 %v97, 4294901760
    %v252 = vsub.f32 %v97, %v251
    %v253 = vand.u32 %v252, 4294901760
    %v254 = vsub.f32 %v252, %v253
    %v255 = vand.u32 %v254, 4294901760
    %256 = vmatpush1.msra.mxu0 %v255
    %257 = vmatprep.subr.mxu0 0.0
    %v258 = vand.u32 %v98, 4294901760
    %v259 = vsub.f32 %v98, %v258
    %v260 = vand.u32 %v259, 4294901760
    %v261 = vsub.f32 %v259, %v260
    %v262 = vand.u32 %v261, 4294901760
    %263 = vmatpush1.msra.mxu0 %v262
    %264 = vmatprep.subr.mxu0 0.0
    %v265 = vand.u32 %v99, 4294901760
    %v266 = vsub.f32 %v99, %v265
    %v267 = vand.u32 %v266, 4294901760
    %v268 = vsub.f32 %v266, %v267
    %v269 = vand.u32 %v268, 4294901760
    %270 = vmatpush1.msra.mxu0 %v269
    %271 = vmatprep.subr.mxu0 0.0
    %v272 = vand.u32 %v100, 4294901760
    %v273 = vsub.f32 %v100, %v272
    %v274 = vand.u32 %v273, 4294901760
    %v275 = vsub.f32 %v273, %v274
    %v276 = vand.u32 %v275, 4294901760
    %277 = vmatpush1.msra.mxu0 %v276
    %278 = vmatprep.subr.mxu0 0.0
    %v279 = vand.u32 %v101, 4294901760
    %v280 = vsub.f32 %v101, %v279
    %v281 = vand.u32 %v280, 4294901760
    %v282 = vsub.f32 %v280, %v281
    %v283 = vand.u32 %v282, 4294901760
    %284 = vmatpush1.msra.mxu0 %v283
    %285 = vmatprep.subr.mxu0 0.0
    %v286 = vand.u32 %v102, 4294901760
    %v287 = vsub.f32 %v102, %v286
    %v288 = vand.u32 %v287, 4294901760
    %v289 = vsub.f32 %v287, %v288
    %v290 = vand.u32 %v289, 4294901760
    %291 = vmatpush1.msra.mxu0 %v290
    %292 = vmatprep.subr.mxu0 0.0
    %v293 = vand.u32 %v103, 4294901760
    %v294 = vsub.f32 %v103, %v293
    %v295 = vand.u32 %v294, 4294901760
    %v296 = vsub.f32 %v294, %v295
    %v297 = vand.u32 %v296, 4294901760
    %298 = vmatpush1.msra.mxu0 %v297
    %299 = vmatprep.subr.mxu0 0.0
    %300 = vmatpush1.msra.mxu0 0.0
    %301 = vmatprep.subr.mxu0 0.0
    %302 = vmatpush1.msra.mxu0 0.0
    %303 = vmatprep.subr.mxu0 0.0
    %304 = vmatpush1.msra.mxu0 0.0
    %305 = vmatprep.subr.mxu0 0.0
    %306 = vmatpush1.msra.mxu0 0.0
    %307 = vmatprep.subr.mxu0 0.0
    %308 = vmatpush1.msra.mxu0 0.0
    %309 = vmatprep.subr.mxu0 0.0
    %310 = vmatpush1.msra.mxu0 0.0
    %311 = vmatprep.subr.mxu0 0.0
    %312 = vmatpush1.msra.mxu0 0.0
    %313 = vmatprep.subr.mxu0 0.0
    %314 = vmatpush1.msra.mxu0 0.0
    %315 = vmatprep.subr.mxu0 0.0
    %316 = vmatpush1.msra.mxu0 0.0
    %317 = vmatprep.subr.mxu0 0.0
    %318 = vmatpush1.msra.mxu0 0.0
    %319 = vmatprep.subr.mxu0 0.0
    %320 = vmatpush1.msra.mxu0 0.0
    %321 = vmatprep.subr.mxu0 0.0
    %322 = vmatpush1.msra.mxu0 0.0
    %323 = vmatprep.subr.mxu0 0.0
    %324 = vmatpush1.msra.mxu0 0.0
    %325 = vmatprep.subr.mxu0 0.0
    %326 = vmatpush1.msra.mxu0 0.0
    %327 = vmatprep.subr.mxu0 0.0
    %328 = vmatpush1.msra.mxu0 0.0
    %329 = vmatprep.subr.mxu0 0.0
    %330 = vmatpush1.msra.mxu0 0.0
    %331 = vmatprep.subr.mxu0 0.0
    %332 = vmatpush1.msra.mxu0 0.0
    %333 = vmatprep.subr.mxu0 0.0
    %334 = vmatpush1.msra.mxu0 0.0
    %335 = vmatprep.subr.mxu0 0.0
    %336 = vmatpush1.msra.mxu0 0.0
    %337 = vmatprep.subr.mxu0 0.0
    %338 = vmatpush1.msra.mxu0 0.0
    %339 = vmatprep.mubr.f32.mxu0 0.0
    %v340 = vand.u32 %v113, 4294901760
    %341 = vmatmul.mubr.f32.gmra.mrb[0].mxu0 %v340
    %v342 = vpop.f32.mrb[0].mxu0
    %v343 = vadd.f32 %v202, %v342
    %v344 = vpop.f32.mrb[0].mxu0
    %345 = vmatprep.mubr.f32.mxu0 0.0
    %v346 = vand.u32 %v116, 4294901760
    %347 = vmatmul.mubr.f32.gmra.mrb[0].mxu0 %v346
    %v348 = vpop.f32.mrb[0].mxu0
    %v349 = vadd.f32 %v212, %v348
    %v350 = vpop.f32.mrb[0].mxu0
    %351 = vdwg.mxu0
    %352 = vmatprep.subr.mxu0 0.0
    %v353 = vand.u32 %v92, 4294901760
    %v354 = vsub.f32 %v92, %v353
    %355 = vmatpush1.msra.mxu0 %v354
    %356 = vmatprep.subr.mxu0 0.0
    %v357 = vand.u32 %v93, 4294901760
    %v358 = vsub.f32 %v93, %v357
    %359 = vmatpush1.msra.mxu0 %v358
    %360 = vmatprep.subr.mxu0 0.0
    %v361 = vand.u32 %v94, 4294901760
    %v362 = vsub.f32 %v94, %v361
    %363 = vmatpush1.msra.mxu0 %v362
    %364 = vmatprep.subr.mxu0 0.0
    %v365 = vand.u32 %v95, 4294901760
    %v366 = vsub.f32 %v95, %v365
    %367 = vmatpush1.msra.mxu0 %v366
    %368 = vmatprep.subr.mxu0 0.0
    %v369 = vand.u32 %v96, 4294901760
    %v370 = vsub.f32 %v96, %v369
    %371 = vmatpush1.msra.mxu0 %v370
    %372 = vmatprep.subr.mxu0 0.0
    %v373 = vand.u32 %v97, 4294901760
    %v374 = vsub.f32 %v97, %v373
    %375 = vmatpush1.msra.mxu0 %v374
    %376 = vmatprep.subr.mxu0 0.0
    %v377 = vand.u32 %v98, 4294901760
    %v378 = vsub.f32 %v98, %v377
    %379 = vmatpush1.msra.mxu0 %v378
    %380 = vmatprep.subr.mxu0 0.0
    %v381 = vand.u32 %v99, 4294901760
    %v382 = vsub.f32 %v99, %v381
    %383 = vmatpush1.msra.mxu0 %v382
    %384 = vmatprep.subr.mxu0 0.0
    %v385 = vand.u32 %v100, 4294901760
    %v386 = vsub.f32 %v100, %v385
    %387 = vmatpush1.msra.mxu0 %v386
    %388 = vmatprep.subr.mxu0 0.0
    %v389 = vand.u32 %v101, 4294901760
    %v390 = vsub.f32 %v101, %v389
    %391 = vmatpush1.msra.mxu0 %v390
    %392 = vmatprep.subr.mxu0 0.0
    %v393 = vand.u32 %v102, 4294901760
    %v394 = vsub.f32 %v102, %v393
    %395 = vmatpush1.msra.mxu0 %v394
    %396 = vmatprep.subr.mxu0 0.0
    %v397 = vand.u32 %v103, 4294901760
    %v398 = vsub.f32 %v103, %v397
    %399 = vmatpush1.msra.mxu0 %v398
    %400 = vmatprep.subr.mxu0 0.0
    %401 = vmatpush1.msra.mxu0 0.0
    %402 = vmatprep.subr.mxu0 0.0
    %403 = vmatpush1.msra.mxu0 0.0
    %404 = vmatprep.subr.mxu0 0.0
    %405 = vmatpush1.msra.mxu0 0.0
    %406 = vmatprep.subr.mxu0 0.0
    %407 = vmatpush1.msra.mxu0 0.0
    %408 = vmatprep.subr.mxu0 0.0
    %409 = vmatpush1.msra.mxu0 0.0
    %410 = vmatprep.subr.mxu0 0.0
    %411 = vmatpush1.msra.mxu0 0.0
    %412 = vmatprep.subr.mxu0 0.0
    %413 = vmatpush1.msra.mxu0 0.0
    %414 = vmatprep.subr.mxu0 0.0
    %415 = vmatpush1.msra.mxu0 0.0
    %416 = vmatprep.subr.mxu0 0.0
    %417 = vmatpush1.msra.mxu0 0.0
    %418 = vmatprep.subr.mxu0 0.0
    %419 = vmatpush1.msra.mxu0 0.0
    %420 = vmatprep.subr.mxu0 0.0
    %421 = vmatpush1.msra.mxu0 0.0
    %422 = vmatprep.subr.mxu0 0.0
    %423 = vmatpush1.msra.mxu0 0.0
    %424 = vmatprep.subr.mxu0 0.0
    %425 = vmatpush1.msra.mxu0 0.0
    %426 = vmatprep.subr.mxu0 0.0
    %427 = vmatpush1.msra.mxu0 0.0
    %428 = vmatprep.subr.mxu0 0.0
    %429 = vmatpush1.msra.mxu0 0.0
    %430 = vmatprep.subr.mxu0 0.0
    %431 = vmatpush1.msra.mxu0 0.0
    %432 = vmatprep.subr.mxu0 0.0
    %433 = vmatpush1.msra.mxu0 0.0
    %434 = vmatprep.subr.mxu0 0.0
    %435 = vmatpush1.msra.mxu0 0.0
    %436 = vmatprep.subr.mxu0 0.0
    %437 = vmatpush1.msra.mxu0 0.0
    %438 = vmatprep.subr.mxu0 0.0
    %439 = vmatpush1.msra.mxu0 0.0
    %440 = vmatprep.mubr.f32.mxu0 0.0
    %v441 = vand.u32 %v113, 4294901760
    %v442 = vsub.f32 %v113, %v441
    %443 = vmatmul.mubr.f32.gmra.mrb[0].mxu0 %v442
    %v444 = vpop.f32.mrb[0].mxu0
    %v445 = vadd.f32 %v343, %v444
    %v446 = vpop.f32.mrb[0].mxu0
    %447 = vmatprep.mubr.f32.mxu0 0.0
    %v448 = vand.u32 %v116, 4294901760
    %v449 = vsub.f32 %v116, %v448
    %450 = vmatmul.mubr.f32.gmra.mrb[0].mxu0 %v449
    %v451 = vpop.f32.mrb[0].mxu0
    %v452 = vadd.f32 %v349, %v451
    %v453 = vpop.f32.mrb[0].mxu0
    %454 = vdwg.mxu0
    %455 = vmatprep.subr.mxu0 0.0
    %v456 = vand.u32 %v92, 4294901760
    %457 = vmatpush1.msra.mxu0 %v456
    %458 = vmatprep.subr.mxu0 0.0
    %v459 = vand.u32 %v93, 4294901760
    %460 = vmatpush1.msra.mxu0 %v459
    %461 = vmatprep.subr.mxu0 0.0
    %v462 = vand.u32 %v94, 4294901760
    %463 = vmatpush1.msra.mxu0 %v462
    %464 = vmatprep.subr.mxu0 0.0
    %v465 = vand.u32 %v95, 4294901760
    %466 = vmatpush1.msra.mxu0 %v465
    %467 = vmatprep.subr.mxu0 0.0
    %v468 = vand.u32 %v96, 4294901760
    %469 = vmatpush1.msra.mxu0 %v468
    %470 = vmatprep.subr.mxu0 0.0
    %v471 = vand.u32 %v97, 4294901760
    %472 = vmatpush1.msra.mxu0 %v471
    %473 = vmatprep.subr.mxu0 0.0
    %v474 = vand.u32 %v98, 4294901760
    %475 = vmatpush1.msra.mxu0 %v474
    %476 = vmatprep.subr.mxu0 0.0
    %v477 = vand.u32 %v99, 4294901760
    %478 = vmatpush1.msra.mxu0 %v477
    %479 = vmatprep.subr.mxu0 0.0
    %v480 = vand.u32 %v100, 4294901760
    %481 = vmatpush1.msra.mxu0 %v480
    %482 = vmatprep.subr.mxu0 0.0
    %v483 = vand.u32 %v101, 4294901760
    %484 = vmatpush1.msra.mxu0 %v483
    %485 = vmatprep.subr.mxu0 0.0
    %v486 = vand.u32 %v102, 4294901760
    %487 = vmatpush1.msra.mxu0 %v486
    %488 = vmatprep.subr.mxu0 0.0
    %v489 = vand.u32 %v103, 4294901760
    %490 = vmatpush1.msra.mxu0 %v489
    %491 = vmatprep.subr.mxu0 0.0
    %492 = vmatpush1.msra.mxu0 0.0
    %493 = vmatprep.subr.mxu0 0.0
    %494 = vmatpush1.msra.mxu0 0.0
    %495 = vmatprep.subr.mxu0 0.0
    %496 = vmatpush1.msra.mxu0 0.0
    %497 = vmatprep.subr.mxu0 0.0
    %498 = vmatpush1.msra.mxu0 0.0
    %499 = vmatprep.subr.mxu0 0.0
    %500 = vmatpush1.msra.mxu0 0.0
    %501 = vmatprep.subr.mxu0 0.0
    %502 = vmatpush1.msra.mxu0 0.0
    %503 = vmatprep.subr.mxu0 0.0
    %504 = vmatpush1.msra.mxu0 0.0
    %505 = vmatprep.subr.mxu0 0.0
    %506 = vmatpush1.msra.mxu0 0.0
    %507 = vmatprep.subr.mxu0 0.0
    %508 = vmatpush1.msra.mxu0 0.0
    %509 = vmatprep.subr.mxu0 0.0
    %510 = vmatpush1.msra.mxu0 0.0
    %511 = vmatprep.subr.mxu0 0.0
    %512 = vmatpush1.msra.mxu0 0.0
    %513 = vmatprep.subr.mxu0 0.0
    %514 = vmatpush1.msra.mxu0 0.0
    %515 = vmatprep.subr.mxu0 0.0
    %516 = vmatpush1.msra.mxu0 0.0
    %517 = vmatprep.subr.mxu0 0.0
    %518 = vmatpush1.msra.mxu0 0.0
    %519 = vmatprep.subr.mxu0 0.0
    %520 = vmatpush1.msra.mxu0 0.0
    %521 = vmatprep.subr.mxu0 0.0
    %522 = vmatpush1.msra.mxu0 0.0
    %523 = vmatprep.subr.mxu0 0.0
    %524 = vmatpush1.msra.mxu0 0.0
    %525 = vmatprep.subr.mxu0 0.0
    %526 = vmatpush1.msra.mxu0 0.0
    %527 = vmatprep.subr.mxu0 0.0
    %528 = vmatpush1.msra.mxu0 0.0
    %529 = vmatprep.subr.mxu0 0.0
    %530 = vmatpush1.msra.mxu0 0.0
    %531 = vmatprep.mubr.f32.mxu0 0.0
    %v532 = vand.u32 %v113, 4294901760
    %v533 = vsub.f32 %v113, %v532
    %v534 = vand.u32 %v533, 4294901760
    %535 = vmatmul.mubr.f32.gmra.mrb[0].mxu0 %v534
    %v536 = vpop.f32.mrb[0].mxu0
    %v537 = vadd.f32 %v445, %v536
    %v538 = vpop.f32.mrb[0].mxu0
    %539 = vmatprep.mubr.f32.mxu0 0.0
    %v540 = vand.u32 %v116, 4294901760
    %v541 = vsub.f32 %v116, %v540
    %v542 = vand.u32 %v541, 4294901760
    %543 = vmatmul.mubr.f32.gmra.mrb[0].mxu0 %v542
    %v544 = vpop.f32.mrb[0].mxu0
    %v545 = vadd.f32 %v452, %v544
    %v546 = vpop.f32.mrb[0].mxu0
    %547 = vdwg.mxu0
    %548 = vmatprep.subr.mxu0 0.0
    %v549 = vand.u32 %v92, 4294901760
    %v550 = vsub.f32 %v92, %v549
    %v551 = vand.u32 %v550, 4294901760
    %552 = vmatpush1.msra.mxu0 %v551
    %553 = vmatprep.subr.mxu0 0.0
    %v554 = vand.u32 %v93, 4294901760
    %v555 = vsub.f32 %v93, %v554
    %v556 = vand.u32 %v555, 4294901760
    %557 = vmatpush1.msra.mxu0 %v556
    %558 = vmatprep.subr.mxu0 0.0
    %v559 = vand.u32 %v94, 4294901760
    %v560 = vsub.f32 %v94, %v559
    %v561 = vand.u32 %v560, 4294901760
    %562 = vmatpush1.msra.mxu0 %v561
    %563 = vmatprep.subr.mxu0 0.0
    %v564 = vand.u32 %v95, 4294901760
    %v565 = vsub.f32 %v95, %v564
    %v566 = vand.u32 %v565, 4294901760
    %567 = vmatpush1.msra.mxu0 %v566
    %568 = vmatprep.subr.mxu0 0.0
    %v569 = vand.u32 %v96, 4294901760
    %v570 = vsub.f32 %v96, %v569
    %v571 = vand.u32 %v570, 4294901760
    %572 = vmatpush1.msra.mxu0 %v571
    %573 = vmatprep.subr.mxu0 0.0
    %v574 = vand.u32 %v97, 4294901760
    %v575 = vsub.f32 %v97, %v574
    %v576 = vand.u32 %v575, 4294901760
    %577 = vmatpush1.msra.mxu0 %v576
    %578 = vmatprep.subr.mxu0 0.0
    %v579 = vand.u32 %v98, 4294901760
    %v580 = vsub.f32 %v98, %v579
    %v581 = vand.u32 %v580, 4294901760
    %582 = vmatpush1.msra.mxu0 %v581
    %583 = vmatprep.subr.mxu0 0.0
    %v584 = vand.u32 %v99, 4294901760
    %v585 = vsub.f32 %v99, %v584
    %v586 = vand.u32 %v585, 4294901760
    %587 = vmatpush1.msra.mxu0 %v586
    %588 = vmatprep.subr.mxu0 0.0
    %v589 = vand.u32 %v100, 4294901760
    %v590 = vsub.f32 %v100, %v589
    %v591 = vand.u32 %v590, 4294901760
    %592 = vmatpush1.msra.mxu0 %v591
    %593 = vmatprep.subr.mxu0 0.0
    %v594 = vand.u32 %v101, 4294901760
    %v595 = vsub.f32 %v101, %v594
    %v596 = vand.u32 %v595, 4294901760
    %597 = vmatpush1.msra.mxu0 %v596
    %598 = vmatprep.subr.mxu0 0.0
    %v599 = vand.u32 %v102, 4294901760
    %v600 = vsub.f32 %v102, %v599
    %v601 = vand.u32 %v600, 4294901760
    %602 = vmatpush1.msra.mxu0 %v601
    %603 = vmatprep.subr.mxu0 0.0
    %v604 = vand.u32 %v103, 4294901760
    %v605 = vsub.f32 %v103, %v604
    %v606 = vand.u32 %v605, 4294901760
    %607 = vmatpush1.msra.mxu0 %v606
    %608 = vmatprep.subr.mxu0 0.0
    %609 = vmatpush1.msra.mxu0 0.0
    %610 = vmatprep.subr.mxu0 0.0
    %611 = vmatpush1.msra.mxu0 0.0
    %612 = vmatprep.subr.mxu0 0.0
    %613 = vmatpush1.msra.mxu0 0.0
    %614 = vmatprep.subr.mxu0 0.0
    %615 = vmatpush1.msra.mxu0 0.0
    %616 = vmatprep.subr.mxu0 0.0
    %617 = vmatpush1.msra.mxu0 0.0
    %618 = vmatprep.subr.mxu0 0.0
    %619 = vmatpush1.msra.mxu0 0.0
    %620 = vmatprep.subr.mxu0 0.0
    %621 = vmatpush1.msra.mxu0 0.0
    %622 = vmatprep.subr.mxu0 0.0
    %623 = vmatpush1.msra.mxu0 0.0
    %624 = vmatprep.subr.mxu0 0.0
    %625 = vmatpush1.msra.mxu0 0.0
    %626 = vmatprep.subr.mxu0 0.0
    %627 = vmatpush1.msra.mxu0 0.0
    %628 = vmatprep.subr.mxu0 0.0
    %629 = vmatpush1.msra.mxu0 0.0
    %630 = vmatprep.subr.mxu0 0.0
    %631 = vmatpush1.msra.mxu0 0.0
    %632 = vmatprep.subr.mxu0 0.0
    %633 = vmatpush1.msra.mxu0 0.0
    %634 = vmatprep.subr.mxu0 0.0
    %635 = vmatpush1.msra.mxu0 0.0
    %636 = vmatprep.subr.mxu0 0.0
    %637 = vmatpush1.msra.mxu0 0.0
    %638 = vmatprep.subr.mxu0 0.0
    %639 = vmatpush1.msra.mxu0 0.0
    %640 = vmatprep.subr.mxu0 0.0
    %641 = vmatpush1.msra.mxu0 0.0
    %642 = vmatprep.subr.mxu0 0.0
    %643 = vmatpush1.msra.mxu0 0.0
    %644 = vmatprep.subr.mxu0 0.0
    %645 = vmatpush1.msra.mxu0 0.0
    %646 = vmatprep.subr.mxu0 0.0
    %647 = vmatpush1.msra.mxu0 0.0
    %648 = vmatprep.mubr.f32.mxu0 0.0
    %v649 = vand.u32 %v113, 4294901760
    %650 = vmatmul.mubr.f32.gmra.mrb[0].mxu0 %v649
    %v651 = vpop.f32.mrb[0].mxu0
    %v652 = vadd.f32 %v537, %v651
    %v653 = vpop.f32.mrb[0].mxu0
    %654 = vmatprep.mubr.f32.mxu0 0.0
    %v655 = vand.u32 %v116, 4294901760
    %656 = vmatmul.mubr.f32.gmra.mrb[0].mxu0 %v655
    %v657 = vpop.f32.mrb[0].mxu0
    %v658 = vadd.f32 %v545, %v657
    %v659 = vpop.f32.mrb[0].mxu0
    %660 = vdwg.mxu0
    %661 = vmatprep.subr.mxu0 0.0
    %v662 = vand.u32 %v92, 4294901760
    %663 = vmatpush1.msra.mxu0 %v662
    %664 = vmatprep.subr.mxu0 0.0
    %v665 = vand.u32 %v93, 4294901760
    %666 = vmatpush1.msra.mxu0 %v665
    %667 = vmatprep.subr.mxu0 0.0
    %v668 = vand.u32 %v94, 4294901760
    %669 = vmatpush1.msra.mxu0 %v668
    %670 = vmatprep.subr.mxu0 0.0
    %v671 = vand.u32 %v95, 4294901760
    %672 = vmatpush1.msra.mxu0 %v671
    %673 = vmatprep.subr.mxu0 0.0
    %v674 = vand.u32 %v96, 4294901760
    %675 = vmatpush1.msra.mxu0 %v674
    %676 = vmatprep.subr.mxu0 0.0
    %v677 = vand.u32 %v97, 4294901760
    %678 = vmatpush1.msra.mxu0 %v677
    %679 = vmatprep.subr.mxu0 0.0
    %v680 = vand.u32 %v98, 4294901760
    %681 = vmatpush1.msra.mxu0 %v680
    %682 = vmatprep.subr.mxu0 0.0
    %v683 = vand.u32 %v99, 4294901760
    %684 = vmatpush1.msra.mxu0 %v683
    %685 = vmatprep.subr.mxu0 0.0
    %v686 = vand.u32 %v100, 4294901760
    %687 = vmatpush1.msra.mxu0 %v686
    %688 = vmatprep.subr.mxu0 0.0
    %v689 = vand.u32 %v101, 4294901760
    %690 = vmatpush1.msra.mxu0 %v689
    %691 = vmatprep.subr.mxu0 0.0
    %v692 = vand.u32 %v102, 4294901760
    %693 = vmatpush1.msra.mxu0 %v692
    %694 = vmatprep.subr.mxu0 0.0
    %v695 = vand.u32 %v103, 4294901760
    %696 = vmatpush1.msra.mxu0 %v695
    %697 = vmatprep.subr.mxu0 0.0
    %698 = vmatpush1.msra.mxu0 0.0
    %699 = vmatprep.subr.mxu0 0.0
    %700 = vmatpush1.msra.mxu0 0.0
    %701 = vmatprep.subr.mxu0 0.0
    %702 = vmatpush1.msra.mxu0 0.0
    %703 = vmatprep.subr.mxu0 0.0
    %704 = vmatpush1.msra.mxu0 0.0
    %705 = vmatprep.subr.mxu0 0.0
    %706 = vmatpush1.msra.mxu0 0.0
    %707 = vmatprep.subr.mxu0 0.0
    %708 = vmatpush1.msra.mxu0 0.0
    %709 = vmatprep.subr.mxu0 0.0
    %710 = vmatpush1.msra.mxu0 0.0
    %711 = vmatprep.subr.mxu0 0.0
    %712 = vmatpush1.msra.mxu0 0.0
    %713 = vmatprep.subr.mxu0 0.0
    %714 = vmatpush1.msra.mxu0 0.0
    %715 = vmatprep.subr.mxu0 0.0
    %716 = vmatpush1.msra.mxu0 0.0
    %717 = vmatprep.subr.mxu0 0.0
    %718 = vmatpush1.msra.mxu0 0.0
    %719 = vmatprep.subr.mxu0 0.0
    %720 = vmatpush1.msra.mxu0 0.0
    %721 = vmatprep.subr.mxu0 0.0
    %722 = vmatpush1.msra.mxu0 0.0
    %723 = vmatprep.subr.mxu0 0.0
    %724 = vmatpush1.msra.mxu0 0.0
    %725 = vmatprep.subr.mxu0 0.0
    %726 = vmatpush1.msra.mxu0 0.0
    %727 = vmatprep.subr.mxu0 0.0
    %728 = vmatpush1.msra.mxu0 0.0
    %729 = vmatprep.subr.mxu0 0.0
    %730 = vmatpush1.msra.mxu0 0.0
    %731 = vmatprep.subr.mxu0 0.0
    %732 = vmatpush1.msra.mxu0 0.0
    %733 = vmatprep.subr.mxu0 0.0
    %734 = vmatpush1.msra.mxu0 0.0
    %735 = vmatprep.subr.mxu0 0.0
    %736 = vmatpush1.msra.mxu0 0.0
    %737 = vmatprep.mubr.f32.mxu0 0.0
    %v738 = vand.u32 %v113, 4294901760
    %739 = vmatmul.mubr.f32.gmra.mrb[0].mxu0 %v738
    %v740 = vpop.f32.mrb[0].mxu0
    %v741 = vadd.f32 %v652, %v740
    %v742 = vpop.f32.mrb[0].mxu0
    %743 = vmatprep.mubr.f32.mxu0 0.0
    %v744 = vand.u32 %v116, 4294901760
    %745 = vmatmul.mubr.f32.gmra.mrb[0].mxu0 %v744
    %v746 = vpop.f32.mrb[0].mxu0
    %v747 = vadd.f32 %v658, %v746
    %v748 = vpop.f32.mrb[0].mxu0
    %749 = vdwg.mxu0
    %vm750 = vcmask 64512
    %v751 = vsel %vm750, %v741, -inf
    %v752 = vrot.slane %v751, 4
    %v753 = vmax.f32 %v751, %v752
    %v754 = vrot.slane %v753, 2
    %v755 = vmax.f32 %v753, %v754
    %v756 = vrot.slane %v755, 1
    %v757 = vmax.f32 %v755, %v756
    %v758 = vsel %vm750, %v747, -inf
    %v759 = vrot.slane %v758, 4
    %v760 = vmax.f32 %v758, %v759
    %v761 = vrot.slane %v760, 2
    %v762 = vmax.f32 %v760, %v761
    %v763 = vrot.slane %v762, 1
    %v764 = vmax.f32 %v762, %v763
    %v765 = vlaneseq
    %v766 = vshrl.u32 %v765, 7
    %vm767 = vcmp.eq.s32.totalorder %v766, 0
    %v768 = vsel %vm767, 1, 0
    %v769 = vcvt.s32.f32 %v768
    %v770 = vmul.f32 %v769, %v757
    %v771 = vadd.f32 %v770, 0.0
    %vm772 = vcmp.eq.s32.totalorder %v766, 1
    %v773 = vsel %vm772, 1, 0
    %v774 = vcvt.s32.f32 %v773
    %v775 = vmul.f32 %v774, %v764
    %v776 = vadd.f32 %v771, %v775
    %vm777 = vcmask 326656
    %778 = vst.msk [vmem:[#allocation3] sm:$0xff] %vm777, 0.0
    %vm779 = vcmask 322560
    %780 = vst.msk [vmem:[#allocation3 + $0x8] sm:$0xf] %vm779, 0.0
    %781 = vst.msk [vmem:[#allocation3 + $0x10] sm:$0xff] %vm777, 0.0
    %782 = vst.msk [vmem:[#allocation3 + $0x18] sm:$0xf] %vm779, 0.0
    %v783 = vld [vmem:[%s1] sm:$0xff]
    %785 = vrot.lane.b32.xlu0 %v783, 8
    %v786 = vpop.permute.xlu0 %785
    %v788 = vsel %vm750, %v776, %v786
    %789 = vst.msk [vmem:[#allocation3 + $0x2] sm:$0xff] %vm777, %v788
    %s790 = scalar_lea.vmem %s1, 8
    %v791 = vld [vmem:[%s790] sm:$0xff]
    %793 = vrot.lane.b32.xlu0 %v791, 8
    %v794 = vpop.permute.xlu0 %793
    %v796 = vsel %vm750, 0.0, %v794
    %s797 = scalar_lea.vmem [#allocation3], 16
    %798 = vst.msk [vmem:[%s797 + $0x2] sm:$0xff] %vm777, %v796
    %v799 = vld [vmem:[#allocation3] sm:$0xff]
    %v800 = vld [vmem:[#allocation3 + $0x8] sm:$0xf]
    %v803 = vrot.slane %v799, 1
    %v804 = vrot.slane %v800, 1
    %v805 = vsel %vm56, %v803, %v804
    %806 = vrot.lane.b32.xlu0 %v805, 40
    %v807 = vpop.permute.xlu0 %806
    %v809 = vrot.slane %v799, 2
    %v810 = vrot.slane %v800, 2
    %v811 = vsel %vm63, %v809, %v810
    %812 = vrot.lane.b32.xlu0 %v811, 80
    %v813 = vpop.permute.xlu0 %812
    %vm815 = vcmask 1044480
    %v816 = vrot.slane %v799, 3
    %v817 = vrot.slane %v800, 3
    %v818 = vsel %vm815, %v816, %v817
    %819 = vrot.lane.b32.xlu0 %v818, 120
    %v820 = vpop.permute.xlu0 %819
    %vm822 = vcmask 1043456
    %v823 = vrot.slane %v799, 4
    %v824 = vrot.slane %v800, 4
    %v825 = vsel %vm822, %v823, %v824
    %826 = vrot.lane.b32.xlu0 %v825, 32
    %v827 = vpop.permute.xlu0 %826
    %v829 = vsel %vm777, %v799, %v807
    %vm830 = vcmask 654336
    %v831 = vsel %vm830, %v829, %v813
    %vm832 = vcmask 982016
    %v833 = vsel %vm832, %v831, %v820
    %v834 = vsel %vm42, %v820, %v827
    %v835 = vld [vmem:[%s797] sm:$0xff]
    %v836 = vld [vmem:[%s797 + $0x8] sm:$0xf]
    %v839 = vrot.slane %v835, 1
    %v840 = vrot.slane %v836, 1
    %v841 = vsel %vm56, %v839, %v840
    %842 = vrot.lane.b32.xlu0 %v841, 40
    %v843 = vpop.permute.xlu0 %842
    %v845 = vrot.slane %v835, 2
    %v846 = vrot.slane %v836, 2
    %v847 = vsel %vm63, %v845, %v846
    %848 = vrot.lane.b32.xlu0 %v847, 80
    %v849 = vpop.permute.xlu0 %848
    %v851 = vrot.slane %v835, 3
    %v852 = vrot.slane %v836, 3
    %v853 = vsel %vm815, %v851, %v852
    %854 = vrot.lane.b32.xlu0 %v853, 120
    %v855 = vpop.permute.xlu0 %854
    %v857 = vrot.slane %v835, 4
    %v858 = vrot.slane %v836, 4
    %v859 = vsel %vm822, %v857, %v858
    %860 = vrot.lane.b32.xlu0 %v859, 32
    %v861 = vpop.permute.xlu0 %860
    %v863 = vsel %vm777, %v835, %v843
    %v864 = vsel %vm830, %v863, %v849
    %v865 = vsel %vm832, %v864, %v855
    %v866 = vsel %vm42, %v855, %v861
    %v867 = vld [vmem:[%s6] sm:$0xff]
    %v868 = vld [vmem:[%s6 + $0x8] sm:$0xff]
    %v869 = vld [vmem:[%s6 + $0x10] sm:$0xff]
    %v870 = vld [vmem:[%s6 + $0x18] sm:$0xff]
    %v871 = vld [vmem:[%s6 + $0x20] sm:$0xff]
    %v872 = vld [vmem:[%s6 + $0x28] sm:$0xff]
    %v873 = vld [vmem:[%s6 + $0x30] sm:$0xff]
    %v874 = vld [vmem:[%s6 + $0x38] sm:$0xff]
    %v875 = vld [vmem:[%s6 + $0x40] sm:$0xff]
    %v876 = vld [vmem:[%s6 + $0x48] sm:$0xff]
    %v877 = vld [vmem:[%s6 + $0x50] sm:$0xff]
    %v878 = vld [vmem:[%s6 + $0x58] sm:$0xff]
    %v879 = vld [vmem:[%s6 + $0x60] sm:$0xff]
    %v880 = vld [vmem:[%s6 + $0x68] sm:$0xff]
    %v881 = vld [vmem:[%s6 + $0x70] sm:$0xff]
    %v882 = vld [vmem:[%s6 + $0x78] sm:$0xff]
    %v883 = vld [vmem:[%s6 + $0x80] sm:$0xff]
    %v884 = vld [vmem:[%s6 + $0x88] sm:$0xff]
    %v885 = vld [vmem:[%s6 + $0x90] sm:$0xff]
    %v886 = vld [vmem:[%s6 + $0x98] sm:$0xff]
    %v887 = vld [vmem:[%s6 + $0xa0] sm:$0xff]
    %v888 = vld [vmem:[%s6 + $0xa8] sm:$0xff]
    %v889 = vld [vmem:[%s6 + $0xb0] sm:$0xff]
    %v890 = vld [vmem:[%s6 + $0xb8] sm:$0xff]
    %v891 = vld [vmem:[%s6 + $0xc0] sm:$0xff]
    %v892 = vld [vmem:[%s7] sm:$0x1]
    %v894 = vlaneseq
    %v895 = vshrl.u32 %v894, 7
    %v896 = vsub.s32 0, %v895
    %v897 = vrot.slane %v892, %v896
    %vm899 = vcmask 588800
    %v901 = vsel %vm899, %v834, 0
    %v904 = vsel %vm899, %v866, 0
    %906 = vmatprep.subr.mxu0 0.0
    %v907 = vand.u32 %v867, 4294901760
    %908 = vmatpush1.msra.mxu0 %v907
    %909 = vmatprep.subr.mxu0 0.0
    %v910 = vand.u32 %v868, 4294901760
    %911 = vmatpush1.msra.mxu0 %v910
    %912 = vmatprep.subr.mxu0 0.0
    %v913 = vand.u32 %v869, 4294901760
    %914 = vmatpush1.msra.mxu0 %v913
    %915 = vmatprep.subr.mxu0 0.0
    %v916 = vand.u32 %v870, 4294901760
    %917 = vmatpush1.msra.mxu0 %v916
    %918 = vmatprep.subr.mxu0 0.0
    %v919 = vand.u32 %v871, 4294901760
    %920 = vmatpush1.msra.mxu0 %v919
    %921 = vmatprep.subr.mxu0 0.0
    %v922 = vand.u32 %v872, 4294901760
    %923 = vmatpush1.msra.mxu0 %v922
    %924 = vmatprep.subr.mxu0 0.0
    %v925 = vand.u32 %v873, 4294901760
    %926 = vmatpush1.msra.mxu0 %v925
    %927 = vmatprep.subr.mxu0 0.0
    %v928 = vand.u32 %v874, 4294901760
    %929 = vmatpush1.msra.mxu0 %v928
    %930 = vmatprep.subr.mxu0 0.0
    %v931 = vand.u32 %v875, 4294901760
    %932 = vmatpush1.msra.mxu0 %v931
    %933 = vmatprep.subr.mxu0 0.0
    %v934 = vand.u32 %v876, 4294901760
    %935 = vmatpush1.msra.mxu0 %v934
    %936 = vmatprep.subr.mxu0 0.0
    %v937 = vand.u32 %v877, 4294901760
    %938 = vmatpush1.msra.mxu0 %v937
    %939 = vmatprep.subr.mxu0 0.0
    %v940 = vand.u32 %v878, 4294901760
    %941 = vmatpush1.msra.mxu0 %v940
    %942 = vmatprep.subr.mxu0 0.0
    %v943 = vand.u32 %v879, 4294901760
    %944 = vmatpush1.msra.mxu0 %v943
    %945 = vmatprep.subr.mxu0 0.0
    %v946 = vand.u32 %v880, 4294901760
    %947 = vmatpush1.msra.mxu0 %v946
    %948 = vmatprep.subr.mxu0 0.0
    %v949 = vand.u32 %v881, 4294901760
    %950 = vmatpush1.msra.mxu0 %v949
    %951 = vmatprep.subr.mxu0 0.0
    %v952 = vand.u32 %v882, 4294901760
    %953 = vmatpush1.msra.mxu0 %v952
    %954 = vmatprep.subr.mxu0 0.0
    %v955 = vand.u32 %v883, 4294901760
    %956 = vmatpush1.msra.mxu0 %v955
    %957 = vmatprep.subr.mxu0 0.0
    %v958 = vand.u32 %v884, 4294901760
    %959 = vmatpush1.msra.mxu0 %v958
    %960 = vmatprep.subr.mxu0 0.0
    %v961 = vand.u32 %v885, 4294901760
    %962 = vmatpush1.msra.mxu0 %v961
    %963 = vmatprep.subr.mxu0 0.0
    %v964 = vand.u32 %v886, 4294901760
    %965 = vmatpush1.msra.mxu0 %v964
    %966 = vmatprep.subr.mxu0 0.0
    %v967 = vand.u32 %v887, 4294901760
    %968 = vmatpush1.msra.mxu0 %v967
    %969 = vmatprep.subr.mxu0 0.0
    %v970 = vand.u32 %v888, 4294901760
    %971 = vmatpush1.msra.mxu0 %v970
    %972 = vmatprep.subr.mxu0 0.0
    %v973 = vand.u32 %v889, 4294901760
    %974 = vmatpush1.msra.mxu0 %v973
    %975 = vmatprep.subr.mxu0 0.0
    %v976 = vand.u32 %v890, 4294901760
    %977 = vmatpush1.msra.mxu0 %v976
    %978 = vmatprep.subr.mxu0 0.0
    %v979 = vand.u32 %v891, 4294901760
    %980 = vmatpush1.msra.mxu0 %v979
    %981 = vmatprep.subr.mxu0 0.0
    %982 = vmatpush1.msra.mxu0 0.0
    %983 = vmatprep.subr.mxu0 0.0
    %984 = vmatpush1.msra.mxu0 0.0
    %985 = vmatprep.subr.mxu0 0.0
    %986 = vmatpush1.msra.mxu0 0.0
    %987 = vmatprep.subr.mxu0 0.0
    %988 = vmatpush1.msra.mxu0 0.0
    %989 = vmatprep.subr.mxu0 0.0
    %990 = vmatpush1.msra.mxu0 0.0
    %991 = vmatprep.subr.mxu0 0.0
    %992 = vmatpush1.msra.mxu0 0.0
    %993 = vmatprep.subr.mxu0 0.0
    %994 = vmatpush1.msra.mxu0 0.0
    %v995 = vand.u32 %v901, 4294901760
    %v996 = vsub.f32 %v901, %v995
    %v997 = vand.u32 %v996, 4294901760
    %v998 = vsub.f32 %v996, %v997
    %v999 = vand.u32 %v998, 4294901760
    %1000 = vmatprep.mubr.f32.mxu0 %v999
    %v1001 = vand.u32 %v833, 4294901760
    %v1002 = vsub.f32 %v833, %v1001
    %v1003 = vand.u32 %v1002, 4294901760
    %v1004 = vsub.f32 %v1002, %v1003
    %v1005 = vand.u32 %v1004, 4294901760
    %1006 = vmatmul.mubr.f32.gmra.mrb[0].mxu0 %v1005
    %v1007 = vpop.f32.mrb[0].mxu0
    %v1008 = vadd.f32 %v897, %v1007
    %v1009 = vpop.f32.mrb[0].mxu0
    %v1010 = vand.u32 %v904, 4294901760
    %v1011 = vsub.f32 %v904, %v1010
    %v1012 = vand.u32 %v1011, 4294901760
    %v1013 = vsub.f32 %v1011, %v1012
    %v1014 = vand.u32 %v1013, 4294901760
    %1015 = vmatprep.mubr.f32.mxu0 %v1014
    %v1016 = vand.u32 %v865, 4294901760
    %v1017 = vsub.f32 %v865, %v1016
    %v1018 = vand.u32 %v1017, 4294901760
    %v1019 = vsub.f32 %v1017, %v1018
    %v1020 = vand.u32 %v1019, 4294901760
    %1021 = vmatmul.mubr.f32.gmra.mrb[0].mxu0 %v1020
    %v1022 = vpop.f32.mrb[0].mxu0
    %v1023 = vadd.f32 %v897, %v1022
    %v1024 = vpop.f32.mrb[0].mxu0
    %1025 = vdwg.mxu0
    %1026 = vmatprep.subr.mxu0 0.0
    %v1027 = vand.u32 %v867, 4294901760
    %v1028 = vsub.f32 %v867, %v1027
    %v1029 = vand.u32 %v1028, 4294901760
    %v1030 = vsub.f32 %v1028, %v1029
    %v1031 = vand.u32 %v1030, 4294901760
    %1032 = vmatpush1.msra.mxu0 %v1031
    %1033 = vmatprep.subr.mxu0 0.0
    %v1034 = vand.u32 %v868, 4294901760
    %v1035 = vsub.f32 %v868, %v1034
    %v1036 = vand.u32 %v1035, 4294901760
    %v1037 = vsub.f32 %v1035, %v1036
    %v1038 = vand.u32 %v1037, 4294901760
    %1039 = vmatpush1.msra.mxu0 %v1038
    %1040 = vmatprep.subr.mxu0 0.0
    %v1041 = vand.u32 %v869, 4294901760
    %v1042 = vsub.f32 %v869, %v1041
    %v1043 = vand.u32 %v1042, 4294901760
    %v1044 = vsub.f32 %v1042, %v1043
    %v1045 = vand.u32 %v1044, 4294901760
    %1046 = vmatpush1.msra.mxu0 %v1045
    %1047 = vmatprep.subr.mxu0 0.0
    %v1048 = vand.u32 %v870, 4294901760
    %v1049 = vsub.f32 %v870, %v1048
    %v1050 = vand.u32 %v1049, 4294901760
    %v1051 = vsub.f32 %v1049, %v1050
    %v1052 = vand.u32 %v1051, 4294901760
    %1053 = vmatpush1.msra.mxu0 %v1052
    %1054 = vmatprep.subr.mxu0 0.0
    %v1055 = vand.u32 %v871, 4294901760
    %v1056 = vsub.f32 %v871, %v1055
    %v1057 = vand.u32 %v1056, 4294901760
    %v1058 = vsub.f32 %v1056, %v1057
    %v1059 = vand.u32 %v1058, 4294901760
    %1060 = vmatpush1.msra.mxu0 %v1059
    %1061 = vmatprep.subr.mxu0 0.0
    %v1062 = vand.u32 %v872, 4294901760
    %v1063 = vsub.f32 %v872, %v1062
    %v1064 = vand.u32 %v1063, 4294901760
    %v1065 = vsub.f32 %v1063, %v1064
    %v1066 = vand.u32 %v1065, 4294901760
    %1067 = vmatpush1.msra.mxu0 %v1066
    %1068 = vmatprep.subr.mxu0 0.0
    %v1069 = vand.u32 %v873, 4294901760
    %v1070 = vsub.f32 %v873, %v1069
    %v1071 = vand.u32 %v1070, 4294901760
    %v1072 = vsub.f32 %v1070, %v1071
    %v1073 = vand.u32 %v1072, 4294901760
    %1074 = vmatpush1.msra.mxu0 %v1073
    %1075 = vmatprep.subr.mxu0 0.0
    %v1076 = vand.u32 %v874, 4294901760
    %v1077 = vsub.f32 %v874, %v1076
    %v1078 = vand.u32 %v1077, 4294901760
    %v1079 = vsub.f32 %v1077, %v1078
    %v1080 = vand.u32 %v1079, 4294901760
    %1081 = vmatpush1.msra.mxu0 %v1080
    %1082 = vmatprep.subr.mxu0 0.0
    %v1083 = vand.u32 %v875, 4294901760
    %v1084 = vsub.f32 %v875, %v1083
    %v1085 = vand.u32 %v1084, 4294901760
    %v1086 = vsub.f32 %v1084, %v1085
    %v1087 = vand.u32 %v1086, 4294901760
    %1088 = vmatpush1.msra.mxu0 %v1087
    %1089 = vmatprep.subr.mxu0 0.0
    %v1090 = vand.u32 %v876, 4294901760
    %v1091 = vsub.f32 %v876, %v1090
    %v1092 = vand.u32 %v1091, 4294901760
    %v1093 = vsub.f32 %v1091, %v1092
    %v1094 = vand.u32 %v1093, 4294901760
    %1095 = vmatpush1.msra.mxu0 %v1094
    %1096 = vmatprep.subr.mxu0 0.0
    %v1097 = vand.u32 %v877, 4294901760
    %v1098 = vsub.f32 %v877, %v1097
    %v1099 = vand.u32 %v1098, 4294901760
    %v1100 = vsub.f32 %v1098, %v1099
    %v1101 = vand.u32 %v1100, 4294901760
    %1102 = vmatpush1.msra.mxu0 %v1101
    %1103 = vmatprep.subr.mxu0 0.0
    %v1104 = vand.u32 %v878, 4294901760
    %v1105 = vsub.f32 %v878, %v1104
    %v1106 = vand.u32 %v1105, 4294901760
    %v1107 = vsub.f32 %v1105, %v1106
    %v1108 = vand.u32 %v1107, 4294901760
    %1109 = vmatpush1.msra.mxu0 %v1108
    %1110 = vmatprep.subr.mxu0 0.0
    %v1111 = vand.u32 %v879, 4294901760
    %v1112 = vsub.f32 %v879, %v1111
    %v1113 = vand.u32 %v1112, 4294901760
    %v1114 = vsub.f32 %v1112, %v1113
    %v1115 = vand.u32 %v1114, 4294901760
    %1116 = vmatpush1.msra.mxu0 %v1115
    %1117 = vmatprep.subr.mxu0 0.0
    %v1118 = vand.u32 %v880, 4294901760
    %v1119 = vsub.f32 %v880, %v1118
    %v1120 = vand.u32 %v1119, 4294901760
    %v1121 = vsub.f32 %v1119, %v1120
    %v1122 = vand.u32 %v1121, 4294901760
    %1123 = vmatpush1.msra.mxu0 %v1122
    %1124 = vmatprep.subr.mxu0 0.0
    %v1125 = vand.u32 %v881, 4294901760
    %v1126 = vsub.f32 %v881, %v1125
    %v1127 = vand.u32 %v1126, 4294901760
    %v1128 = vsub.f32 %v1126, %v1127
    %v1129 = vand.u32 %v1128, 4294901760
    %1130 = vmatpush1.msra.mxu0 %v1129
    %1131 = vmatprep.subr.mxu0 0.0
    %v1132 = vand.u32 %v882, 4294901760
    %v1133 = vsub.f32 %v882, %v1132
    %v1134 = vand.u32 %v1133, 4294901760
    %v1135 = vsub.f32 %v1133, %v1134
    %v1136 = vand.u32 %v1135, 4294901760
    %1137 = vmatpush1.msra.mxu0 %v1136
    %1138 = vmatprep.subr.mxu0 0.0
    %v1139 = vand.u32 %v883, 4294901760
    %v1140 = vsub.f32 %v883, %v1139
    %v1141 = vand.u32 %v1140, 4294901760
    %v1142 = vsub.f32 %v1140, %v1141
    %v1143 = vand.u32 %v1142, 4294901760
    %1144 = vmatpush1.msra.mxu0 %v1143
    %1145 = vmatprep.subr.mxu0 0.0
    %v1146 = vand.u32 %v884, 4294901760
    %v1147 = vsub.f32 %v884, %v1146
    %v1148 = vand.u32 %v1147, 4294901760
    %v1149 = vsub.f32 %v1147, %v1148
    %v1150 = vand.u32 %v1149, 4294901760
    %1151 = vmatpush1.msra.mxu0 %v1150
    %1152 = vmatprep.subr.mxu0 0.0
    %v1153 = vand.u32 %v885, 4294901760
    %v1154 = vsub.f32 %v885, %v1153
    %v1155 = vand.u32 %v1154, 4294901760
    %v1156 = vsub.f32 %v1154, %v1155
    %v1157 = vand.u32 %v1156, 4294901760
    %1158 = vmatpush1.msra.mxu0 %v1157
    %1159 = vmatprep.subr.mxu0 0.0
    %v1160 = vand.u32 %v886, 4294901760
    %v1161 = vsub.f32 %v886, %v1160
    %v1162 = vand.u32 %v1161, 4294901760
    %v1163 = vsub.f32 %v1161, %v1162
    %v1164 = vand.u32 %v1163, 4294901760
    %1165 = vmatpush1.msra.mxu0 %v1164
    %1166 = vmatprep.subr.mxu0 0.0
    %v1167 = vand.u32 %v887, 4294901760
    %v1168 = vsub.f32 %v887, %v1167
    %v1169 = vand.u32 %v1168, 4294901760
    %v1170 = vsub.f32 %v1168, %v1169
    %v1171 = vand.u32 %v1170, 4294901760
    %1172 = vmatpush1.msra.mxu0 %v1171
    %1173 = vmatprep.subr.mxu0 0.0
    %v1174 = vand.u32 %v888, 4294901760
    %v1175 = vsub.f32 %v888, %v1174
    %v1176 = vand.u32 %v1175, 4294901760
    %v1177 = vsub.f32 %v1175, %v1176
    %v1178 = vand.u32 %v1177, 4294901760
    %1179 = vmatpush1.msra.mxu0 %v1178
    %1180 = vmatprep.subr.mxu0 0.0
    %v1181 = vand.u32 %v889, 4294901760
    %v1182 = vsub.f32 %v889, %v1181
    %v1183 = vand.u32 %v1182, 4294901760
    %v1184 = vsub.f32 %v1182, %v1183
    %v1185 = vand.u32 %v1184, 4294901760
    %1186 = vmatpush1.msra.mxu0 %v1185
    %1187 = vmatprep.subr.mxu0 0.0
    %v1188 = vand.u32 %v890, 4294901760
    %v1189 = vsub.f32 %v890, %v1188
    %v1190 = vand.u32 %v1189, 4294901760
    %v1191 = vsub.f32 %v1189, %v1190
    %v1192 = vand.u32 %v1191, 4294901760
    %1193 = vmatpush1.msra.mxu0 %v1192
    %1194 = vmatprep.subr.mxu0 0.0
    %v1195 = vand.u32 %v891, 4294901760
    %v1196 = vsub.f32 %v891, %v1195
    %v1197 = vand.u32 %v1196, 4294901760
    %v1198 = vsub.f32 %v1196, %v1197
    %v1199 = vand.u32 %v1198, 4294901760
    %1200 = vmatpush1.msra.mxu0 %v1199
    %1201 = vmatprep.subr.mxu0 0.0
    %1202 = vmatpush1.msra.mxu0 0.0
    %1203 = vmatprep.subr.mxu0 0.0
    %1204 = vmatpush1.msra.mxu0 0.0
    %1205 = vmatprep.subr.mxu0 0.0
    %1206 = vmatpush1.msra.mxu0 0.0
    %1207 = vmatprep.subr.mxu0 0.0
    %1208 = vmatpush1.msra.mxu0 0.0
    %1209 = vmatprep.subr.mxu0 0.0
    %1210 = vmatpush1.msra.mxu0 0.0
    %1211 = vmatprep.subr.mxu0 0.0
    %1212 = vmatpush1.msra.mxu0 0.0
    %1213 = vmatprep.subr.mxu0 0.0
    %1214 = vmatpush1.msra.mxu0 0.0
    %v1215 = vand.u32 %v901, 4294901760
    %1216 = vmatprep.mubr.f32.mxu0 %v1215
    %v1217 = vand.u32 %v833, 4294901760
    %1218 = vmatmul.mubr.f32.gmra.mrb[0].mxu0 %v1217
    %v1219 = vpop.f32.mrb[0].mxu0
    %v1220 = vadd.f32 %v1008, %v1219
    %v1221 = vpop.f32.mrb[0].mxu0
    %v1222 = vand.u32 %v904, 4294901760
    %1223 = vmatprep.mubr.f32.mxu0 %v1222
    %v1224 = vand.u32 %v865, 4294901760
    %1225 = vmatmul.mubr.f32.gmra.mrb[0].mxu0 %v1224
    %v1226 = vpop.f32.mrb[0].mxu0
    %v1227 = vadd.f32 %v1023, %v1226
    %v1228 = vpop.f32.mrb[0].mxu0
    %1229 = vdwg.mxu0
    %1230 = vmatprep.subr.mxu0 0.0
    %v1231 = vand.u32 %v867, 4294901760
    %v1232 = vsub.f32 %v867, %v1231
    %1233 = vmatpush1.msra.mxu0 %v1232
    %1234 = vmatprep.subr.mxu0 0.0
    %v1235 = vand.u32 %v868, 4294901760
    %v1236 = vsub.f32 %v868, %v1235
    %1237 = vmatpush1.msra.mxu0 %v1236
    %1238 = vmatprep.subr.mxu0 0.0
    %v1239 = vand.u32 %v869, 4294901760
    %v1240 = vsub.f32 %v869, %v1239
    %1241 = vmatpush1.msra.mxu0 %v1240
    %1242 = vmatprep.subr.mxu0 0.0
    %v1243 = vand.u32 %v870, 4294901760
    %v1244 = vsub.f32 %v870, %v1243
    %1245 = vmatpush1.msra.mxu0 %v1244
    %1246 = vmatprep.subr.mxu0 0.0
    %v1247 = vand.u32 %v871, 4294901760
    %v1248 = vsub.f32 %v871, %v1247
    %1249 = vmatpush1.msra.mxu0 %v1248
    %1250 = vmatprep.subr.mxu0 0.0
    %v1251 = vand.u32 %v872, 4294901760
    %v1252 = vsub.f32 %v872, %v1251
    %1253 = vmatpush1.msra.mxu0 %v1252
    %1254 = vmatprep.subr.mxu0 0.0
    %v1255 = vand.u32 %v873, 4294901760
    %v1256 = vsub.f32 %v873, %v1255
    %1257 = vmatpush1.msra.mxu0 %v1256
    %1258 = vmatprep.subr.mxu0 0.0
    %v1259 = vand.u32 %v874, 4294901760
    %v1260 = vsub.f32 %v874, %v1259
    %1261 = vmatpush1.msra.mxu0 %v1260
    %1262 = vmatprep.subr.mxu0 0.0
    %v1263 = vand.u32 %v875, 4294901760
    %v1264 = vsub.f32 %v875, %v1263
    %1265 = vmatpush1.msra.mxu0 %v1264
    %1266 = vmatprep.subr.mxu0 0.0
    %v1267 = vand.u32 %v876, 4294901760
    %v1268 = vsub.f32 %v876, %v1267
    %1269 = vmatpush1.msra.mxu0 %v1268
    %1270 = vmatprep.subr.mxu0 0.0
    %v1271 = vand.u32 %v877, 4294901760
    %v1272 = vsub.f32 %v877, %v1271
    %1273 = vmatpush1.msra.mxu0 %v1272
    %1274 = vmatprep.subr.mxu0 0.0
    %v1275 = vand.u32 %v878, 4294901760
    %v1276 = vsub.f32 %v878, %v1275
    %1277 = vmatpush1.msra.mxu0 %v1276
    %1278 = vmatprep.subr.mxu0 0.0
    %v1279 = vand.u32 %v879, 4294901760
    %v1280 = vsub.f32 %v879, %v1279
    %1281 = vmatpush1.msra.mxu0 %v1280
    %1282 = vmatprep.subr.mxu0 0.0
    %v1283 = vand.u32 %v880, 4294901760
    %v1284 = vsub.f32 %v880, %v1283
    %1285 = vmatpush1.msra.mxu0 %v1284
    %1286 = vmatprep.subr.mxu0 0.0
    %v1287 = vand.u32 %v881, 4294901760
    %v1288 = vsub.f32 %v881, %v1287
    %1289 = vmatpush1.msra.mxu0 %v1288
    %1290 = vmatprep.subr.mxu0 0.0
    %v1291 = vand.u32 %v882, 4294901760
    %v1292 = vsub.f32 %v882, %v1291
    %1293 = vmatpush1.msra.mxu0 %v1292
    %1294 = vmatprep.subr.mxu0 0.0
    %v1295 = vand.u32 %v883, 4294901760
    %v1296 = vsub.f32 %v883, %v1295
    %1297 = vmatpush1.msra.mxu0 %v1296
    %1298 = vmatprep.subr.mxu0 0.0
    %v1299 = vand.u32 %v884, 4294901760
    %v1300 = vsub.f32 %v884, %v1299
    %1301 = vmatpush1.msra.mxu0 %v1300
    %1302 = vmatprep.subr.mxu0 0.0
    %v1303 = vand.u32 %v885, 4294901760
    %v1304 = vsub.f32 %v885, %v1303
    %1305 = vmatpush1.msra.mxu0 %v1304
    %1306 = vmatprep.subr.mxu0 0.0
    %v1307 = vand.u32 %v886, 4294901760
    %v1308 = vsub.f32 %v886, %v1307
    %1309 = vmatpush1.msra.mxu0 %v1308
    %1310 = vmatprep.subr.mxu0 0.0
    %v1311 = vand.u32 %v887, 4294901760
    %v1312 = vsub.f32 %v887, %v1311
    %1313 = vmatpush1.msra.mxu0 %v1312
    %1314 = vmatprep.subr.mxu0 0.0
    %v1315 = vand.u32 %v888, 4294901760
    %v1316 = vsub.f32 %v888, %v1315
    %1317 = vmatpush1.msra.mxu0 %v1316
    %1318 = vmatprep.subr.mxu0 0.0
    %v1319 = vand.u32 %v889, 4294901760
    %v1320 = vsub.f32 %v889, %v1319
    %1321 = vmatpush1.msra.mxu0 %v1320
    %1322 = vmatprep.subr.mxu0 0.0
    %v1323 = vand.u32 %v890, 4294901760
    %v1324 = vsub.f32 %v890, %v1323
    %1325 = vmatpush1.msra.mxu0 %v1324
    %1326 = vmatprep.subr.mxu0 0.0
    %v1327 = vand.u32 %v891, 4294901760
    %v1328 = vsub.f32 %v891, %v1327
    %1329 = vmatpush1.msra.mxu0 %v1328
    %1330 = vmatprep.subr.mxu0 0.0
    %1331 = vmatpush1.msra.mxu0 0.0
    %1332 = vmatprep.subr.mxu0 0.0
    %1333 = vmatpush1.msra.mxu0 0.0
    %1334 = vmatprep.subr.mxu0 0.0
    %1335 = vmatpush1.msra.mxu0 0.0
    %1336 = vmatprep.subr.mxu0 0.0
    %1337 = vmatpush1.msra.mxu0 0.0
    %1338 = vmatprep.subr.mxu0 0.0
    %1339 = vmatpush1.msra.mxu0 0.0
    %1340 = vmatprep.subr.mxu0 0.0
    %1341 = vmatpush1.msra.mxu0 0.0
    %1342 = vmatprep.subr.mxu0 0.0
    %1343 = vmatpush1.msra.mxu0 0.0
    %v1344 = vand.u32 %v901, 4294901760
    %v1345 = vsub.f32 %v901, %v1344
    %1346 = vmatprep.mubr.f32.mxu0 %v1345
    %v1347 = vand.u32 %v833, 4294901760
    %v1348 = vsub.f32 %v833, %v1347
    %1349 = vmatmul.mubr.f32.gmra.mrb[0].mxu0 %v1348
    %v1350 = vpop.f32.mrb[0].mxu0
    %v1351 = vadd.f32 %v1220, %v1350
    %v1352 = vpop.f32.mrb[0].mxu0
    %v1353 = vand.u32 %v904, 4294901760
    %v1354 = vsub.f32 %v904, %v1353
    %1355 = vmatprep.mubr.f32.mxu0 %v1354
    %v1356 = vand.u32 %v865, 4294901760
    %v1357 = vsub.f32 %v865, %v1356
    %1358 = vmatmul.mubr.f32.gmra.mrb[0].mxu0 %v1357
    %v1359 = vpop.f32.mrb[0].mxu0
    %v1360 = vadd.f32 %v1227, %v1359
    %v1361 = vpop.f32.mrb[0].mxu0
    %1362 = vdwg.mxu0
    %1363 = vmatprep.subr.mxu0 0.0
    %v1364 = vand.u32 %v867, 4294901760
    %1365 = vmatpush1.msra.mxu0 %v1364
    %1366 = vmatprep.subr.mxu0 0.0
    %v1367 = vand.u32 %v868, 4294901760
    %1368 = vmatpush1.msra.mxu0 %v1367
    %1369 = vmatprep.subr.mxu0 0.0
    %v1370 = vand.u32 %v869, 4294901760
    %1371 = vmatpush1.msra.mxu0 %v1370
    %1372 = vmatprep.subr.mxu0 0.0
    %v1373 = vand.u32 %v870, 4294901760
    %1374 = vmatpush1.msra.mxu0 %v1373
    %1375 = vmatprep.subr.mxu0 0.0
    %v1376 = vand.u32 %v871, 4294901760
    %1377 = vmatpush1.msra.mxu0 %v1376
    %1378 = vmatprep.subr.mxu0 0.0
    %v1379 = vand.u32 %v872, 4294901760
    %1380 = vmatpush1.msra.mxu0 %v1379
    %1381 = vmatprep.subr.mxu0 0.0
    %v1382 = vand.u32 %v873, 4294901760
    %1383 = vmatpush1.msra.mxu0 %v1382
    %1384 = vmatprep.subr.mxu0 0.0
    %v1385 = vand.u32 %v874, 4294901760
    %1386 = vmatpush1.msra.mxu0 %v1385
    %1387 = vmatprep.subr.mxu0 0.0
    %v1388 = vand.u32 %v875, 4294901760
    %1389 = vmatpush1.msra.mxu0 %v1388
    %1390 = vmatprep.subr.mxu0 0.0
    %v1391 = vand.u32 %v876, 4294901760
    %1392 = vmatpush1.msra.mxu0 %v1391
    %1393 = vmatprep.subr.mxu0 0.0
    %v1394 = vand.u32 %v877, 4294901760
    %1395 = vmatpush1.msra.mxu0 %v1394
    %1396 = vmatprep.subr.mxu0 0.0
    %v1397 = vand.u32 %v878, 4294901760
    %1398 = vmatpush1.msra.mxu0 %v1397
    %1399 = vmatprep.subr.mxu0 0.0
    %v1400 = vand.u32 %v879, 4294901760
    %1401 = vmatpush1.msra.mxu0 %v1400
    %1402 = vmatprep.subr.mxu0 0.0
    %v1403 = vand.u32 %v880, 4294901760
    %1404 = vmatpush1.msra.mxu0 %v1403
    %1405 = vmatprep.subr.mxu0 0.0
    %v1406 = vand.u32 %v881, 4294901760
    %1407 = vmatpush1.msra.mxu0 %v1406
    %1408 = vmatprep.subr.mxu0 0.0
    %v1409 = vand.u32 %v882, 4294901760
    %1410 = vmatpush1.msra.mxu0 %v1409
    %1411 = vmatprep.subr.mxu0 0.0
    %v1412 = vand.u32 %v883, 4294901760
    %1413 = vmatpush1.msra.mxu0 %v1412
    %1414 = vmatprep.subr.mxu0 0.0
    %v1415 = vand.u32 %v884, 4294901760
    %1416 = vmatpush1.msra.mxu0 %v1415
    %1417 = vmatprep.subr.mxu0 0.0
    %v1418 = vand.u32 %v885, 4294901760
    %1419 = vmatpush1.msra.mxu0 %v1418
    %1420 = vmatprep.subr.mxu0 0.0
    %v1421 = vand.u32 %v886, 4294901760
    %1422 = vmatpush1.msra.mxu0 %v1421
    %1423 = vmatprep.subr.mxu0 0.0
    %v1424 = vand.u32 %v887, 4294901760
    %1425 = vmatpush1.msra.mxu0 %v1424
    %1426 = vmatprep.subr.mxu0 0.0
    %v1427 = vand.u32 %v888, 4294901760
    %1428 = vmatpush1.msra.mxu0 %v1427
    %1429 = vmatprep.subr.mxu0 0.0
    %v1430 = vand.u32 %v889, 4294901760
    %1431 = vmatpush1.msra.mxu0 %v1430
    %1432 = vmatprep.subr.mxu0 0.0
    %v1433 = vand.u32 %v890, 4294901760
    %1434 = vmatpush1.msra.mxu0 %v1433
    %1435 = vmatprep.subr.mxu0 0.0
    %v1436 = vand.u32 %v891, 4294901760
    %1437 = vmatpush1.msra.mxu0 %v1436
    %1438 = vmatprep.subr.mxu0 0.0
    %1439 = vmatpush1.msra.mxu0 0.0
    %1440 = vmatprep.subr.mxu0 0.0
    %1441 = vmatpush1.msra.mxu0 0.0
    %1442 = vmatprep.subr.mxu0 0.0
    %1443 = vmatpush1.msra.mxu0 0.0
    %1444 = vmatprep.subr.mxu0 0.0
    %1445 = vmatpush1.msra.mxu0 0.0
    %1446 = vmatprep.subr.mxu0 0.0
    %1447 = vmatpush1.msra.mxu0 0.0
    %1448 = vmatprep.subr.mxu0 0.0
    %1449 = vmatpush1.msra.mxu0 0.0
    %1450 = vmatprep.subr.mxu0 0.0
    %1451 = vmatpush1.msra.mxu0 0.0
    %v1452 = vand.u32 %v901, 4294901760
    %v1453 = vsub.f32 %v901, %v1452
    %v1454 = vand.u32 %v1453, 4294901760
    %1455 = vmatprep.mubr.f32.mxu0 %v1454
    %v1456 = vand.u32 %v833, 4294901760
    %v1457 = vsub.f32 %v833, %v1456
    %v1458 = vand.u32 %v1457, 4294901760
    %1459 = vmatmul.mubr.f32.gmra.mrb[0].mxu0 %v1458
    %v1460 = vpop.f32.mrb[0].mxu0
    %v1461 = vadd.f32 %v1351, %v1460
    %v1462 = vpop.f32.mrb[0].mxu0
    %v1463 = vand.u32 %v904, 4294901760
    %v1464 = vsub.f32 %v904, %v1463
    %v1465 = vand.u32 %v1464, 4294901760
    %1466 = vmatprep.mubr.f32.mxu0 %v1465
    %v1467 = vand.u32 %v865, 4294901760
    %v1468 = vsub.f32 %v865, %v1467
    %v1469 = vand.u32 %v1468, 4294901760
    %1470 = vmatmul.mubr.f32.gmra.mrb[0].mxu0 %v1469
    %v1471 = vpop.f32.mrb[0].mxu0
    %v1472 = vadd.f32 %v1360, %v1471
    %v1473 = vpop.f32.mrb[0].mxu0
    %1474 = vdwg.mxu0
    %1475 = vmatprep.subr.mxu0 0.0
    %v1476 = vand.u32 %v867, 4294901760
    %v1477 = vsub.f32 %v867, %v1476
    %v1478 = vand.u32 %v1477, 4294901760
    %1479 = vmatpush1.msra.mxu0 %v1478
    %1480 = vmatprep.subr.mxu0 0.0
    %v1481 = vand.u32 %v868, 4294901760
    %v1482 = vsub.f32 %v868, %v1481
    %v1483 = vand.u32 %v1482, 4294901760
    %1484 = vmatpush1.msra.mxu0 %v1483
    %1485 = vmatprep.subr.mxu0 0.0
    %v1486 = vand.u32 %v869, 4294901760
    %v1487 = vsub.f32 %v869, %v1486
    %v1488 = vand.u32 %v1487, 4294901760
    %1489 = vmatpush1.msra.mxu0 %v1488
    %1490 = vmatprep.subr.mxu0 0.0
    %v1491 = vand.u32 %v870, 4294901760
    %v1492 = vsub.f32 %v870, %v1491
    %v1493 = vand.u32 %v1492, 4294901760
    %1494 = vmatpush1.msra.mxu0 %v1493
    %1495 = vmatprep.subr.mxu0 0.0
    %v1496 = vand.u32 %v871, 4294901760
    %v1497 = vsub.f32 %v871, %v1496
    %v1498 = vand.u32 %v1497, 4294901760
    %1499 = vmatpush1.msra.mxu0 %v1498
    %1500 = vmatprep.subr.mxu0 0.0
    %v1501 = vand.u32 %v872, 4294901760
    %v1502 = vsub.f32 %v872, %v1501
    %v1503 = vand.u32 %v1502, 4294901760
    %1504 = vmatpush1.msra.mxu0 %v1503
    %1505 = vmatprep.subr.mxu0 0.0
    %v1506 = vand.u32 %v873, 4294901760
    %v1507 = vsub.f32 %v873, %v1506
    %v1508 = vand.u32 %v1507, 4294901760
    %1509 = vmatpush1.msra.mxu0 %v1508
    %1510 = vmatprep.subr.mxu0 0.0
    %v1511 = vand.u32 %v874, 4294901760
    %v1512 = vsub.f32 %v874, %v1511
    %v1513 = vand.u32 %v1512, 4294901760
    %1514 = vmatpush1.msra.mxu0 %v1513
    %1515 = vmatprep.subr.mxu0 0.0
    %v1516 = vand.u32 %v875, 4294901760
    %v1517 = vsub.f32 %v875, %v1516
    %v1518 = vand.u32 %v1517, 4294901760
    %1519 = vmatpush1.msra.mxu0 %v1518
    %1520 = vmatprep.subr.mxu0 0.0
    %v1521 = vand.u32 %v876, 4294901760
    %v1522 = vsub.f32 %v876, %v1521
    %v1523 = vand.u32 %v1522, 4294901760
    %1524 = vmatpush1.msra.mxu0 %v1523
    %1525 = vmatprep.subr.mxu0 0.0
    %v1526 = vand.u32 %v877, 4294901760
    %v1527 = vsub.f32 %v877, %v1526
    %v1528 = vand.u32 %v1527, 4294901760
    %1529 = vmatpush1.msra.mxu0 %v1528
    %1530 = vmatprep.subr.mxu0 0.0
    %v1531 = vand.u32 %v878, 4294901760
    %v1532 = vsub.f32 %v878, %v1531
    %v1533 = vand.u32 %v1532, 4294901760
    %1534 = vmatpush1.msra.mxu0 %v1533
    %1535 = vmatprep.subr.mxu0 0.0
    %v1536 = vand.u32 %v879, 4294901760
    %v1537 = vsub.f32 %v879, %v1536
    %v1538 = vand.u32 %v1537, 4294901760
    %1539 = vmatpush1.msra.mxu0 %v1538
    %1540 = vmatprep.subr.mxu0 0.0
    %v1541 = vand.u32 %v880, 4294901760
    %v1542 = vsub.f32 %v880, %v1541
    %v1543 = vand.u32 %v1542, 4294901760
    %1544 = vmatpush1.msra.mxu0 %v1543
    %1545 = vmatprep.subr.mxu0 0.0
    %v1546 = vand.u32 %v881, 4294901760
    %v1547 = vsub.f32 %v881, %v1546
    %v1548 = vand.u32 %v1547, 4294901760
    %1549 = vmatpush1.msra.mxu0 %v1548
    %1550 = vmatprep.subr.mxu0 0.0
    %v1551 = vand.u32 %v882, 4294901760
    %v1552 = vsub.f32 %v882, %v1551
    %v1553 = vand.u32 %v1552, 4294901760
    %1554 = vmatpush1.msra.mxu0 %v1553
    %1555 = vmatprep.subr.mxu0 0.0
    %v1556 = vand.u32 %v883, 4294901760
    %v1557 = vsub.f32 %v883, %v1556
    %v1558 = vand.u32 %v1557, 4294901760
    %1559 = vmatpush1.msra.mxu0 %v1558
    %1560 = vmatprep.subr.mxu0 0.0
    %v1561 = vand.u32 %v884, 4294901760
    %v1562 = vsub.f32 %v884, %v1561
    %v1563 = vand.u32 %v1562, 4294901760
    %1564 = vmatpush1.msra.mxu0 %v1563
    %1565 = vmatprep.subr.mxu0 0.0
    %v1566 = vand.u32 %v885, 4294901760
    %v1567 = vsub.f32 %v885, %v1566
    %v1568 = vand.u32 %v1567, 4294901760
    %1569 = vmatpush1.msra.mxu0 %v1568
    %1570 = vmatprep.subr.mxu0 0.0
    %v1571 = vand.u32 %v886, 4294901760
    %v1572 = vsub.f32 %v886, %v1571
    %v1573 = vand.u32 %v1572, 4294901760
    %1574 = vmatpush1.msra.mxu0 %v1573
    %1575 = vmatprep.subr.mxu0 0.0
    %v1576 = vand.u32 %v887, 4294901760
    %v1577 = vsub.f32 %v887, %v1576
    %v1578 = vand.u32 %v1577, 4294901760
    %1579 = vmatpush1.msra.mxu0 %v1578
    %1580 = vmatprep.subr.mxu0 0.0
    %v1581 = vand.u32 %v888, 4294901760
    %v1582 = vsub.f32 %v888, %v1581
    %v1583 = vand.u32 %v1582, 4294901760
    %1584 = vmatpush1.msra.mxu0 %v1583
    %1585 = vmatprep.subr.mxu0 0.0
    %v1586 = vand.u32 %v889, 4294901760
    %v1587 = vsub.f32 %v889, %v1586
    %v1588 = vand.u32 %v1587, 4294901760
    %1589 = vmatpush1.msra.mxu0 %v1588
    %1590 = vmatprep.subr.mxu0 0.0
    %v1591 = vand.u32 %v890, 4294901760
    %v1592 = vsub.f32 %v890, %v1591
    %v1593 = vand.u32 %v1592, 4294901760
    %1594 = vmatpush1.msra.mxu0 %v1593
    %1595 = vmatprep.subr.mxu0 0.0
    %v1596 = vand.u32 %v891, 4294901760
    %v1597 = vsub.f32 %v891, %v1596
    %v1598 = vand.u32 %v1597, 4294901760
    %1599 = vmatpush1.msra.mxu0 %v1598
    %1600 = vmatprep.subr.mxu0 0.0
    %1601 = vmatpush1.msra.mxu0 0.0
    %1602 = vmatprep.subr.mxu0 0.0
    %1603 = vmatpush1.msra.mxu0 0.0
    %1604 = vmatprep.subr.mxu0 0.0
    %1605 = vmatpush1.msra.mxu0 0.0
    %1606 = vmatprep.subr.mxu0 0.0
    %1607 = vmatpush1.msra.mxu0 0.0
    %1608 = vmatprep.subr.mxu0 0.0
    %1609 = vmatpush1.msra.mxu0 0.0
    %1610 = vmatprep.subr.mxu0 0.0
    %1611 = vmatpush1.msra.mxu0 0.0
    %1612 = vmatprep.subr.mxu0 0.0
    %1613 = vmatpush1.msra.mxu0 0.0
    %v1614 = vand.u32 %v901, 4294901760
    %1615 = vmatprep.mubr.f32.mxu0 %v1614
    %v1616 = vand.u32 %v833, 4294901760
    %1617 = vmatmul.mubr.f32.gmra.mrb[0].mxu0 %v1616
    %v1618 = vpop.f32.mrb[0].mxu0
    %v1619 = vadd.f32 %v1461, %v1618
    %v1620 = vpop.f32.mrb[0].mxu0
    %v1621 = vand.u32 %v904, 4294901760
    %1622 = vmatprep.mubr.f32.mxu0 %v1621
    %v1623 = vand.u32 %v865, 4294901760
    %1624 = vmatmul.mubr.f32.gmra.mrb[0].mxu0 %v1623
    %v1625 = vpop.f32.mrb[0].mxu0
    %v1626 = vadd.f32 %v1472, %v1625
    %v1627 = vpop.f32.mrb[0].mxu0
    %1628 = vdwg.mxu0
    %1629 = vmatprep.subr.mxu0 0.0
    %v1630 = vand.u32 %v867, 4294901760
    %1631 = vmatpush1.msra.mxu0 %v1630
    %1632 = vmatprep.subr.mxu0 0.0
    %v1633 = vand.u32 %v868, 4294901760
    %1634 = vmatpush1.msra.mxu0 %v1633
    %1635 = vmatprep.subr.mxu0 0.0
    %v1636 = vand.u32 %v869, 4294901760
    %1637 = vmatpush1.msra.mxu0 %v1636
    %1638 = vmatprep.subr.mxu0 0.0
    %v1639 = vand.u32 %v870, 4294901760
    %1640 = vmatpush1.msra.mxu0 %v1639
    %1641 = vmatprep.subr.mxu0 0.0
    %v1642 = vand.u32 %v871, 4294901760
    %1643 = vmatpush1.msra.mxu0 %v1642
    %1644 = vmatprep.subr.mxu0 0.0
    %v1645 = vand.u32 %v872, 4294901760
    %1646 = vmatpush1.msra.mxu0 %v1645
    %1647 = vmatprep.subr.mxu0 0.0
    %v1648 = vand.u32 %v873, 4294901760
    %1649 = vmatpush1.msra.mxu0 %v1648
    %1650 = vmatprep.subr.mxu0 0.0
    %v1651 = vand.u32 %v874, 4294901760
    %1652 = vmatpush1.msra.mxu0 %v1651
    %1653 = vmatprep.subr.mxu0 0.0
    %v1654 = vand.u32 %v875, 4294901760
    %1655 = vmatpush1.msra.mxu0 %v1654
    %1656 = vmatprep.subr.mxu0 0.0
    %v1657 = vand.u32 %v876, 4294901760
    %1658 = vmatpush1.msra.mxu0 %v1657
    %1659 = vmatprep.subr.mxu0 0.0
    %v1660 = vand.u32 %v877, 4294901760
    %1661 = vmatpush1.msra.mxu0 %v1660
    %1662 = vmatprep.subr.mxu0 0.0
    %v1663 = vand.u32 %v878, 4294901760
    %1664 = vmatpush1.msra.mxu0 %v1663
    %1665 = vmatprep.subr.mxu0 0.0
    %v1666 = vand.u32 %v879, 4294901760
    %1667 = vmatpush1.msra.mxu0 %v1666
    %1668 = vmatprep.subr.mxu0 0.0
    %v1669 = vand.u32 %v880, 4294901760
    %1670 = vmatpush1.msra.mxu0 %v1669
    %1671 = vmatprep.subr.mxu0 0.0
    %v1672 = vand.u32 %v881, 4294901760
    %1673 = vmatpush1.msra.mxu0 %v1672
    %1674 = vmatprep.subr.mxu0 0.0
    %v1675 = vand.u32 %v882, 4294901760
    %1676 = vmatpush1.msra.mxu0 %v1675
    %1677 = vmatprep.subr.mxu0 0.0
    %v1678 = vand.u32 %v883, 4294901760
    %1679 = vmatpush1.msra.mxu0 %v1678
    %1680 = vmatprep.subr.mxu0 0.0
    %v1681 = vand.u32 %v884, 4294901760
    %1682 = vmatpush1.msra.mxu0 %v1681
    %1683 = vmatprep.subr.mxu0 0.0
    %v1684 = vand.u32 %v885, 4294901760
    %1685 = vmatpush1.msra.mxu0 %v1684
    %1686 = vmatprep.subr.mxu0 0.0
    %v1687 = vand.u32 %v886, 4294901760
    %1688 = vmatpush1.msra.mxu0 %v1687
    %1689 = vmatprep.subr.mxu0 0.0
    %v1690 = vand.u32 %v887, 4294901760
    %1691 = vmatpush1.msra.mxu0 %v1690
    %1692 = vmatprep.subr.mxu0 0.0
    %v1693 = vand.u32 %v888, 4294901760
    %1694 = vmatpush1.msra.mxu0 %v1693
    %1695 = vmatprep.subr.mxu0 0.0
    %v1696 = vand.u32 %v889, 4294901760
    %1697 = vmatpush1.msra.mxu0 %v1696
    %1698 = vmatprep.subr.mxu0 0.0
    %v1699 = vand.u32 %v890, 4294901760
    %1700 = vmatpush1.msra.mxu0 %v1699
    %1701 = vmatprep.subr.mxu0 0.0
    %v1702 = vand.u32 %v891, 4294901760
    %1703 = vmatpush1.msra.mxu0 %v1702
    %1704 = vmatprep.subr.mxu0 0.0
    %1705 = vmatpush1.msra.mxu0 0.0
    %1706 = vmatprep.subr.mxu0 0.0
    %1707 = vmatpush1.msra.mxu0 0.0
    %1708 = vmatprep.subr.mxu0 0.0
    %1709 = vmatpush1.msra.mxu0 0.0
    %1710 = vmatprep.subr.mxu0 0.0
    %1711 = vmatpush1.msra.mxu0 0.0
    %1712 = vmatprep.subr.mxu0 0.0
    %1713 = vmatpush1.msra.mxu0 0.0
    %1714 = vmatprep.subr.mxu0 0.0
    %1715 = vmatpush1.msra.mxu0 0.0
    %1716 = vmatprep.subr.mxu0 0.0
    %1717 = vmatpush1.msra.mxu0 0.0
    %v1718 = vand.u32 %v901, 4294901760
    %1719 = vmatprep.mubr.f32.mxu0 %v1718
    %v1720 = vand.u32 %v833, 4294901760
    %1721 = vmatmul.mubr.f32.gmra.mrb[0].mxu0 %v1720
    %v1722 = vpop.f32.mrb[0].mxu0
    %v1723 = vadd.f32 %v1619, %v1722
    %v1724 = vpop.f32.mrb[0].mxu0
    %v1725 = vand.u32 %v904, 4294901760
    %1726 = vmatprep.mubr.f32.mxu0 %v1725
    %v1727 = vand.u32 %v865, 4294901760
    %1728 = vmatmul.mubr.f32.gmra.mrb[0].mxu0 %v1727
    %v1729 = vpop.f32.mrb[0].mxu0
    %v1730 = vadd.f32 %v1626, %v1729
    %v1731 = vpop.f32.mrb[0].mxu0
    %1732 = vdwg.mxu0
    %v1733 = vtanh.pop %v1723
    %v1734 = vtanh.pop %v1730
    %1737 = vrot.lane.b32.xlu0 %v1733, 120
    %v1738 = vpop.permute.xlu0 %1737
    %1739 = vrot.lane.b32.xlu0 %v1734, 120
    %v1740 = vpop.permute.xlu0 %1739
    %v1743 = vmax.f32 %v1733, %v1738
    %v1744 = vmax.f32 %v1734, %v1740
    %1747 = vrot.lane.b32.xlu0 %v1743, 120
    %v1748 = vpop.permute.xlu0 %1747
    %1749 = vrot.lane.b32.xlu0 %v1744, 120
    %v1750 = vpop.permute.xlu0 %1749
    %v1753 = vmax.f32 %v1733, %v1748
    %v1754 = vmax.f32 %v1734, %v1750
    %v1755 = vld [vmem:[%s8] sm:$0xff]
    %v1756 = vld [vmem:[%s9] sm:$0x1]
    %v1758 = vlaneseq
    %v1759 = vshrl.u32 %v1758, 7
    %v1760 = vsub.s32 0, %v1759
    %v1761 = vrot.slane %v1756, %v1760
    %v1764 = vsel %vm750, %v1753, 0
    %v1767 = vsel %vm750, %v1754, 0
    %1769 = vmatprep.subr.mxu0 0.0
    %v1770 = vand.u32 %v1755, 4294901760
    %1771 = vmatpush1.msra.mxu0 %v1770
    %1772 = vmatprep.subr.mxu0 0.0
    %1773 = vmatpush1.msra.mxu0 0.0
    %1774 = vmatprep.subr.mxu0 0.0
    %1775 = vmatpush1.msra.mxu0 0.0
    %1776 = vmatprep.subr.mxu0 0.0
    %1777 = vmatpush1.msra.mxu0 0.0
    %1778 = vmatprep.subr.mxu0 0.0
    %1779 = vmatpush1.msra.mxu0 0.0
    %1780 = vmatprep.subr.mxu0 0.0
    %1781 = vmatpush1.msra.mxu0 0.0
    %1782 = vmatprep.subr.mxu0 0.0
    %1783 = vmatpush1.msra.mxu0 0.0
    %1784 = vmatprep.subr.mxu0 0.0
    %1785 = vmatpush1.msra.mxu0 0.0
    %1786 = vmatprep.subr.mxu0 0.0
    %1787 = vmatpush1.msra.mxu0 0.0
    %1788 = vmatprep.subr.mxu0 0.0
    %1789 = vmatpush1.msra.mxu0 0.0
    %1790 = vmatprep.subr.mxu0 0.0
    %1791 = vmatpush1.msra.mxu0 0.0
    %1792 = vmatprep.subr.mxu0 0.0
    %1793 = vmatpush1.msra.mxu0 0.0
    %1794 = vmatprep.subr.mxu0 0.0
    %1795 = vmatpush1.msra.mxu0 0.0
    %1796 = vmatprep.subr.mxu0 0.0
    %1797 = vmatpush1.msra.mxu0 0.0
    %1798 = vmatprep.subr.mxu0 0.0
    %1799 = vmatpush1.msra.mxu0 0.0
    %1800 = vmatprep.subr.mxu0 0.0
    %1801 = vmatpush1.msra.mxu0 0.0
    %1802 = vmatprep.subr.mxu0 0.0
    %1803 = vmatpush1.msra.mxu0 0.0
    %1804 = vmatprep.subr.mxu0 0.0
    %1805 = vmatpush1.msra.mxu0 0.0
    %1806 = vmatprep.subr.mxu0 0.0
    %1807 = vmatpush1.msra.mxu0 0.0
    %1808 = vmatprep.subr.mxu0 0.0
    %1809 = vmatpush1.msra.mxu0 0.0
    %1810 = vmatprep.subr.mxu0 0.0
    %1811 = vmatpush1.msra.mxu0 0.0
    %1812 = vmatprep.subr.mxu0 0.0
    %1813 = vmatpush1.msra.mxu0 0.0
    %1814 = vmatprep.subr.mxu0 0.0
    %1815 = vmatpush1.msra.mxu0 0.0
    %1816 = vmatprep.subr.mxu0 0.0
    %1817 = vmatpush1.msra.mxu0 0.0
    %1818 = vmatprep.subr.mxu0 0.0
    %1819 = vmatpush1.msra.mxu0 0.0
    %1820 = vmatprep.subr.mxu0 0.0
    %1821 = vmatpush1.msra.mxu0 0.0
    %1822 = vmatprep.subr.mxu0 0.0
    %1823 = vmatpush1.msra.mxu0 0.0
    %1824 = vmatprep.subr.mxu0 0.0
    %1825 = vmatpush1.msra.mxu0 0.0
    %1826 = vmatprep.subr.mxu0 0.0
    %1827 = vmatpush1.msra.mxu0 0.0
    %1828 = vmatprep.subr.mxu0 0.0
    %1829 = vmatpush1.msra.mxu0 0.0
    %1830 = vmatprep.subr.mxu0 0.0
    %1831 = vmatpush1.msra.mxu0 0.0
    %1832 = vmatprep.subr.mxu0 0.0
    %1833 = vmatpush1.msra.mxu0 0.0
    %1834 = vmatprep.mubr.f32.mxu0 0.0
    %v1835 = vand.u32 %v1764, 4294901760
    %v1836 = vsub.f32 %v1764, %v1835
    %v1837 = vand.u32 %v1836, 4294901760
    %v1838 = vsub.f32 %v1836, %v1837
    %v1839 = vand.u32 %v1838, 4294901760
    %1840 = vmatmul.mubr.f32.gmra.mrb[0].mxu0 %v1839
    %v1841 = vpop.f32.mrb[0].mxu0
    %v1842 = vadd.f32 %v1761, %v1841
    %v1843 = vpop.f32.mrb[0].mxu0
    %1844 = vmatprep.mubr.f32.mxu0 0.0
    %v1845 = vand.u32 %v1767, 4294901760
    %v1846 = vsub.f32 %v1767, %v1845
    %v1847 = vand.u32 %v1846, 4294901760
    %v1848 = vsub.f32 %v1846, %v1847
    %v1849 = vand.u32 %v1848, 4294901760
    %1850 = vmatmul.mubr.f32.gmra.mrb[0].mxu0 %v1849
    %v1851 = vpop.f32.mrb[0].mxu0
    %v1852 = vadd.f32 %v1761, %v1851
    %v1853 = vpop.f32.mrb[0].mxu0
    %1854 = vdwg.mxu0
    %1855 = vmatprep.subr.mxu0 0.0
    %v1856 = vand.u32 %v1755, 4294901760
    %v1857 = vsub.f32 %v1755, %v1856
    %v1858 = vand.u32 %v1857, 4294901760
    %v1859 = vsub.f32 %v1857, %v1858
    %v1860 = vand.u32 %v1859, 4294901760
    %1861 = vmatpush1.msra.mxu0 %v1860
    %1862 = vmatprep.subr.mxu0 0.0
    %1863 = vmatpush1.msra.mxu0 0.0
    %1864 = vmatprep.subr.mxu0 0.0
    %1865 = vmatpush1.msra.mxu0 0.0
    %1866 = vmatprep.subr.mxu0 0.0
    %1867 = vmatpush1.msra.mxu0 0.0
    %1868 = vmatprep.subr.mxu0 0.0
    %1869 = vmatpush1.msra.mxu0 0.0
    %1870 = vmatprep.subr.mxu0 0.0
    %1871 = vmatpush1.msra.mxu0 0.0
    %1872 = vmatprep.subr.mxu0 0.0
    %1873 = vmatpush1.msra.mxu0 0.0
    %1874 = vmatprep.subr.mxu0 0.0
    %1875 = vmatpush1.msra.mxu0 0.0
    %1876 = vmatprep.subr.mxu0 0.0
    %1877 = vmatpush1.msra.mxu0 0.0
    %1878 = vmatprep.subr.mxu0 0.0
    %1879 = vmatpush1.msra.mxu0 0.0
    %1880 = vmatprep.subr.mxu0 0.0
    %1881 = vmatpush1.msra.mxu0 0.0
    %1882 = vmatprep.subr.mxu0 0.0
    %1883 = vmatpush1.msra.mxu0 0.0
    %1884 = vmatprep.subr.mxu0 0.0
    %1885 = vmatpush1.msra.mxu0 0.0
    %1886 = vmatprep.subr.mxu0 0.0
    %1887 = vmatpush1.msra.mxu0 0.0
    %1888 = vmatprep.subr.mxu0 0.0
    %1889 = vmatpush1.msra.mxu0 0.0
    %1890 = vmatprep.subr.mxu0 0.0
    %1891 = vmatpush1.msra.mxu0 0.0
    %1892 = vmatprep.subr.mxu0 0.0
    %1893 = vmatpush1.msra.mxu0 0.0
    %1894 = vmatprep.subr.mxu0 0.0
    %1895 = vmatpush1.msra.mxu0 0.0
    %1896 = vmatprep.subr.mxu0 0.0
    %1897 = vmatpush1.msra.mxu0 0.0
    %1898 = vmatprep.subr.mxu0 0.0
    %1899 = vmatpush1.msra.mxu0 0.0
    %1900 = vmatprep.subr.mxu0 0.0
    %1901 = vmatpush1.msra.mxu0 0.0
    %1902 = vmatprep.subr.mxu0 0.0
    %1903 = vmatpush1.msra.mxu0 0.0
    %1904 = vmatprep.subr.mxu0 0.0
    %1905 = vmatpush1.msra.mxu0 0.0
    %1906 = vmatprep.subr.mxu0 0.0
    %1907 = vmatpush1.msra.mxu0 0.0
    %1908 = vmatprep.subr.mxu0 0.0
    %1909 = vmatpush1.msra.mxu0 0.0
    %1910 = vmatprep.subr.mxu0 0.0
    %1911 = vmatpush1.msra.mxu0 0.0
    %1912 = vmatprep.subr.mxu0 0.0
    %1913 = vmatpush1.msra.mxu0 0.0
    %1914 = vmatprep.subr.mxu0 0.0
    %1915 = vmatpush1.msra.mxu0 0.0
    %1916 = vmatprep.subr.mxu0 0.0
    %1917 = vmatpush1.msra.mxu0 0.0
    %1918 = vmatprep.subr.mxu0 0.0
    %1919 = vmatpush1.msra.mxu0 0.0
    %1920 = vmatprep.subr.mxu0 0.0
    %1921 = vmatpush1.msra.mxu0 0.0
    %1922 = vmatprep.subr.mxu0 0.0
    %1923 = vmatpush1.msra.mxu0 0.0
    %1924 = vmatprep.mubr.f32.mxu0 0.0
    %v1925 = vand.u32 %v1764, 4294901760
    %1926 = vmatmul.mubr.f32.gmra.mrb[0].mxu0 %v1925
    %v1927 = vpop.f32.mrb[0].mxu0
    %v1928 = vadd.f32 %v1842, %v1927
    %v1929 = vpop.f32.mrb[0].mxu0
    %1930 = vmatprep.mubr.f32.mxu0 0.0
    %v1931 = vand.u32 %v1767, 4294901760
    %1932 = vmatmul.mubr.f32.gmra.mrb[0].mxu0 %v1931
    %v1933 = vpop.f32.mrb[0].mxu0
    %v1934 = vadd.f32 %v1852, %v1933
    %v1935 = vpop.f32.mrb[0].mxu0
    %1936 = vdwg.mxu0
    %1937 = vmatprep.subr.mxu0 0.0
    %v1938 = vand.u32 %v1755, 4294901760
    %v1939 = vsub.f32 %v1755, %v1938
    %1940 = vmatpush1.msra.mxu0 %v1939
    %1941 = vmatprep.subr.mxu0 0.0
    %1942 = vmatpush1.msra.mxu0 0.0
    %1943 = vmatprep.subr.mxu0 0.0
    %1944 = vmatpush1.msra.mxu0 0.0
    %1945 = vmatprep.subr.mxu0 0.0
    %1946 = vmatpush1.msra.mxu0 0.0
    %1947 = vmatprep.subr.mxu0 0.0
    %1948 = vmatpush1.msra.mxu0 0.0
    %1949 = vmatprep.subr.mxu0 0.0
    %1950 = vmatpush1.msra.mxu0 0.0
    %1951 = vmatprep.subr.mxu0 0.0
    %1952 = vmatpush1.msra.mxu0 0.0
    %1953 = vmatprep.subr.mxu0 0.0
    %1954 = vmatpush1.msra.mxu0 0.0
    %1955 = vmatprep.subr.mxu0 0.0
    %1956 = vmatpush1.msra.mxu0 0.0
    %1957 = vmatprep.subr.mxu0 0.0
    %1958 = vmatpush1.msra.mxu0 0.0
    %1959 = vmatprep.subr.mxu0 0.0
    %1960 = vmatpush1.msra.mxu0 0.0
    %1961 = vmatprep.subr.mxu0 0.0
    %1962 = vmatpush1.msra.mxu0 0.0
    %1963 = vmatprep.subr.mxu0 0.0
    %1964 = vmatpush1.msra.mxu0 0.0
    %1965 = vmatprep.subr.mxu0 0.0
    %1966 = vmatpush1.msra.mxu0 0.0
    %1967 = vmatprep.subr.mxu0 0.0
    %1968 = vmatpush1.msra.mxu0 0.0
    %1969 = vmatprep.subr.mxu0 0.0
    %1970 = vmatpush1.msra.mxu0 0.0
    %1971 = vmatprep.subr.mxu0 0.0
    %1972 = vmatpush1.msra.mxu0 0.0
    %1973 = vmatprep.subr.mxu0 0.0
    %1974 = vmatpush1.msra.mxu0 0.0
    %1975 = vmatprep.subr.mxu0 0.0
    %1976 = vmatpush1.msra.mxu0 0.0
    %1977 = vmatprep.subr.mxu0 0.0
    %1978 = vmatpush1.msra.mxu0 0.0
    %1979 = vmatprep.subr.mxu0 0.0
    %1980 = vmatpush1.msra.mxu0 0.0
    %1981 = vmatprep.subr.mxu0 0.0
    %1982 = vmatpush1.msra.mxu0 0.0
    %1983 = vmatprep.subr.mxu0 0.0
    %1984 = vmatpush1.msra.mxu0 0.0
    %1985 = vmatprep.subr.mxu0 0.0
    %1986 = vmatpush1.msra.mxu0 0.0
    %1987 = vmatprep.subr.mxu0 0.0
    %1988 = vmatpush1.msra.mxu0 0.0
    %1989 = vmatprep.subr.mxu0 0.0
    %1990 = vmatpush1.msra.mxu0 0.0
    %1991 = vmatprep.subr.mxu0 0.0
    %1992 = vmatpush1.msra.mxu0 0.0
    %1993 = vmatprep.subr.mxu0 0.0
    %1994 = vmatpush1.msra.mxu0 0.0
    %1995 = vmatprep.subr.mxu0 0.0
    %1996 = vmatpush1.msra.mxu0 0.0
    %1997 = vmatprep.subr.mxu0 0.0
    %1998 = vmatpush1.msra.mxu0 0.0
    %1999 = vmatprep.subr.mxu0 0.0
    %2000 = vmatpush1.msra.mxu0 0.0
    %2001 = vmatprep.subr.mxu0 0.0
    %2002 = vmatpush1.msra.mxu0 0.0
    %2003 = vmatprep.mubr.f32.mxu0 0.0
    %v2004 = vand.u32 %v1764, 4294901760
    %v2005 = vsub.f32 %v1764, %v2004
    %2006 = vmatmul.mubr.f32.gmra.mrb[0].mxu0 %v2005
    %v2007 = vpop.f32.mrb[0].mxu0
    %v2008 = vadd.f32 %v1928, %v2007
    %v2009 = vpop.f32.mrb[0].mxu0
    %2010 = vmatprep.mubr.f32.mxu0 0.0
    %v2011 = vand.u32 %v1767, 4294901760
    %v2012 = vsub.f32 %v1767, %v2011
    %2013 = vmatmul.mubr.f32.gmra.mrb[0].mxu0 %v2012
    %v2014 = vpop.f32.mrb[0].mxu0
    %v2015 = vadd.f32 %v1934, %v2014
    %v2016 = vpop.f32.mrb[0].mxu0
    %2017 = vdwg.mxu0
    %2018 = vmatprep.subr.mxu0 0.0
    %v2019 = vand.u32 %v1755, 4294901760
    %2020 = vmatpush1.msra.mxu0 %v2019
    %2021 = vmatprep.subr.mxu0 0.0
    %2022 = vmatpush1.msra.mxu0 0.0
    %2023 = vmatprep.subr.mxu0 0.0
    %2024 = vmatpush1.msra.mxu0 0.0
    %2025 = vmatprep.subr.mxu0 0.0
    %2026 = vmatpush1.msra.mxu0 0.0
    %2027 = vmatprep.subr.mxu0 0.0
    %2028 = vmatpush1.msra.mxu0 0.0
    %2029 = vmatprep.subr.mxu0 0.0
    %2030 = vmatpush1.msra.mxu0 0.0
    %2031 = vmatprep.subr.mxu0 0.0
    %2032 = vmatpush1.msra.mxu0 0.0
    %2033 = vmatprep.subr.mxu0 0.0
    %2034 = vmatpush1.msra.mxu0 0.0
    %2035 = vmatprep.subr.mxu0 0.0
    %2036 = vmatpush1.msra.mxu0 0.0
    %2037 = vmatprep.subr.mxu0 0.0
    %2038 = vmatpush1.msra.mxu0 0.0
    %2039 = vmatprep.subr.mxu0 0.0
    %2040 = vmatpush1.msra.mxu0 0.0
    %2041 = vmatprep.subr.mxu0 0.0
    %2042 = vmatpush1.msra.mxu0 0.0
    %2043 = vmatprep.subr.mxu0 0.0
    %2044 = vmatpush1.msra.mxu0 0.0
    %2045 = vmatprep.subr.mxu0 0.0
    %2046 = vmatpush1.msra.mxu0 0.0
    %2047 = vmatprep.subr.mxu0 0.0
    %2048 = vmatpush1.msra.mxu0 0.0
    %2049 = vmatprep.subr.mxu0 0.0
    %2050 = vmatpush1.msra.mxu0 0.0
    %2051 = vmatprep.subr.mxu0 0.0
    %2052 = vmatpush1.msra.mxu0 0.0
    %2053 = vmatprep.subr.mxu0 0.0
    %2054 = vmatpush1.msra.mxu0 0.0
    %2055 = vmatprep.subr.mxu0 0.0
    %2056 = vmatpush1.msra.mxu0 0.0
    %2057 = vmatprep.subr.mxu0 0.0
    %2058 = vmatpush1.msra.mxu0 0.0
    %2059 = vmatprep.subr.mxu0 0.0
    %2060 = vmatpush1.msra.mxu0 0.0
    %2061 = vmatprep.subr.mxu0 0.0
    %2062 = vmatpush1.msra.mxu0 0.0
    %2063 = vmatprep.subr.mxu0 0.0
    %2064 = vmatpush1.msra.mxu0 0.0
    %2065 = vmatprep.subr.mxu0 0.0
    %2066 = vmatpush1.msra.mxu0 0.0
    %2067 = vmatprep.subr.mxu0 0.0
    %2068 = vmatpush1.msra.mxu0 0.0
    %2069 = vmatprep.subr.mxu0 0.0
    %2070 = vmatpush1.msra.mxu0 0.0
    %2071 = vmatprep.subr.mxu0 0.0
    %2072 = vmatpush1.msra.mxu0 0.0
    %2073 = vmatprep.subr.mxu0 0.0
    %2074 = vmatpush1.msra.mxu0 0.0
    %2075 = vmatprep.subr.mxu0 0.0
    %2076 = vmatpush1.msra.mxu0 0.0
    %2077 = vmatprep.subr.mxu0 0.0
    %2078 = vmatpush1.msra.mxu0 0.0
    %2079 = vmatprep.subr.mxu0 0.0
    %2080 = vmatpush1.msra.mxu0 0.0
    %2081 = vmatprep.subr.mxu0 0.0
    %2082 = vmatpush1.msra.mxu0 0.0
    %2083 = vmatprep.mubr.f32.mxu0 0.0
    %v2084 = vand.u32 %v1764, 4294901760
    %v2085 = vsub.f32 %v1764, %v2084
    %v2086 = vand.u32 %v2085, 4294901760
    %2087 = vmatmul.mubr.f32.gmra.mrb[0].mxu0 %v2086
    %v2088 = vpop.f32.mrb[0].mxu0
    %v2089 = vadd.f32 %v2008, %v2088
    %v2090 = vpop.f32.mrb[0].mxu0
    %2091 = vmatprep.mubr.f32.mxu0 0.0
    %v2092 = vand.u32 %v1767, 4294901760
    %v2093 = vsub.f32 %v1767, %v2092
    %v2094 = vand.u32 %v2093, 4294901760
    %2095 = vmatmul.mubr.f32.gmra.mrb[0].mxu0 %v2094
    %v2096 = vpop.f32.mrb[0].mxu0
    %v2097 = vadd.f32 %v2015, %v2096
    %v2098 = vpop.f32.mrb[0].mxu0
    %2099 = vdwg.mxu0
    %2100 = vmatprep.subr.mxu0 0.0
    %v2101 = vand.u32 %v1755, 4294901760
    %v2102 = vsub.f32 %v1755, %v2101
    %v2103 = vand.u32 %v2102, 4294901760
    %2104 = vmatpush1.msra.mxu0 %v2103
    %2105 = vmatprep.subr.mxu0 0.0
    %2106 = vmatpush1.msra.mxu0 0.0
    %2107 = vmatprep.subr.mxu0 0.0
    %2108 = vmatpush1.msra.mxu0 0.0
    %2109 = vmatprep.subr.mxu0 0.0
    %2110 = vmatpush1.msra.mxu0 0.0
    %2111 = vmatprep.subr.mxu0 0.0
    %2112 = vmatpush1.msra.mxu0 0.0
    %2113 = vmatprep.subr.mxu0 0.0
    %2114 = vmatpush1.msra.mxu0 0.0
    %2115 = vmatprep.subr.mxu0 0.0
    %2116 = vmatpush1.msra.mxu0 0.0
    %2117 = vmatprep.subr.mxu0 0.0
    %2118 = vmatpush1.msra.mxu0 0.0
    %2119 = vmatprep.subr.mxu0 0.0
    %2120 = vmatpush1.msra.mxu0 0.0
    %2121 = vmatprep.subr.mxu0 0.0
    %2122 = vmatpush1.msra.mxu0 0.0
    %2123 = vmatprep.subr.mxu0 0.0
    %2124 = vmatpush1.msra.mxu0 0.0
    %2125 = vmatprep.subr.mxu0 0.0
    %2126 = vmatpush1.msra.mxu0 0.0
    %2127 = vmatprep.subr.mxu0 0.0
    %2128 = vmatpush1.msra.mxu0 0.0
    %2129 = vmatprep.subr.mxu0 0.0
    %2130 = vmatpush1.msra.mxu0 0.0
    %2131 = vmatprep.subr.mxu0 0.0
    %2132 = vmatpush1.msra.mxu0 0.0
    %2133 = vmatprep.subr.mxu0 0.0
    %2134 = vmatpush1.msra.mxu0 0.0
    %2135 = vmatprep.subr.mxu0 0.0
    %2136 = vmatpush1.msra.mxu0 0.0
    %2137 = vmatprep.subr.mxu0 0.0
    %2138 = vmatpush1.msra.mxu0 0.0
    %2139 = vmatprep.subr.mxu0 0.0
    %2140 = vmatpush1.msra.mxu0 0.0
    %2141 = vmatprep.subr.mxu0 0.0
    %2142 = vmatpush1.msra.mxu0 0.0
    %2143 = vmatprep.subr.mxu0 0.0
    %2144 = vmatpush1.msra.mxu0 0.0
    %2145 = vmatprep.subr.mxu0 0.0
    %2146 = vmatpush1.msra.mxu0 0.0
    %2147 = vmatprep.subr.mxu0 0.0
    %2148 = vmatpush1.msra.mxu0 0.0
    %2149 = vmatprep.subr.mxu0 0.0
    %2150 = vmatpush1.msra.mxu0 0.0
    %2151 = vmatprep.subr.mxu0 0.0
    %2152 = vmatpush1.msra.mxu0 0.0
    %2153 = vmatprep.subr.mxu0 0.0
    %2154 = vmatpush1.msra.mxu0 0.0
    %2155 = vmatprep.subr.mxu0 0.0
    %2156 = vmatpush1.msra.mxu0 0.0
    %2157 = vmatprep.subr.mxu0 0.0
    %2158 = vmatpush1.msra.mxu0 0.0
    %2159 = vmatprep.subr.mxu0 0.0
    %2160 = vmatpush1.msra.mxu0 0.0
    %2161 = vmatprep.subr.mxu0 0.0
    %2162 = vmatpush1.msra.mxu0 0.0
    %2163 = vmatprep.subr.mxu0 0.0
    %2164 = vmatpush1.msra.mxu0 0.0
    %2165 = vmatprep.subr.mxu0 0.0
    %2166 = vmatpush1.msra.mxu0 0.0
    %2167 = vmatprep.mubr.f32.mxu0 0.0
    %v2168 = vand.u32 %v1764, 4294901760
    %2169 = vmatmul.mubr.f32.gmra.mrb[0].mxu0 %v2168
    %v2170 = vpop.f32.mrb[0].mxu0
    %v2171 = vadd.f32 %v2089, %v2170
    %v2172 = vpop.f32.mrb[0].mxu0
    %2173 = vmatprep.mubr.f32.mxu0 0.0
    %v2174 = vand.u32 %v1767, 4294901760
    %2175 = vmatmul.mubr.f32.gmra.mrb[0].mxu0 %v2174
    %v2176 = vpop.f32.mrb[0].mxu0
    %v2177 = vadd.f32 %v2097, %v2176
    %v2178 = vpop.f32.mrb[0].mxu0
    %2179 = vdwg.mxu0
    %2180 = vmatprep.subr.mxu0 0.0
    %v2181 = vand.u32 %v1755, 4294901760
    %2182 = vmatpush1.msra.mxu0 %v2181
    %2183 = vmatprep.subr.mxu0 0.0
    %2184 = vmatpush1.msra.mxu0 0.0
    %2185 = vmatprep.subr.mxu0 0.0
    %2186 = vmatpush1.msra.mxu0 0.0
    %2187 = vmatprep.subr.mxu0 0.0
    %2188 = vmatpush1.msra.mxu0 0.0
    %2189 = vmatprep.subr.mxu0 0.0
    %2190 = vmatpush1.msra.mxu0 0.0
    %2191 = vmatprep.subr.mxu0 0.0
    %2192 = vmatpush1.msra.mxu0 0.0
    %2193 = vmatprep.subr.mxu0 0.0
    %2194 = vmatpush1.msra.mxu0 0.0
    %2195 = vmatprep.subr.mxu0 0.0
    %2196 = vmatpush1.msra.mxu0 0.0
    %2197 = vmatprep.subr.mxu0 0.0
    %2198 = vmatpush1.msra.mxu0 0.0
    %2199 = vmatprep.subr.mxu0 0.0
    %2200 = vmatpush1.msra.mxu0 0.0
    %2201 = vmatprep.subr.mxu0 0.0
    %2202 = vmatpush1.msra.mxu0 0.0
    %2203 = vmatprep.subr.mxu0 0.0
    %2204 = vmatpush1.msra.mxu0 0.0
    %2205 = vmatprep.subr.mxu0 0.0
    %2206 = vmatpush1.msra.mxu0 0.0
    %2207 = vmatprep.subr.mxu0 0.0
    %2208 = vmatpush1.msra.mxu0 0.0
    %2209 = vmatprep.subr.mxu0 0.0
    %2210 = vmatpush1.msra.mxu0 0.0
    %2211 = vmatprep.subr.mxu0 0.0
    %2212 = vmatpush1.msra.mxu0 0.0
    %2213 = vmatprep.subr.mxu0 0.0
    %2214 = vmatpush1.msra.mxu0 0.0
    %2215 = vmatprep.subr.mxu0 0.0
    %2216 = vmatpush1.msra.mxu0 0.0
    %2217 = vmatprep.subr.mxu0 0.0
    %2218 = vmatpush1.msra.mxu0 0.0
    %2219 = vmatprep.subr.mxu0 0.0
    %2220 = vmatpush1.msra.mxu0 0.0
    %2221 = vmatprep.subr.mxu0 0.0
    %2222 = vmatpush1.msra.mxu0 0.0
    %2223 = vmatprep.subr.mxu0 0.0
    %2224 = vmatpush1.msra.mxu0 0.0
    %2225 = vmatprep.subr.mxu0 0.0
    %2226 = vmatpush1.msra.mxu0 0.0
    %2227 = vmatprep.subr.mxu0 0.0
    %2228 = vmatpush1.msra.mxu0 0.0
    %2229 = vmatprep.subr.mxu0 0.0
    %2230 = vmatpush1.msra.mxu0 0.0
    %2231 = vmatprep.subr.mxu0 0.0
    %2232 = vmatpush1.msra.mxu0 0.0
    %2233 = vmatprep.subr.mxu0 0.0
    %2234 = vmatpush1.msra.mxu0 0.0
    %2235 = vmatprep.subr.mxu0 0.0
    %2236 = vmatpush1.msra.mxu0 0.0
    %2237 = vmatprep.subr.mxu0 0.0
    %2238 = vmatpush1.msra.mxu0 0.0
    %2239 = vmatprep.subr.mxu0 0.0
    %2240 = vmatpush1.msra.mxu0 0.0
    %2241 = vmatprep.subr.mxu0 0.0
    %2242 = vmatpush1.msra.mxu0 0.0
    %2243 = vmatprep.subr.mxu0 0.0
    %2244 = vmatpush1.msra.mxu0 0.0
    %2245 = vmatprep.mubr.f32.mxu0 0.0
    %v2246 = vand.u32 %v1764, 4294901760
    %2247 = vmatmul.mubr.f32.gmra.mrb[0].mxu0 %v2246
    %v2248 = vpop.f32.mrb[0].mxu0
    %v2249 = vadd.f32 %v2171, %v2248
    %v2250 = vpop.f32.mrb[0].mxu0
    %2251 = vmatprep.mubr.f32.mxu0 0.0
    %v2252 = vand.u32 %v1767, 4294901760
    %2253 = vmatmul.mubr.f32.gmra.mrb[0].mxu0 %v2252
    %v2254 = vpop.f32.mrb[0].mxu0
    %v2255 = vadd.f32 %v2177, %v2254
    %v2256 = vpop.f32.mrb[0].mxu0
    %2257 = vdwg.mxu0
    %v2259 = vcombine.high %v2249, %v2249
    %v2261 = vunpack.c.l.s4 1966171168
    %v2262 = vunpack.c.0.s8 %v2261
    %v2263 = vlaneseq
    %v2264 = vshrl.u32 %v2263, 7
    %v2265 = vsub.s32 %v2262, %v2264
    %v2266 = vrot.slane %v2249, %v2265
    %v2268 = vunpack.c.l.s4 1966171168
    %v2269 = vunpack.c.0.s8 %v2268
    %v2270 = vlaneseq
    %v2271 = vshrl.u32 %v2270, 7
    %v2272 = vsub.s32 %v2269, %v2271
    %v2273 = vrot.slane %v2259, %v2272
    %v2274 = vcombine.high %v2266, %v2266
    %v2275 = vcombine.high %v2273, %v2273
    %v2277 = vunpack.c.l.s4 1966171168
    %v2278 = vunpack.c.0.s8 %v2277
    %v2279 = vlaneseq
    %v2280 = vshrl.u32 %v2279, 7
    %v2281 = vsub.s32 %v2278, %v2280
    %v2282 = vrot.slane %v2266, %v2281
    %v2284 = vunpack.c.l.s4 1966171168
    %v2285 = vunpack.c.0.s8 %v2284
    %v2286 = vlaneseq
    %v2287 = vshrl.u32 %v2286, 7
    %v2288 = vsub.s32 %v2285, %v2287
    %v2289 = vrot.slane %v2273, %v2288
    %v2291 = vunpack.c.l.s4 1966171168
    %v2292 = vunpack.c.0.s8 %v2291
    %v2293 = vlaneseq
    %v2294 = vshrl.u32 %v2293, 7
    %v2295 = vsub.s32 %v2292, %v2294
    %v2296 = vrot.slane %v2274, %v2295
    %v2298 = vunpack.c.l.s4 1966171168
    %v2299 = vunpack.c.0.s8 %v2298
    %v2300 = vlaneseq
    %v2301 = vshrl.u32 %v2300, 7
    %v2302 = vsub.s32 %v2299, %v2301
    %v2303 = vrot.slane %v2275, %v2302
    %v2304 = vcombine.high %v2282, %v2282
    %v2305 = vcombine.high %v2289, %v2289
    %v2306 = vcombine.high %v2296, %v2296
    %v2307 = vcombine.high %v2303, %v2303
    %v2308 = vlaneseq
    %v2309 = vshrl.u32 %v2308, 7
    %v2310 = vsub.s32 0, %v2309
    %v2311 = vrot.slane %v2282, %v2310
    %v2312 = vlaneseq
    %v2313 = vshrl.u32 %v2312, 7
    %v2314 = vsub.s32 0, %v2313
    %v2315 = vrot.slane %v2296, %v2314
    %v2316 = vlaneseq
    %v2317 = vshrl.u32 %v2316, 7
    %v2318 = vsub.s32 0, %v2317
    %v2319 = vrot.slane %v2304, %v2318
    %v2320 = vlaneseq
    %v2321 = vshrl.u32 %v2320, 7
    %v2322 = vsub.s32 0, %v2321
    %v2323 = vrot.slane %v2306, %v2322
    %v2324 = vlaneseq
    %v2325 = vshrl.u32 %v2324, 7
    %v2326 = vsub.s32 0, %v2325
    %v2327 = vrot.slane %v2289, %v2326
    %v2328 = vlaneseq
    %v2329 = vshrl.u32 %v2328, 7
    %v2330 = vsub.s32 0, %v2329
    %v2331 = vrot.slane %v2303, %v2330
    %v2332 = vlaneseq
    %v2333 = vshrl.u32 %v2332, 7
    %v2334 = vsub.s32 0, %v2333
    %v2335 = vrot.slane %v2305, %v2334
    %v2336 = vlaneseq
    %v2337 = vshrl.u32 %v2336, 7
    %v2338 = vsub.s32 0, %v2337
    %v2339 = vrot.slane %v2307, %v2338
    %2348 = vrot.lane.b32.xlu0 %v2249, 120
    %v2349 = vpop.permute.xlu0 %2348
    %v2351 = vadd.f32 %v2311, %v2349
    %v2352 = vadd.f32 %v2315, %v2349
    %v2353 = vadd.f32 %v2319, %v2349
    %v2354 = vadd.f32 %v2323, %v2349
    %v2355 = vadd.f32 %v2327, %v2349
    %v2356 = vadd.f32 %v2331, %v2349
    %v2357 = vadd.f32 %v2335, %v2349
    %v2358 = vadd.f32 %v2339, %v2349
    %v2359 = vxor.u32 %v2351, 2147483648
    %v2360 = vxor.u32 %v2352, 2147483648
    %v2361 = vxor.u32 %v2353, 2147483648
    %v2362 = vxor.u32 %v2354, 2147483648
    %v2363 = vxor.u32 %v2355, 2147483648
    %v2364 = vxor.u32 %v2356, 2147483648
    %v2365 = vxor.u32 %v2357, 2147483648
    %v2366 = vxor.u32 %v2358, 2147483648
    %v2367 = vmul.f32 %v2359, 1.442695
    %v2368 = vpow.pop %v2367
    %v2369 = vmul.f32 %v2360, 1.442695
    %v2370 = vpow.pop %v2369
    %v2371 = vmul.f32 %v2361, 1.442695
    %v2372 = vpow.pop %v2371
    %v2373 = vmul.f32 %v2362, 1.442695
    %v2374 = vpow.pop %v2373
    %v2375 = vmul.f32 %v2363, 1.442695
    %v2376 = vpow.pop %v2375
    %v2377 = vmul.f32 %v2364, 1.442695
    %v2378 = vpow.pop %v2377
    %v2379 = vmul.f32 %v2365, 1.442695
    %v2380 = vpow.pop %v2379
    %v2381 = vmul.f32 %v2366, 1.442695
    %v2382 = vpow.pop %v2381
    %v2383 = vadd.f32 %v2368, 1.0
    %v2384 = vadd.f32 %v2370, 1.0
    %v2385 = vadd.f32 %v2372, 1.0
    %v2386 = vadd.f32 %v2374, 1.0
    %v2387 = vadd.f32 %v2376, 1.0
    %v2388 = vadd.f32 %v2378, 1.0
    %v2389 = vadd.f32 %v2380, 1.0
    %v2390 = vadd.f32 %v2382, 1.0
    %v2391 = vrcp.pop %v2383
    %v2392 = vmul.f32 1.0, %v2391
    %v2393 = vrcp.pop %v2384
    %v2394 = vmul.f32 1.0, %v2393
    %v2395 = vrcp.pop %v2385
    %v2396 = vmul.f32 1.0, %v2395
    %v2397 = vrcp.pop %v2386
    %v2398 = vmul.f32 1.0, %v2397
    %v2399 = vrcp.pop %v2387
    %v2400 = vmul.f32 1.0, %v2399
    %v2401 = vrcp.pop %v2388
    %v2402 = vmul.f32 1.0, %v2401
    %v2403 = vrcp.pop %v2389
    %v2404 = vmul.f32 1.0, %v2403
    %v2405 = vrcp.pop %v2390
    %v2406 = vmul.f32 1.0, %v2405
    %v2407 = vld [vmem:[%s2] sm:$0xff]
    %v2408 = vld [vmem:[%s3] sm:$0x1]
    %2410 = vset.pattern.permute.xlu0 0
    %2411 = vperm.xlu0 %2410, %v2407
    %v2412 = vpop.permute.xlu0 %2411
    %v2415 = vlaneseq
    %v2416 = vshrl.u32 %v2415, 7
    %v2417 = vsub.s32 0, %v2416
    %v2418 = vrot.slane %v2408, %v2417
    %v2420 = vmul.f32 %v2412, %v2418
    %v2421 = vmul.f32 %v1753, %v2392
    %v2422 = vmul.f32 %v1753, %v2394
    %v2423 = vmul.f32 %v1753, %v2396
    %v2424 = vmul.f32 %v1753, %v2398
    %v2425 = vmul.f32 %v1753, %v2400
    %v2426 = vmul.f32 %v1753, %v2402
    %v2427 = vmul.f32 %v1753, %v2404
    %v2428 = vmul.f32 %v1753, %v2406
    %v2429 = vlaneseq
    %v2430 = vshrl.u32 %v2429, 7
    %v2431 = vsub.s32 0, %v2430
    %v2432 = vrot.slane %v2420, %v2431
    %2434 = vbcast.lane.b32.xlu0 %v2432, 256
    %v2435 = vpop.permute.xlu0 %2434
    %v2436 = vlaneseq
    %v2437 = vshrl.u32 %v2436, 7
    %v2438 = vsub.s32 1, %v2437
    %v2439 = vrot.slane %v2420, %v2438
    %2441 = vbcast.lane.b32.xlu0 %v2439, 256
    %v2442 = vpop.permute.xlu0 %2441
    %v2443 = vlaneseq
    %v2444 = vshrl.u32 %v2443, 7
    %v2445 = vsub.s32 2, %v2444
    %v2446 = vrot.slane %v2420, %v2445
    %2448 = vbcast.lane.b32.xlu0 %v2446, 256
    %v2449 = vpop.permute.xlu0 %2448
    %v2450 = vlaneseq
    %v2451 = vshrl.u32 %v2450, 7
    %v2452 = vsub.s32 3, %v2451
    %v2453 = vrot.slane %v2420, %v2452
    %2455 = vbcast.lane.b32.xlu0 %v2453, 256
    %v2456 = vpop.permute.xlu0 %2455
    %v2457 = vlaneseq
    %v2458 = vshrl.u32 %v2457, 7
    %v2459 = vsub.s32 4, %v2458
    %v2460 = vrot.slane %v2420, %v2459
    %2462 = vbcast.lane.b32.xlu0 %v2460, 256
    %v2463 = vpop.permute.xlu0 %2462
    %v2464 = vlaneseq
    %v2465 = vshrl.u32 %v2464, 7
    %v2466 = vsub.s32 5, %v2465
    %v2467 = vrot.slane %v2420, %v2466
    %2469 = vbcast.lane.b32.xlu0 %v2467, 256
    %v2470 = vpop.permute.xlu0 %2469
    %v2471 = vlaneseq
    %v2472 = vshrl.u32 %v2471, 7
    %v2473 = vsub.s32 6, %v2472
    %v2474 = vrot.slane %v2420, %v2473
    %2476 = vbcast.lane.b32.xlu0 %v2474, 256
    %v2477 = vpop.permute.xlu0 %2476
    %v2478 = vlaneseq
    %v2479 = vshrl.u32 %v2478, 7
    %v2480 = vsub.s32 7, %v2479
    %v2481 = vrot.slane %v2420, %v2480
    %2483 = vbcast.lane.b32.xlu0 %v2481, 256
    %v2484 = vpop.permute.xlu0 %2483
    %v2485 = vmul.f32 %v2421, %v2435
    %v2486 = vmul.f32 %v2422, %v2442
    %v2487 = vmul.f32 %v2423, %v2449
    %v2488 = vmul.f32 %v2424, %v2456
    %v2489 = vmul.f32 %v2425, %v2463
    %v2490 = vmul.f32 %v2426, %v2470
    %v2491 = vmul.f32 %v2427, %v2477
    %v2492 = vmul.f32 %v2428, %v2484
    %v2493 = vsel %vm750, %v2485, 0.0
    %v2494 = vrot.slane %v2493, 4
    %v2495 = vadd.f32 %v2493, %v2494
    %v2496 = vrot.slane %v2495, 2
    %v2497 = vadd.f32 %v2495, %v2496
    %v2498 = vrot.slane %v2497, 1
    %v2499 = vadd.f32 %v2497, %v2498
    %v2500 = vsel %vm750, %v2486, 0.0
    %v2501 = vrot.slane %v2500, 4
    %v2502 = vadd.f32 %v2500, %v2501
    %v2503 = vrot.slane %v2502, 2
    %v2504 = vadd.f32 %v2502, %v2503
    %v2505 = vrot.slane %v2504, 1
    %v2506 = vadd.f32 %v2504, %v2505
    %v2507 = vsel %vm750, %v2487, 0.0
    %v2508 = vrot.slane %v2507, 4
    %v2509 = vadd.f32 %v2507, %v2508
    %v2510 = vrot.slane %v2509, 2
    %v2511 = vadd.f32 %v2509, %v2510
    %v2512 = vrot.slane %v2511, 1
    %v2513 = vadd.f32 %v2511, %v2512
    %v2514 = vsel %vm750, %v2488, 0.0
    %v2515 = vrot.slane %v2514, 4
    %v2516 = vadd.f32 %v2514, %v2515
    %v2517 = vrot.slane %v2516, 2
    %v2518 = vadd.f32 %v2516, %v2517
    %v2519 = vrot.slane %v2518, 1
    %v2520 = vadd.f32 %v2518, %v2519
    %v2521 = vsel %vm750, %v2489, 0.0
    %v2522 = vrot.slane %v2521, 4
    %v2523 = vadd.f32 %v2521, %v2522
    %v2524 = vrot.slane %v2523, 2
    %v2525 = vadd.f32 %v2523, %v2524
    %v2526 = vrot.slane %v2525, 1
    %v2527 = vadd.f32 %v2525, %v2526
    %v2528 = vsel %vm750, %v2490, 0.0
    %v2529 = vrot.slane %v2528, 4
    %v2530 = vadd.f32 %v2528, %v2529
    %v2531 = vrot.slane %v2530, 2
    %v2532 = vadd.f32 %v2530, %v2531
    %v2533 = vrot.slane %v2532, 1
    %v2534 = vadd.f32 %v2532, %v2533
    %v2535 = vsel %vm750, %v2491, 0.0
    %v2536 = vrot.slane %v2535, 4
    %v2537 = vadd.f32 %v2535, %v2536
    %v2538 = vrot.slane %v2537, 2
    %v2539 = vadd.f32 %v2537, %v2538
    %v2540 = vrot.slane %v2539, 1
    %v2541 = vadd.f32 %v2539, %v2540
    %v2542 = vsel %vm750, %v2492, 0.0
    %v2543 = vrot.slane %v2542, 4
    %v2544 = vadd.f32 %v2542, %v2543
    %v2545 = vrot.slane %v2544, 2
    %v2546 = vadd.f32 %v2544, %v2545
    %v2547 = vrot.slane %v2546, 1
    %v2548 = vadd.f32 %v2546, %v2547
    %vm2549 = vcmask 57344
    %v2550 = vsel %vm2549, %v2408, 0.0
    %2551 = vadd.xlane.f32.xlu0 %v2550
    %v2552 = vpop.xlane.xlu0 %2551
    %v2553 = vrot.slane %v2552, 4
    %v2554 = vadd.f32 %v2552, %v2553
    %v2555 = vrot.slane %v2554, 2
    %v2556 = vadd.f32 %v2554, %v2555
    %v2557 = vrot.slane %v2556, 1
    %v2558 = vadd.f32 %v2556, %v2557
    %s2559 = vtos %v2558
    %v2560 = vstv %s2559
    %v2561 = vrcp.pop %v2560
    %s2562 = vtos %v2561
    %v2563 = vstv %s2562
    %v2564 = vmul.f32 %v2499, %v2563
    %v2565 = vmul.f32 %v2506, %v2563
    %v2566 = vmul.f32 %v2513, %v2563
    %v2567 = vmul.f32 %v2520, %v2563
    %v2568 = vmul.f32 %v2527, %v2563
    %v2569 = vmul.f32 %v2534, %v2563
    %v2570 = vmul.f32 %v2541, %v2563
    %v2571 = vmul.f32 %v2548, %v2563
    %v2572 = vtanh.pop %v2564
    %v2573 = vtanh.pop %v2565
    %v2574 = vtanh.pop %v2566
    %v2575 = vtanh.pop %v2567
    %v2576 = vtanh.pop %v2568
    %v2577 = vtanh.pop %v2569
    %v2578 = vtanh.pop %v2570
    %v2579 = vtanh.pop %v2571
    %v2581 = vcombine.high %v2255, %v2255
    %v2583 = vunpack.c.l.s4 1966171168
    %v2584 = vunpack.c.0.s8 %v2583
    %v2585 = vlaneseq
    %v2586 = vshrl.u32 %v2585, 7
    %v2587 = vsub.s32 %v2584, %v2586
    %v2588 = vrot.slane %v2255, %v2587
    %v2590 = vunpack.c.l.s4 1966171168
    %v2591 = vunpack.c.0.s8 %v2590
    %v2592 = vlaneseq
    %v2593 = vshrl.u32 %v2592, 7
    %v2594 = vsub.s32 %v2591, %v2593
    %v2595 = vrot.slane %v2581, %v2594
    %v2596 = vcombine.high %v2588, %v2588
    %v2597 = vcombine.high %v2595, %v2595
    %v2599 = vunpack.c.l.s4 1966171168
    %v2600 = vunpack.c.0.s8 %v2599
    %v2601 = vlaneseq
    %v2602 = vshrl.u32 %v2601, 7
    %v2603 = vsub.s32 %v2600, %v2602
    %v2604 = vrot.slane %v2588, %v2603
    %v2606 = vunpack.c.l.s4 1966171168
    %v2607 = vunpack.c.0.s8 %v2606
    %v2608 = vlaneseq
    %v2609 = vshrl.u32 %v2608, 7
    %v2610 = vsub.s32 %v2607, %v2609
    %v2611 = vrot.slane %v2595, %v2610
    %v2613 = vunpack.c.l.s4 1966171168
    %v2614 = vunpack.c.0.s8 %v2613
    %v2615 = vlaneseq
    %v2616 = vshrl.u32 %v2615, 7
    %v2617 = vsub.s32 %v2614, %v2616
    %v2618 = vrot.slane %v2596, %v2617
    %v2620 = vunpack.c.l.s4 1966171168
    %v2621 = vunpack.c.0.s8 %v2620
    %v2622 = vlaneseq
    %v2623 = vshrl.u32 %v2622, 7
    %v2624 = vsub.s32 %v2621, %v2623
    %v2625 = vrot.slane %v2597, %v2624
    %v2626 = vcombine.high %v2604, %v2604
    %v2627 = vcombine.high %v2611, %v2611
    %v2628 = vcombine.high %v2618, %v2618
    %v2629 = vcombine.high %v2625, %v2625
    %v2630 = vlaneseq
    %v2631 = vshrl.u32 %v2630, 7
    %v2632 = vsub.s32 0, %v2631
    %v2633 = vrot.slane %v2604, %v2632
    %v2634 = vlaneseq
    %v2635 = vshrl.u32 %v2634, 7
    %v2636 = vsub.s32 0, %v2635
    %v2637 = vrot.slane %v2618, %v2636
    %v2638 = vlaneseq
    %v2639 = vshrl.u32 %v2638, 7
    %v2640 = vsub.s32 0, %v2639
    %v2641 = vrot.slane %v2626, %v2640
    %v2642 = vlaneseq
    %v2643 = vshrl.u32 %v2642, 7
    %v2644 = vsub.s32 0, %v2643
    %v2645 = vrot.slane %v2628, %v2644
    %v2646 = vlaneseq
    %v2647 = vshrl.u32 %v2646, 7
    %v2648 = vsub.s32 0, %v2647
    %v2649 = vrot.slane %v2611, %v2648
    %v2650 = vlaneseq
    %v2651 = vshrl.u32 %v2650, 7
    %v2652 = vsub.s32 0, %v2651
    %v2653 = vrot.slane %v2625, %v2652
    %v2654 = vlaneseq
    %v2655 = vshrl.u32 %v2654, 7
    %v2656 = vsub.s32 0, %v2655
    %v2657 = vrot.slane %v2627, %v2656
    %v2658 = vlaneseq
    %v2659 = vshrl.u32 %v2658, 7
    %v2660 = vsub.s32 0, %v2659
    %v2661 = vrot.slane %v2629, %v2660
    %2670 = vrot.lane.b32.xlu0 %v2255, 120
    %v2671 = vpop.permute.xlu0 %2670
    %v2673 = vadd.f32 %v2633, %v2671
    %v2674 = vadd.f32 %v2637, %v2671
    %v2675 = vadd.f32 %v2641, %v2671
    %v2676 = vadd.f32 %v2645, %v2671
    %v2677 = vadd.f32 %v2649, %v2671
    %v2678 = vadd.f32 %v2653, %v2671
    %v2679 = vadd.f32 %v2657, %v2671
    %v2680 = vadd.f32 %v2661, %v2671
    %v2681 = vxor.u32 %v2673, 2147483648
    %v2682 = vxor.u32 %v2674, 2147483648
    %v2683 = vxor.u32 %v2675, 2147483648
    %v2684 = vxor.u32 %v2676, 2147483648
    %v2685 = vxor.u32 %v2677, 2147483648
    %v2686 = vxor.u32 %v2678, 2147483648
    %v2687 = vxor.u32 %v2679, 2147483648
    %v2688 = vxor.u32 %v2680, 2147483648
    %v2689 = vmul.f32 %v2681, 1.442695
    %v2690 = vpow.pop %v2689
    %v2691 = vmul.f32 %v2682, 1.442695
    %v2692 = vpow.pop %v2691
    %v2693 = vmul.f32 %v2683, 1.442695
    %v2694 = vpow.pop %v2693
    %v2695 = vmul.f32 %v2684, 1.442695
    %v2696 = vpow.pop %v2695
    %v2697 = vmul.f32 %v2685, 1.442695
    %v2698 = vpow.pop %v2697
    %v2699 = vmul.f32 %v2686, 1.442695
    %v2700 = vpow.pop %v2699
    %v2701 = vmul.f32 %v2687, 1.442695
    %v2702 = vpow.pop %v2701
    %v2703 = vmul.f32 %v2688, 1.442695
    %v2704 = vpow.pop %v2703
    %v2705 = vadd.f32 %v2690, 1.0
    %v2706 = vadd.f32 %v2692, 1.0
    %v2707 = vadd.f32 %v2694, 1.0
    %v2708 = vadd.f32 %v2696, 1.0
    %v2709 = vadd.f32 %v2698, 1.0
    %v2710 = vadd.f32 %v2700, 1.0
    %v2711 = vadd.f32 %v2702, 1.0
    %v2712 = vadd.f32 %v2704, 1.0
    %v2713 = vrcp.pop %v2705
    %v2714 = vmul.f32 1.0, %v2713
    %v2715 = vrcp.pop %v2706
    %v2716 = vmul.f32 1.0, %v2715
    %v2717 = vrcp.pop %v2707
    %v2718 = vmul.f32 1.0, %v2717
    %v2719 = vrcp.pop %v2708
    %v2720 = vmul.f32 1.0, %v2719
    %v2721 = vrcp.pop %v2709
    %v2722 = vmul.f32 1.0, %v2721
    %v2723 = vrcp.pop %v2710
    %v2724 = vmul.f32 1.0, %v2723
    %v2725 = vrcp.pop %v2711
    %v2726 = vmul.f32 1.0, %v2725
    %v2727 = vrcp.pop %v2712
    %v2728 = vmul.f32 1.0, %v2727
    %s2729 = scalar_lea.vmem %s2, 8
    %v2730 = vld [vmem:[%s2729] sm:$0xff]
    %s2731 = scalar_lea.vmem %s3, 1
    %v2732 = vld [vmem:[%s2731] sm:$0x1]
    %2734 = vset.pattern.permute.xlu0 0
    %2735 = vperm.xlu0 %2734, %v2730
    %v2736 = vpop.permute.xlu0 %2735
    %v2739 = vlaneseq
    %v2740 = vshrl.u32 %v2739, 7
    %v2741 = vsub.s32 0, %v2740
    %v2742 = vrot.slane %v2732, %v2741
    %v2744 = vmul.f32 %v2736, %v2742
    %v2745 = vmul.f32 %v1754, %v2714
    %v2746 = vmul.f32 %v1754, %v2716
    %v2747 = vmul.f32 %v1754, %v2718
    %v2748 = vmul.f32 %v1754, %v2720
    %v2749 = vmul.f32 %v1754, %v2722
    %v2750 = vmul.f32 %v1754, %v2724
    %v2751 = vmul.f32 %v1754, %v2726
    %v2752 = vmul.f32 %v1754, %v2728
    %v2753 = vlaneseq
    %v2754 = vshrl.u32 %v2753, 7
    %v2755 = vsub.s32 0, %v2754
    %v2756 = vrot.slane %v2744, %v2755
    %2758 = vbcast.lane.b32.xlu0 %v2756, 256
    %v2759 = vpop.permute.xlu0 %2758
    %v2760 = vlaneseq
    %v2761 = vshrl.u32 %v2760, 7
    %v2762 = vsub.s32 1, %v2761
    %v2763 = vrot.slane %v2744, %v2762
    %2765 = vbcast.lane.b32.xlu0 %v2763, 256
    %v2766 = vpop.permute.xlu0 %2765
    %v2767 = vlaneseq
    %v2768 = vshrl.u32 %v2767, 7
    %v2769 = vsub.s32 2, %v2768
    %v2770 = vrot.slane %v2744, %v2769
    %2772 = vbcast.lane.b32.xlu0 %v2770, 256
    %v2773 = vpop.permute.xlu0 %2772
    %v2774 = vlaneseq
    %v2775 = vshrl.u32 %v2774, 7
    %v2776 = vsub.s32 3, %v2775
    %v2777 = vrot.slane %v2744, %v2776
    %2779 = vbcast.lane.b32.xlu0 %v2777, 256
    %v2780 = vpop.permute.xlu0 %2779
    %v2781 = vlaneseq
    %v2782 = vshrl.u32 %v2781, 7
    %v2783 = vsub.s32 4, %v2782
    %v2784 = vrot.slane %v2744, %v2783
    %2786 = vbcast.lane.b32.xlu0 %v2784, 256
    %v2787 = vpop.permute.xlu0 %2786
    %v2788 = vlaneseq
    %v2789 = vshrl.u32 %v2788, 7
    %v2790 = vsub.s32 5, %v2789
    %v2791 = vrot.slane %v2744, %v2790
    %2793 = vbcast.lane.b32.xlu0 %v2791, 256
    %v2794 = vpop.permute.xlu0 %2793
    %v2795 = vlaneseq
    %v2796 = vshrl.u32 %v2795, 7
    %v2797 = vsub.s32 6, %v2796
    %v2798 = vrot.slane %v2744, %v2797
    %2800 = vbcast.lane.b32.xlu0 %v2798, 256
    %v2801 = vpop.permute.xlu0 %2800
    %v2802 = vlaneseq
    %v2803 = vshrl.u32 %v2802, 7
    %v2804 = vsub.s32 7, %v2803
    %v2805 = vrot.slane %v2744, %v2804
    %2807 = vbcast.lane.b32.xlu0 %v2805, 256
    %v2808 = vpop.permute.xlu0 %2807
    %v2809 = vmul.f32 %v2745, %v2759
    %v2810 = vmul.f32 %v2746, %v2766
    %v2811 = vmul.f32 %v2747, %v2773
    %v2812 = vmul.f32 %v2748, %v2780
    %v2813 = vmul.f32 %v2749, %v2787
    %v2814 = vmul.f32 %v2750, %v2794
    %v2815 = vmul.f32 %v2751, %v2801
    %v2816 = vmul.f32 %v2752, %v2808
    %v2817 = vsel %vm750, %v2809, 0.0
    %v2818 = vrot.slane %v2817, 4
    %v2819 = vadd.f32 %v2817, %v2818
    %v2820 = vrot.slane %v2819, 2
    %v2821 = vadd.f32 %v2819, %v2820
    %v2822 = vrot.slane %v2821, 1
    %v2823 = vadd.f32 %v2821, %v2822
    %v2824 = vsel %vm750, %v2810, 0.0
    %v2825 = vrot.slane %v2824, 4
    %v2826 = vadd.f32 %v2824, %v2825
    %v2827 = vrot.slane %v2826, 2
    %v2828 = vadd.f32 %v2826, %v2827
    %v2829 = vrot.slane %v2828, 1
    %v2830 = vadd.f32 %v2828, %v2829
    %v2831 = vsel %vm750, %v2811, 0.0
    %v2832 = vrot.slane %v2831, 4
    %v2833 = vadd.f32 %v2831, %v2832
    %v2834 = vrot.slane %v2833, 2
    %v2835 = vadd.f32 %v2833, %v2834
    %v2836 = vrot.slane %v2835, 1
    %v2837 = vadd.f32 %v2835, %v2836
    %v2838 = vsel %vm750, %v2812, 0.0
    %v2839 = vrot.slane %v2838, 4
    %v2840 = vadd.f32 %v2838, %v2839
    %v2841 = vrot.slane %v2840, 2
    %v2842 = vadd.f32 %v2840, %v2841
    %v2843 = vrot.slane %v2842, 1
    %v2844 = vadd.f32 %v2842, %v2843
    %v2845 = vsel %vm750, %v2813, 0.0
    %v2846 = vrot.slane %v2845, 4
    %v2847 = vadd.f32 %v2845, %v2846
    %v2848 = vrot.slane %v2847, 2
    %v2849 = vadd.f32 %v2847, %v2848
    %v2850 = vrot.slane %v2849, 1
    %v2851 = vadd.f32 %v2849, %v2850
    %v2852 = vsel %vm750, %v2814, 0.0
    %v2853 = vrot.slane %v2852, 4
    %v2854 = vadd.f32 %v2852, %v2853
    %v2855 = vrot.slane %v2854, 2
    %v2856 = vadd.f32 %v2854, %v2855
    %v2857 = vrot.slane %v2856, 1
    %v2858 = vadd.f32 %v2856, %v2857
    %v2859 = vsel %vm750, %v2815, 0.0
    %v2860 = vrot.slane %v2859, 4
    %v2861 = vadd.f32 %v2859, %v2860
    %v2862 = vrot.slane %v2861, 2
    %v2863 = vadd.f32 %v2861, %v2862
    %v2864 = vrot.slane %v2863, 1
    %v2865 = vadd.f32 %v2863, %v2864
    %v2866 = vsel %vm750, %v2816, 0.0
    %v2867 = vrot.slane %v2866, 4
    %v2868 = vadd.f32 %v2866, %v2867
    %v2869 = vrot.slane %v2868, 2
    %v2870 = vadd.f32 %v2868, %v2869
    %v2871 = vrot.slane %v2870, 1
    %v2872 = vadd.f32 %v2870, %v2871
    %v2873 = vsel %vm2549, %v2732, 0.0
    %2874 = vadd.xlane.f32.xlu0 %v2873
    %v2875 = vpop.xlane.xlu0 %2874
    %v2876 = vrot.slane %v2875, 4
    %v2877 = vadd.f32 %v2875, %v2876
    %v2878 = vrot.slane %v2877, 2
    %v2879 = vadd.f32 %v2877, %v2878
    %v2880 = vrot.slane %v2879, 1
    %v2881 = vadd.f32 %v2879, %v2880
    %s2882 = vtos %v2881
    %v2883 = vstv %s2882
    %v2884 = vrcp.pop %v2883
    %s2885 = vtos %v2884
    %v2886 = vstv %s2885
    %v2887 = vmul.f32 %v2823, %v2886
    %v2888 = vmul.f32 %v2830, %v2886
    %v2889 = vmul.f32 %v2837, %v2886
    %v2890 = vmul.f32 %v2844, %v2886
    %v2891 = vmul.f32 %v2851, %v2886
    %v2892 = vmul.f32 %v2858, %v2886
    %v2893 = vmul.f32 %v2865, %v2886
    %v2894 = vmul.f32 %v2872, %v2886
    %v2895 = vtanh.pop %v2887
    %v2896 = vtanh.pop %v2888
    %v2897 = vtanh.pop %v2889
    %v2898 = vtanh.pop %v2890
    %v2899 = vtanh.pop %v2891
    %v2900 = vtanh.pop %v2892
    %v2901 = vtanh.pop %v2893
    %v2902 = vtanh.pop %v2894
    %vm2911 = vcmask 1041409
    %v2912 = vsel %vm2911, %v2573, %v2572
    %vm2913 = vcmask 1042434
    %v2914 = vsel %vm2913, %v2574, %v2912
    %vm2915 = vcmask 1043459
    %v2916 = vsel %vm2915, %v2575, %v2914
    %vm2917 = vcmask 1044484
    %v2918 = vsel %vm2917, %v2576, %v2916
    %vm2919 = vcmask 1045509
    %v2920 = vsel %vm2919, %v2577, %v2918
    %vm2921 = vcmask 1046534
    %v2922 = vsel %vm2921, %v2578, %v2920
    %vm2923 = vcmask 1047559
    %v2924 = vsel %vm2923, %v2579, %v2922
    %v2933 = vsel %vm2911, %v2896, %v2895
    %v2934 = vsel %vm2913, %v2897, %v2933
    %v2935 = vsel %vm2915, %v2898, %v2934
    %v2936 = vsel %vm2917, %v2899, %v2935
    %v2937 = vsel %vm2919, %v2900, %v2936
    %v2938 = vsel %vm2921, %v2901, %v2937
    %v2939 = vsel %vm2923, %v2902, %v2938
    %v2940 = vld [vmem:[%s10] sm:$0xff]
    %v2941 = vld [vmem:[%s11] sm:$0x1]
    %v2943 = vlaneseq
    %v2944 = vshrl.u32 %v2943, 7
    %v2945 = vsub.s32 0, %v2944
    %v2946 = vrot.slane %v2941, %v2945
    %v2948 = vsel %vm750, %v2924, 0
    %v2950 = vsel %vm750, %v2939, 0
    %2952 = vmatprep.subr.mxu0 0.0
    %v2953 = vand.u32 %v2940, 4294901760
    %2954 = vmatpush1.msra.mxu0 %v2953
    %2955 = vmatprep.subr.mxu0 0.0
    %2956 = vmatpush1.msra.mxu0 0.0
    %2957 = vmatprep.subr.mxu0 0.0
    %2958 = vmatpush1.msra.mxu0 0.0
    %2959 = vmatprep.subr.mxu0 0.0
    %2960 = vmatpush1.msra.mxu0 0.0
    %2961 = vmatprep.subr.mxu0 0.0
    %2962 = vmatpush1.msra.mxu0 0.0
    %2963 = vmatprep.subr.mxu0 0.0
    %2964 = vmatpush1.msra.mxu0 0.0
    %2965 = vmatprep.subr.mxu0 0.0
    %2966 = vmatpush1.msra.mxu0 0.0
    %2967 = vmatprep.subr.mxu0 0.0
    %2968 = vmatpush1.msra.mxu0 0.0
    %2969 = vmatprep.subr.mxu0 0.0
    %2970 = vmatpush1.msra.mxu0 0.0
    %2971 = vmatprep.subr.mxu0 0.0
    %2972 = vmatpush1.msra.mxu0 0.0
    %2973 = vmatprep.subr.mxu0 0.0
    %2974 = vmatpush1.msra.mxu0 0.0
    %2975 = vmatprep.subr.mxu0 0.0
    %2976 = vmatpush1.msra.mxu0 0.0
    %2977 = vmatprep.subr.mxu0 0.0
    %2978 = vmatpush1.msra.mxu0 0.0
    %2979 = vmatprep.subr.mxu0 0.0
    %2980 = vmatpush1.msra.mxu0 0.0
    %2981 = vmatprep.subr.mxu0 0.0
    %2982 = vmatpush1.msra.mxu0 0.0
    %2983 = vmatprep.subr.mxu0 0.0
    %2984 = vmatpush1.msra.mxu0 0.0
    %2985 = vmatprep.subr.mxu0 0.0
    %2986 = vmatpush1.msra.mxu0 0.0
    %2987 = vmatprep.subr.mxu0 0.0
    %2988 = vmatpush1.msra.mxu0 0.0
    %2989 = vmatprep.subr.mxu0 0.0
    %2990 = vmatpush1.msra.mxu0 0.0
    %2991 = vmatprep.subr.mxu0 0.0
    %2992 = vmatpush1.msra.mxu0 0.0
    %2993 = vmatprep.subr.mxu0 0.0
    %2994 = vmatpush1.msra.mxu0 0.0
    %2995 = vmatprep.subr.mxu0 0.0
    %2996 = vmatpush1.msra.mxu0 0.0
    %2997 = vmatprep.subr.mxu0 0.0
    %2998 = vmatpush1.msra.mxu0 0.0
    %2999 = vmatprep.subr.mxu0 0.0
    %3000 = vmatpush1.msra.mxu0 0.0
    %3001 = vmatprep.subr.mxu0 0.0
    %3002 = vmatpush1.msra.mxu0 0.0
    %3003 = vmatprep.subr.mxu0 0.0
    %3004 = vmatpush1.msra.mxu0 0.0
    %3005 = vmatprep.subr.mxu0 0.0
    %3006 = vmatpush1.msra.mxu0 0.0
    %3007 = vmatprep.subr.mxu0 0.0
    %3008 = vmatpush1.msra.mxu0 0.0
    %3009 = vmatprep.subr.mxu0 0.0
    %3010 = vmatpush1.msra.mxu0 0.0
    %3011 = vmatprep.subr.mxu0 0.0
    %3012 = vmatpush1.msra.mxu0 0.0
    %3013 = vmatprep.subr.mxu0 0.0
    %3014 = vmatpush1.msra.mxu0 0.0
    %3015 = vmatprep.subr.mxu0 0.0
    %3016 = vmatpush1.msra.mxu0 0.0
    %3017 = vmatprep.mubr.f32.mxu0 0.0
    %v3018 = vand.u32 %v2948, 4294901760
    %v3019 = vsub.f32 %v2948, %v3018
    %v3020 = vand.u32 %v3019, 4294901760
    %v3021 = vsub.f32 %v3019, %v3020
    %v3022 = vand.u32 %v3021, 4294901760
    %3023 = vmatmul.mubr.f32.gmra.mrb[0].mxu0 %v3022
    %v3024 = vpop.f32.mrb[0].mxu0
    %v3025 = vadd.f32 %v2946, %v3024
    %v3026 = vpop.f32.mrb[0].mxu0
    %3027 = vmatprep.mubr.f32.mxu0 0.0
    %v3028 = vand.u32 %v2950, 4294901760
    %v3029 = vsub.f32 %v2950, %v3028
    %v3030 = vand.u32 %v3029, 4294901760
    %v3031 = vsub.f32 %v3029, %v3030
    %v3032 = vand.u32 %v3031, 4294901760
    %3033 = vmatmul.mubr.f32.gmra.mrb[0].mxu0 %v3032
    %v3034 = vpop.f32.mrb[0].mxu0
    %v3035 = vadd.f32 %v2946, %v3034
    %v3036 = vpop.f32.mrb[0].mxu0
    %3037 = vdwg.mxu0
    %3038 = vmatprep.subr.mxu0 0.0
    %v3039 = vand.u32 %v2940, 4294901760
    %v3040 = vsub.f32 %v2940, %v3039
    %v3041 = vand.u32 %v3040, 4294901760
    %v3042 = vsub.f32 %v3040, %v3041
    %v3043 = vand.u32 %v3042, 4294901760
    %3044 = vmatpush1.msra.mxu0 %v3043
    %3045 = vmatprep.subr.mxu0 0.0
    %3046 = vmatpush1.msra.mxu0 0.0
    %3047 = vmatprep.subr.mxu0 0.0
    %3048 = vmatpush1.msra.mxu0 0.0
    %3049 = vmatprep.subr.mxu0 0.0
    %3050 = vmatpush1.msra.mxu0 0.0
    %3051 = vmatprep.subr.mxu0 0.0
    %3052 = vmatpush1.msra.mxu0 0.0
    %3053 = vmatprep.subr.mxu0 0.0
    %3054 = vmatpush1.msra.mxu0 0.0
    %3055 = vmatprep.subr.mxu0 0.0
    %3056 = vmatpush1.msra.mxu0 0.0
    %3057 = vmatprep.subr.mxu0 0.0
    %3058 = vmatpush1.msra.mxu0 0.0
    %3059 = vmatprep.subr.mxu0 0.0
    %3060 = vmatpush1.msra.mxu0 0.0
    %3061 = vmatprep.subr.mxu0 0.0
    %3062 = vmatpush1.msra.mxu0 0.0
    %3063 = vmatprep.subr.mxu0 0.0
    %3064 = vmatpush1.msra.mxu0 0.0
    %3065 = vmatprep.subr.mxu0 0.0
    %3066 = vmatpush1.msra.mxu0 0.0
    %3067 = vmatprep.subr.mxu0 0.0
    %3068 = vmatpush1.msra.mxu0 0.0
    %3069 = vmatprep.subr.mxu0 0.0
    %3070 = vmatpush1.msra.mxu0 0.0
    %3071 = vmatprep.subr.mxu0 0.0
    %3072 = vmatpush1.msra.mxu0 0.0
    %3073 = vmatprep.subr.mxu0 0.0
    %3074 = vmatpush1.msra.mxu0 0.0
    %3075 = vmatprep.subr.mxu0 0.0
    %3076 = vmatpush1.msra.mxu0 0.0
    %3077 = vmatprep.subr.mxu0 0.0
    %3078 = vmatpush1.msra.mxu0 0.0
    %3079 = vmatprep.subr.mxu0 0.0
    %3080 = vmatpush1.msra.mxu0 0.0
    %3081 = vmatprep.subr.mxu0 0.0
    %3082 = vmatpush1.msra.mxu0 0.0
    %3083 = vmatprep.subr.mxu0 0.0
    %3084 = vmatpush1.msra.mxu0 0.0
    %3085 = vmatprep.subr.mxu0 0.0
    %3086 = vmatpush1.msra.mxu0 0.0
    %3087 = vmatprep.subr.mxu0 0.0
    %3088 = vmatpush1.msra.mxu0 0.0
    %3089 = vmatprep.subr.mxu0 0.0
    %3090 = vmatpush1.msra.mxu0 0.0
    %3091 = vmatprep.subr.mxu0 0.0
    %3092 = vmatpush1.msra.mxu0 0.0
    %3093 = vmatprep.subr.mxu0 0.0
    %3094 = vmatpush1.msra.mxu0 0.0
    %3095 = vmatprep.subr.mxu0 0.0
    %3096 = vmatpush1.msra.mxu0 0.0
    %3097 = vmatprep.subr.mxu0 0.0
    %3098 = vmatpush1.msra.mxu0 0.0
    %3099 = vmatprep.subr.mxu0 0.0
    %3100 = vmatpush1.msra.mxu0 0.0
    %3101 = vmatprep.subr.mxu0 0.0
    %3102 = vmatpush1.msra.mxu0 0.0
    %3103 = vmatprep.subr.mxu0 0.0
    %3104 = vmatpush1.msra.mxu0 0.0
    %3105 = vmatprep.subr.mxu0 0.0
    %3106 = vmatpush1.msra.mxu0 0.0
    %3107 = vmatprep.mubr.f32.mxu0 0.0
    %v3108 = vand.u32 %v2948, 4294901760
    %3109 = vmatmul.mubr.f32.gmra.mrb[0].mxu0 %v3108
    %v3110 = vpop.f32.mrb[0].mxu0
    %v3111 = vadd.f32 %v3025, %v3110
    %v3112 = vpop.f32.mrb[0].mxu0
    %3113 = vmatprep.mubr.f32.mxu0 0.0
    %v3114 = vand.u32 %v2950, 4294901760
    %3115 = vmatmul.mubr.f32.gmra.mrb[0].mxu0 %v3114
    %v3116 = vpop.f32.mrb[0].mxu0
    %v3117 = vadd.f32 %v3035, %v3116
    %v3118 = vpop.f32.mrb[0].mxu0
    %3119 = vdwg.mxu0
    %3120 = vmatprep.subr.mxu0 0.0
    %v3121 = vand.u32 %v2940, 4294901760
    %v3122 = vsub.f32 %v2940, %v3121
    %3123 = vmatpush1.msra.mxu0 %v3122
    %3124 = vmatprep.subr.mxu0 0.0
    %3125 = vmatpush1.msra.mxu0 0.0
    %3126 = vmatprep.subr.mxu0 0.0
    %3127 = vmatpush1.msra.mxu0 0.0
    %3128 = vmatprep.subr.mxu0 0.0
    %3129 = vmatpush1.msra.mxu0 0.0
    %3130 = vmatprep.subr.mxu0 0.0
    %3131 = vmatpush1.msra.mxu0 0.0
    %3132 = vmatprep.subr.mxu0 0.0
    %3133 = vmatpush1.msra.mxu0 0.0
    %3134 = vmatprep.subr.mxu0 0.0
    %3135 = vmatpush1.msra.mxu0 0.0
    %3136 = vmatprep.subr.mxu0 0.0
    %3137 = vmatpush1.msra.mxu0 0.0
    %3138 = vmatprep.subr.mxu0 0.0
    %3139 = vmatpush1.msra.mxu0 0.0
    %3140 = vmatprep.subr.mxu0 0.0
    %3141 = vmatpush1.msra.mxu0 0.0
    %3142 = vmatprep.subr.mxu0 0.0
    %3143 = vmatpush1.msra.mxu0 0.0
    %3144 = vmatprep.subr.mxu0 0.0
    %3145 = vmatpush1.msra.mxu0 0.0
    %3146 = vmatprep.subr.mxu0 0.0
    %3147 = vmatpush1.msra.mxu0 0.0
    %3148 = vmatprep.subr.mxu0 0.0
    %3149 = vmatpush1.msra.mxu0 0.0
    %3150 = vmatprep.subr.mxu0 0.0
    %3151 = vmatpush1.msra.mxu0 0.0
    %3152 = vmatprep.subr.mxu0 0.0
    %3153 = vmatpush1.msra.mxu0 0.0
    %3154 = vmatprep.subr.mxu0 0.0
    %3155 = vmatpush1.msra.mxu0 0.0
    %3156 = vmatprep.subr.mxu0 0.0
    %3157 = vmatpush1.msra.mxu0 0.0
    %3158 = vmatprep.subr.mxu0 0.0
    %3159 = vmatpush1.msra.mxu0 0.0
    %3160 = vmatprep.subr.mxu0 0.0
    %3161 = vmatpush1.msra.mxu0 0.0
    %3162 = vmatprep.subr.mxu0 0.0
    %3163 = vmatpush1.msra.mxu0 0.0
    %3164 = vmatprep.subr.mxu0 0.0
    %3165 = vmatpush1.msra.mxu0 0.0
    %3166 = vmatprep.subr.mxu0 0.0
    %3167 = vmatpush1.msra.mxu0 0.0
    %3168 = vmatprep.subr.mxu0 0.0
    %3169 = vmatpush1.msra.mxu0 0.0
    %3170 = vmatprep.subr.mxu0 0.0
    %3171 = vmatpush1.msra.mxu0 0.0
    %3172 = vmatprep.subr.mxu0 0.0
    %3173 = vmatpush1.msra.mxu0 0.0
    %3174 = vmatprep.subr.mxu0 0.0
    %3175 = vmatpush1.msra.mxu0 0.0
    %3176 = vmatprep.subr.mxu0 0.0
    %3177 = vmatpush1.msra.mxu0 0.0
    %3178 = vmatprep.subr.mxu0 0.0
    %3179 = vmatpush1.msra.mxu0 0.0
    %3180 = vmatprep.subr.mxu0 0.0
    %3181 = vmatpush1.msra.mxu0 0.0
    %3182 = vmatprep.subr.mxu0 0.0
    %3183 = vmatpush1.msra.mxu0 0.0
    %3184 = vmatprep.subr.mxu0 0.0
    %3185 = vmatpush1.msra.mxu0 0.0
    %3186 = vmatprep.mubr.f32.mxu0 0.0
    %v3187 = vand.u32 %v2948, 4294901760
    %v3188 = vsub.f32 %v2948, %v3187
    %3189 = vmatmul.mubr.f32.gmra.mrb[0].mxu0 %v3188
    %v3190 = vpop.f32.mrb[0].mxu0
    %v3191 = vadd.f32 %v3111, %v3190
    %v3192 = vpop.f32.mrb[0].mxu0
    %3193 = vmatprep.mubr.f32.mxu0 0.0
    %v3194 = vand.u32 %v2950, 4294901760
    %v3195 = vsub.f32 %v2950, %v3194
    %3196 = vmatmul.mubr.f32.gmra.mrb[0].mxu0 %v3195
    %v3197 = vpop.f32.mrb[0].mxu0
    %v3198 = vadd.f32 %v3117, %v3197
    %v3199 = vpop.f32.mrb[0].mxu0
    %3200 = vdwg.mxu0
    %3201 = vmatprep.subr.mxu0 0.0
    %v3202 = vand.u32 %v2940, 4294901760
    %3203 = vmatpush1.msra.mxu0 %v3202
    %3204 = vmatprep.subr.mxu0 0.0
    %3205 = vmatpush1.msra.mxu0 0.0
    %3206 = vmatprep.subr.mxu0 0.0
    %3207 = vmatpush1.msra.mxu0 0.0
    %3208 = vmatprep.subr.mxu0 0.0
    %3209 = vmatpush1.msra.mxu0 0.0
    %3210 = vmatprep.subr.mxu0 0.0
    %3211 = vmatpush1.msra.mxu0 0.0
    %3212 = vmatprep.subr.mxu0 0.0
    %3213 = vmatpush1.msra.mxu0 0.0
    %3214 = vmatprep.subr.mxu0 0.0
    %3215 = vmatpush1.msra.mxu0 0.0
    %3216 = vmatprep.subr.mxu0 0.0
    %3217 = vmatpush1.msra.mxu0 0.0
    %3218 = vmatprep.subr.mxu0 0.0
    %3219 = vmatpush1.msra.mxu0 0.0
    %3220 = vmatprep.subr.mxu0 0.0
    %3221 = vmatpush1.msra.mxu0 0.0
    %3222 = vmatprep.subr.mxu0 0.0
    %3223 = vmatpush1.msra.mxu0 0.0
    %3224 = vmatprep.subr.mxu0 0.0
    %3225 = vmatpush1.msra.mxu0 0.0
    %3226 = vmatprep.subr.mxu0 0.0
    %3227 = vmatpush1.msra.mxu0 0.0
    %3228 = vmatprep.subr.mxu0 0.0
    %3229 = vmatpush1.msra.mxu0 0.0
    %3230 = vmatprep.subr.mxu0 0.0
    %3231 = vmatpush1.msra.mxu0 0.0
    %3232 = vmatprep.subr.mxu0 0.0
    %3233 = vmatpush1.msra.mxu0 0.0
    %3234 = vmatprep.subr.mxu0 0.0
    %3235 = vmatpush1.msra.mxu0 0.0
    %3236 = vmatprep.subr.mxu0 0.0
    %3237 = vmatpush1.msra.mxu0 0.0
    %3238 = vmatprep.subr.mxu0 0.0
    %3239 = vmatpush1.msra.mxu0 0.0
    %3240 = vmatprep.subr.mxu0 0.0
    %3241 = vmatpush1.msra.mxu0 0.0
    %3242 = vmatprep.subr.mxu0 0.0
    %3243 = vmatpush1.msra.mxu0 0.0
    %3244 = vmatprep.subr.mxu0 0.0
    %3245 = vmatpush1.msra.mxu0 0.0
    %3246 = vmatprep.subr.mxu0 0.0
    %3247 = vmatpush1.msra.mxu0 0.0
    %3248 = vmatprep.subr.mxu0 0.0
    %3249 = vmatpush1.msra.mxu0 0.0
    %3250 = vmatprep.subr.mxu0 0.0
    %3251 = vmatpush1.msra.mxu0 0.0
    %3252 = vmatprep.subr.mxu0 0.0
    %3253 = vmatpush1.msra.mxu0 0.0
    %3254 = vmatprep.subr.mxu0 0.0
    %3255 = vmatpush1.msra.mxu0 0.0
    %3256 = vmatprep.subr.mxu0 0.0
    %3257 = vmatpush1.msra.mxu0 0.0
    %3258 = vmatprep.subr.mxu0 0.0
    %3259 = vmatpush1.msra.mxu0 0.0
    %3260 = vmatprep.subr.mxu0 0.0
    %3261 = vmatpush1.msra.mxu0 0.0
    %3262 = vmatprep.subr.mxu0 0.0
    %3263 = vmatpush1.msra.mxu0 0.0
    %3264 = vmatprep.subr.mxu0 0.0
    %3265 = vmatpush1.msra.mxu0 0.0
    %3266 = vmatprep.mubr.f32.mxu0 0.0
    %v3267 = vand.u32 %v2948, 4294901760
    %v3268 = vsub.f32 %v2948, %v3267
    %v3269 = vand.u32 %v3268, 4294901760
    %3270 = vmatmul.mubr.f32.gmra.mrb[0].mxu0 %v3269
    %v3271 = vpop.f32.mrb[0].mxu0
    %v3272 = vadd.f32 %v3191, %v3271
    %v3273 = vpop.f32.mrb[0].mxu0
    %3274 = vmatprep.mubr.f32.mxu0 0.0
    %v3275 = vand.u32 %v2950, 4294901760
    %v3276 = vsub.f32 %v2950, %v3275
    %v3277 = vand.u32 %v3276, 4294901760
    %3278 = vmatmul.mubr.f32.gmra.mrb[0].mxu0 %v3277
    %v3279 = vpop.f32.mrb[0].mxu0
    %v3280 = vadd.f32 %v3198, %v3279
    %v3281 = vpop.f32.mrb[0].mxu0
    %3282 = vdwg.mxu0
    %3283 = vmatprep.subr.mxu0 0.0
    %v3284 = vand.u32 %v2940, 4294901760
    %v3285 = vsub.f32 %v2940, %v3284
    %v3286 = vand.u32 %v3285, 4294901760
    %3287 = vmatpush1.msra.mxu0 %v3286
    %3288 = vmatprep.subr.mxu0 0.0
    %3289 = vmatpush1.msra.mxu0 0.0
    %3290 = vmatprep.subr.mxu0 0.0
    %3291 = vmatpush1.msra.mxu0 0.0
    %3292 = vmatprep.subr.mxu0 0.0
    %3293 = vmatpush1.msra.mxu0 0.0
    %3294 = vmatprep.subr.mxu0 0.0
    %3295 = vmatpush1.msra.mxu0 0.0
    %3296 = vmatprep.subr.mxu0 0.0
    %3297 = vmatpush1.msra.mxu0 0.0
    %3298 = vmatprep.subr.mxu0 0.0
    %3299 = vmatpush1.msra.mxu0 0.0
    %3300 = vmatprep.subr.mxu0 0.0
    %3301 = vmatpush1.msra.mxu0 0.0
    %3302 = vmatprep.subr.mxu0 0.0
    %3303 = vmatpush1.msra.mxu0 0.0
    %3304 = vmatprep.subr.mxu0 0.0
    %3305 = vmatpush1.msra.mxu0 0.0
    %3306 = vmatprep.subr.mxu0 0.0
    %3307 = vmatpush1.msra.mxu0 0.0
    %3308 = vmatprep.subr.mxu0 0.0
    %3309 = vmatpush1.msra.mxu0 0.0
    %3310 = vmatprep.subr.mxu0 0.0
    %3311 = vmatpush1.msra.mxu0 0.0
    %3312 = vmatprep.subr.mxu0 0.0
    %3313 = vmatpush1.msra.mxu0 0.0
    %3314 = vmatprep.subr.mxu0 0.0
    %3315 = vmatpush1.msra.mxu0 0.0
    %3316 = vmatprep.subr.mxu0 0.0
    %3317 = vmatpush1.msra.mxu0 0.0
    %3318 = vmatprep.subr.mxu0 0.0
    %3319 = vmatpush1.msra.mxu0 0.0
    %3320 = vmatprep.subr.mxu0 0.0
    %3321 = vmatpush1.msra.mxu0 0.0
    %3322 = vmatprep.subr.mxu0 0.0
    %3323 = vmatpush1.msra.mxu0 0.0
    %3324 = vmatprep.subr.mxu0 0.0
    %3325 = vmatpush1.msra.mxu0 0.0
    %3326 = vmatprep.subr.mxu0 0.0
    %3327 = vmatpush1.msra.mxu0 0.0
    %3328 = vmatprep.subr.mxu0 0.0
    %3329 = vmatpush1.msra.mxu0 0.0
    %3330 = vmatprep.subr.mxu0 0.0
    %3331 = vmatpush1.msra.mxu0 0.0
    %3332 = vmatprep.subr.mxu0 0.0
    %3333 = vmatpush1.msra.mxu0 0.0
    %3334 = vmatprep.subr.mxu0 0.0
    %3335 = vmatpush1.msra.mxu0 0.0
    %3336 = vmatprep.subr.mxu0 0.0
    %3337 = vmatpush1.msra.mxu0 0.0
    %3338 = vmatprep.subr.mxu0 0.0
    %3339 = vmatpush1.msra.mxu0 0.0
    %3340 = vmatprep.subr.mxu0 0.0
    %3341 = vmatpush1.msra.mxu0 0.0
    %3342 = vmatprep.subr.mxu0 0.0
    %3343 = vmatpush1.msra.mxu0 0.0
    %3344 = vmatprep.subr.mxu0 0.0
    %3345 = vmatpush1.msra.mxu0 0.0
    %3346 = vmatprep.subr.mxu0 0.0
    %3347 = vmatpush1.msra.mxu0 0.0
    %3348 = vmatprep.subr.mxu0 0.0
    %3349 = vmatpush1.msra.mxu0 0.0
    %3350 = vmatprep.mubr.f32.mxu0 0.0
    %v3351 = vand.u32 %v2948, 4294901760
    %3352 = vmatmul.mubr.f32.gmra.mrb[0].mxu0 %v3351
    %v3353 = vpop.f32.mrb[0].mxu0
    %v3354 = vadd.f32 %v3272, %v3353
    %v3355 = vpop.f32.mrb[0].mxu0
    %3356 = vmatprep.mubr.f32.mxu0 0.0
    %v3357 = vand.u32 %v2950, 4294901760
    %3358 = vmatmul.mubr.f32.gmra.mrb[0].mxu0 %v3357
    %v3359 = vpop.f32.mrb[0].mxu0
    %v3360 = vadd.f32 %v3280, %v3359
    %v3361 = vpop.f32.mrb[0].mxu0
    %3362 = vdwg.mxu0
    %3363 = vmatprep.subr.mxu0 0.0
    %v3364 = vand.u32 %v2940, 4294901760
    %3365 = vmatpush1.msra.mxu0 %v3364
    %3366 = vmatprep.subr.mxu0 0.0
    %3367 = vmatpush1.msra.mxu0 0.0
    %3368 = vmatprep.subr.mxu0 0.0
    %3369 = vmatpush1.msra.mxu0 0.0
    %3370 = vmatprep.subr.mxu0 0.0
    %3371 = vmatpush1.msra.mxu0 0.0
    %3372 = vmatprep.subr.mxu0 0.0
    %3373 = vmatpush1.msra.mxu0 0.0
    %3374 = vmatprep.subr.mxu0 0.0
    %3375 = vmatpush1.msra.mxu0 0.0
    %3376 = vmatprep.subr.mxu0 0.0
    %3377 = vmatpush1.msra.mxu0 0.0
    %3378 = vmatprep.subr.mxu0 0.0
    %3379 = vmatpush1.msra.mxu0 0.0
    %3380 = vmatprep.subr.mxu0 0.0
    %3381 = vmatpush1.msra.mxu0 0.0
    %3382 = vmatprep.subr.mxu0 0.0
    %3383 = vmatpush1.msra.mxu0 0.0
    %3384 = vmatprep.subr.mxu0 0.0
    %3385 = vmatpush1.msra.mxu0 0.0
    %3386 = vmatprep.subr.mxu0 0.0
    %3387 = vmatpush1.msra.mxu0 0.0
    %3388 = vmatprep.subr.mxu0 0.0
    %3389 = vmatpush1.msra.mxu0 0.0
    %3390 = vmatprep.subr.mxu0 0.0
    %3391 = vmatpush1.msra.mxu0 0.0
    %3392 = vmatprep.subr.mxu0 0.0
    %3393 = vmatpush1.msra.mxu0 0.0
    %3394 = vmatprep.subr.mxu0 0.0
    %3395 = vmatpush1.msra.mxu0 0.0
    %3396 = vmatprep.subr.mxu0 0.0
    %3397 = vmatpush1.msra.mxu0 0.0
    %3398 = vmatprep.subr.mxu0 0.0
    %3399 = vmatpush1.msra.mxu0 0.0
    %3400 = vmatprep.subr.mxu0 0.0
    %3401 = vmatpush1.msra.mxu0 0.0
    %3402 = vmatprep.subr.mxu0 0.0
    %3403 = vmatpush1.msra.mxu0 0.0
    %3404 = vmatprep.subr.mxu0 0.0
    %3405 = vmatpush1.msra.mxu0 0.0
    %3406 = vmatprep.subr.mxu0 0.0
    %3407 = vmatpush1.msra.mxu0 0.0
    %3408 = vmatprep.subr.mxu0 0.0
    %3409 = vmatpush1.msra.mxu0 0.0
    %3410 = vmatprep.subr.mxu0 0.0
    %3411 = vmatpush1.msra.mxu0 0.0
    %3412 = vmatprep.subr.mxu0 0.0
    %3413 = vmatpush1.msra.mxu0 0.0
    %3414 = vmatprep.subr.mxu0 0.0
    %3415 = vmatpush1.msra.mxu0 0.0
    %3416 = vmatprep.subr.mxu0 0.0
    %3417 = vmatpush1.msra.mxu0 0.0
    %3418 = vmatprep.subr.mxu0 0.0
    %3419 = vmatpush1.msra.mxu0 0.0
    %3420 = vmatprep.subr.mxu0 0.0
    %3421 = vmatpush1.msra.mxu0 0.0
    %3422 = vmatprep.subr.mxu0 0.0
    %3423 = vmatpush1.msra.mxu0 0.0
    %3424 = vmatprep.subr.mxu0 0.0
    %3425 = vmatpush1.msra.mxu0 0.0
    %3426 = vmatprep.subr.mxu0 0.0
    %3427 = vmatpush1.msra.mxu0 0.0
    %3428 = vmatprep.mubr.f32.mxu0 0.0
    %v3429 = vand.u32 %v2948, 4294901760
    %3430 = vmatmul.mubr.f32.gmra.mrb[0].mxu0 %v3429
    %v3431 = vpop.f32.mrb[0].mxu0
    %v3432 = vadd.f32 %v3354, %v3431
    %v3433 = vpop.f32.mrb[0].mxu0
    %3434 = vmatprep.mubr.f32.mxu0 0.0
    %v3435 = vand.u32 %v2950, 4294901760
    %3436 = vmatmul.mubr.f32.gmra.mrb[0].mxu0 %v3435
    %v3437 = vpop.f32.mrb[0].mxu0
    %v3438 = vadd.f32 %v3360, %v3437
    %v3439 = vpop.f32.mrb[0].mxu0
    %3440 = vdwg.mxu0
    %vm3441 = vcmask 72704
    %3442 = vst.msk [vmem:[#allocation4] sm:$0xff] %vm3441, %v3432
    %s3443 = scalar_lea.vmem [#allocation4], 8
    %3444 = vst.msk [vmem:[%s3443] sm:$0xff] %vm3441, %v3438
    // Predicated region
    $region50: #{grn_forward.1} parent=1 // pred_check
      _
    $region51: #{grn_forward.1} parent=1 // pred_check_branch
      %3446 = sbr.rel (0) target = $region53
    $region52: #{grn_forward.1} parent=1 // pred_region
      %s3448 = ssub.s32 256, 256
      %3449 = vsyncadd [#allocation5], %s3448
      %s3450 = sshll.u32 [#allocation4], 4
      %s3451 = int_to_ptr.vmem [resolvable:$true] %s3450
      %3456 = dma.vmem_to_hbm [thread:$0]  %s3451, 256, %s12, [#allocation5], 128, 128, 8
    $region53: #{grn_forward.1} parent=1 // pred_fallthru
      _
    // Predicated region
    $region54: #{grn_forward.1} parent=1 // pred_check
      _
    $region55: #{grn_forward.1} parent=1 // pred_check_branch
      %3458 = sbr.rel (0) target = $region57
    $region56: #{grn_forward.1} parent=1 // pred_region
      %3459 = dma.done [#allocation5], 256
    $region57: #{grn_forward.1} parent=1 // pred_fallthru
      _
    %3460 = vsyncpa [#allocation5], 1

</llo_original>
